<compile_context>
chip_gen: v6e
topology: v6e:2x2x1
jax: 0.10.0
libtpu: 0.0.40
codegen_flags: <defaults>
</compile_context>

<pallas_src>
import functools

import numpy as np
import jax
import jax.numpy as jnp
from jax.experimental import pallas as pl
from jax.experimental.pallas import tpu as pltpu


def _round_up(v, m):
    return ((v + m - 1) // m) * m


# ----------------------------------------------------------------------------
# Fused forward kernel
# ----------------------------------------------------------------------------
def _convlstm_fwd_kernel(
    patches1_ref,            # (S1*S1*B, C*64)  bf16   conv1 im2col patches, rows (s1, b)
    g2_ref,                  # (16*R2p, S1*S1*B) bf16  conv2 patch row-selection
    g3_ref,                  # (9*R3p, R2p)      bf16  conv3 patch row-selection
    w1_ref, b1_ref,          # (C*64, 32) bf16 / (1, 32) f32
    w2_ref, b2_ref,          # (16*32, 64) bf16 / (1, 64) f32   rows ordered (kh, kw, c)
    w3_ref, b3_ref,          # (9*64, 64)  bf16 / (1, 64) f32   rows ordered (kh, kw, c)
    fcw_ref, fcb_ref,        # (S3*S3*64, 512) bf16 / (1, 512) f32  rows ordered (t, c)
    wih_fc_ref,              # (512, 4H) bf16
    wih_emb_ref,             # (E, 4H)   bf16
    whh_ref,                 # (H, 4H)   bf16
    lstm_b_ref,              # (1, 4H)   f32   (b_ih + b_hh folded)
    whead_ref, bhead_ref,    # (H, 128) bf16 / (1, 128) f32   [pi | v | zeros]
    hx_ref, cx_ref,          # (Bp, H) f32
    embed_ref,               # (Bp, E) f32
    head_ref,                # out: (Bp, 128) f32
    h_out_ref,               # out: (Bp, H)   f32
    c_out_ref,               # out: (Bp, H)   f32
):
    f32, bf16 = jnp.float32, jnp.bfloat16
    r2p = g2_ref.shape[0] // 16
    r3p = g3_ref.shape[0] // 9
    bp, H = hx_ref.shape
    s3sq = fcw_ref.shape[0] // 64

    # ---- conv1 (as one matmul on the pre-built patch matrix) + relu ----
    a1 = jnp.dot(patches1_ref[...], w1_ref[...], preferred_element_type=f32)
    a1 = jnp.maximum(a1 + b1_ref[...], 0.0).astype(bf16)            # (R1, 32)

    # ---- conv2: gather patches via selection matmul, then 16 acc matmuls ----
    p2 = jnp.dot(g2_ref[...], a1, preferred_element_type=f32)       # (16*R2p, 32)
    w2 = w2_ref[...]
    acc2 = jnp.zeros((r2p, 64), f32)
    for k in range(16):                                             # 4x4 kernel positions
        acc2 = acc2 + jnp.dot(p2[k * r2p:(k + 1) * r2p, :].astype(bf16),
                              w2[k * 32:(k + 1) * 32, :],
                              preferred_element_type=f32)
    a2 = jnp.maximum(acc2 + b2_ref[...], 0.0).astype(bf16)          # (R2p, 64)

    # ---- conv3: same pattern with a 3x3 kernel ----
    p3 = jnp.dot(g3_ref[...], a2, preferred_element_type=f32)       # (9*R3p, 64)
    w3 = w3_ref[...]
    acc3 = jnp.zeros((r3p, 64), f32)
    for k in range(9):
        acc3 = acc3 + jnp.dot(p3[k * r3p:(k + 1) * r3p, :].astype(bf16),
                              w3[k * 64:(k + 1) * 64, :],
                              preferred_element_type=f32)
    a3 = jnp.maximum(acc3 + b3_ref[...], 0.0)                       # (R3p, 64) f32

    # ---- fc: NCHW flatten folded into per-spatial-position weight blocks ----
    fcw = fcw_ref[...]
    accf = jnp.zeros((bp, fcw_ref.shape[1]), f32)
    for t in range(s3sq):
        accf = accf + jnp.dot(a3[t * bp:(t + 1) * bp, :].astype(bf16),
                              fcw[t * 64:(t + 1) * 64, :],
                              preferred_element_type=f32)
    fc_out = jnp.maximum(accf + fcb_ref[...], 0.0)                  # (Bp, 512) f32

    # ---- LSTM cell: split-K gate matmul (no concat), gates/state in f32 ----
    gates = (jnp.dot(fc_out.astype(bf16), wih_fc_ref[...], preferred_element_type=f32)
             + jnp.dot(embed_ref[...].astype(bf16), wih_emb_ref[...], preferred_element_type=f32)
             + jnp.dot(hx_ref[...].astype(bf16), whh_ref[...], preferred_element_type=f32)
             + lstm_b_ref[...])
    i_g = jax.nn.sigmoid(gates[:, 0 * H:1 * H])
    f_g = jax.nn.sigmoid(gates[:, 1 * H:2 * H])
    g_g = jnp.tanh(gates[:, 2 * H:3 * H])
    o_g = jax.nn.sigmoid(gates[:, 3 * H:4 * H])
    c_new = f_g * cx_ref[...] + i_g * g_g
    h_new = o_g * jnp.tanh(c_new)
    c_out_ref[...] = c_new
    h_out_ref[...] = h_new

    # ---- pi / v heads fused, 128-lane padded output ----
    head_ref[...] = (jnp.dot(h_new.astype(bf16), whead_ref[...],
                             preferred_element_type=f32) + bhead_ref[...])


# ----------------------------------------------------------------------------
# Host-side glue
# ----------------------------------------------------------------------------
def _im2col_conv1(x, kh, kw, stride):
    """x: (B, C, H, W) NCHW -> (OH*OW*B, C*KH*KW), rows ordered (spatial, batch),
    columns ordered (c, kh, kw) to match w.reshape(O, C*KH*KW)."""
    B, C, H, W = x.shape
    oh = (H - kh) // stride + 1
    ow = (W - kw) // stride + 1
    cols = []
    for i in range(kh):
        for j in range(kw):
            cols.append(x[:, :, i:i + stride * oh:stride, j:j + stride * ow:stride])
    p = jnp.stack(cols, axis=2)          # (B, C, KH*KW, OH, OW)
    p = p.transpose(3, 4, 0, 1, 2)       # (OH, OW, B, C, KH*KW)
    return p.reshape(oh * ow * B, C * kh * kw)


def _build_selectors(B, s1, s2, s3):
    """0/1 row-selection matrices mapping activation rows to patch rows."""
    bp = _round_up(B, 8)
    r1 = s1 * s1 * B
    r2p = _round_up(s2 * s2 * B, 8)
    r3p = s3 * s3 * bp
    g2 = np.zeros((16 * r2p, r1), np.float32)
    for k in range(16):                       # conv2: 4x4 kernel, stride 2
        ki, kj = k // 4, k % 4
        for p in range(s2):
            for q in range(s2):
                src = (2 * p + ki) * s1 + (2 * q + kj)
                for b in range(B):
                    g2[k * r2p + (p * s2 + q) * B + b, src * B + b] = 1.0
    g3 = np.zeros((9 * r3p, r2p), np.float32)
    for k in range(9):                        # conv3: 3x3 kernel, stride 1
        ki, kj = k // 3, k % 3
        for p in range(s3):
            for q in range(s3):
                src = (p + ki) * s2 + (q + kj)
                for b in range(B):
                    g3[k * r3p + (p * s3 + q) * bp + b, src * B + b] = 1.0
    return jnp.asarray(g2, jnp.bfloat16), jnp.asarray(g3, jnp.bfloat16)


def _forward_fn(kp, g2, g3, x, hx, cx, embed, *, output_size):
    B = x.shape[0]
    bp = _round_up(B, 8)
    H = hx.shape[1]
    head_n = kp["whead"].shape[1]

    patches1 = _im2col_conv1(x, 8, 8, 4).astype(jnp.bfloat16)
    pad = ((0, bp - B), (0, 0))
    hx_p = jnp.pad(hx.astype(jnp.float32), pad)
    cx_p = jnp.pad(cx.astype(jnp.float32), pad)
    emb_p = jnp.pad(embed.astype(jnp.float32), pad)

    args = (patches1, g2, g3,
            kp["w1"], kp["b1"], kp["w2"], kp["b2"], kp["w3"], kp["b3"],
            kp["fcw"], kp["fcb"],
            kp["wih_fc"], kp["wih_emb"], kp["whh"], kp["lstm_b"],
            kp["whead"], kp["bhead"],
            hx_p, cx_p, emb_p)

    head, h_p, c_p = pl.pallas_call(
        _convlstm_fwd_kernel,
        out_shape=(jax.ShapeDtypeStruct((bp, head_n), jnp.float32),
                   jax.ShapeDtypeStruct((bp, H), jnp.float32),
                   jax.ShapeDtypeStruct((bp, H), jnp.float32)),
        grid=(1,),
        in_specs=[pl.BlockSpec(a.shape, lambda i: (0, 0)) for a in args],
        out_specs=(pl.BlockSpec((bp, head_n), lambda i: (0, 0)),
                   pl.BlockSpec((bp, H), lambda i: (0, 0)),
                   pl.BlockSpec((bp, H), lambda i: (0, 0))),
        compiler_params=pltpu.CompilerParams(
            dimension_semantics=("arbitrary",)),
    )(*args)

    logits = head[:B, :output_size]
    value = head[:B, output_size:output_size + 1]
    return logits, value, h_p[:B], c_p[:B]


# ----------------------------------------------------------------------------
# ConvLSTMPolicy (cnn_type='nature', use_bn=False)
# ----------------------------------------------------------------------------
class ConvLSTMPolicyPallas:
    def __init__(self, key, input_channels, output_size, spatial, lstm_size=256):
        self.input_channels = input_channels
        self.output_size = output_size
        self.lstm_size = lstm_size
        hidden_size = 512                               # NatureCnn fc output
        lstm_input_size = hidden_size + output_size + 2

        # spatial propagation through NatureCnn (8/4, 4/2, 3/1, no padding)
        self.s1 = (spatial - 8) // 4 + 1
        self.s2 = (self.s1 - 4) // 2 + 1
        self.s3 = (self.s2 - 3) // 1 + 1
        flat = 64 * self.s3 * self.s3

        ks = jax.random.split(key, 12)
        sc = 0.05
        P = {
            "conv1_w": sc * jax.random.normal(ks[0], (32, input_channels, 8, 8), jnp.float32),
            "conv1_b": sc * jax.random.normal(ks[1], (32,), jnp.float32),
            "conv2_w": sc * jax.random.normal(ks[2], (64, 32, 4, 4), jnp.float32),
            "conv2_b": sc * jax.random.normal(ks[3], (64,), jnp.float32),
            "conv3_w": sc * jax.random.normal(ks[4], (64, 64, 3, 3), jnp.float32),
            "conv3_b": sc * jax.random.normal(ks[5], (64,), jnp.float32),
            "fc_w":    sc * jax.random.normal(ks[6], (flat, hidden_size), jnp.float32),
            "fc_b":    sc * jax.random.normal(ks[7], (hidden_size,), jnp.float32),
            "lstm_w_ih": sc * jax.random.normal(ks[8], (lstm_input_size, 4 * lstm_size), jnp.float32),
            "lstm_w_hh": sc * jax.random.normal(ks[9], (lstm_size, 4 * lstm_size), jnp.float32),
            "lstm_b":    sc * jax.random.normal(ks[10], (4 * lstm_size,), jnp.float32),  # b_ih + b_hh
            "pi_w": sc * jax.random.normal(ks[11], (lstm_size, output_size), jnp.float32),
            "pi_b": jnp.zeros((output_size,), jnp.float32),
            "v_w":  sc * jax.random.normal(jax.random.fold_in(key, 99), (lstm_size, 1), jnp.float32),
            "v_b":  jnp.zeros((1,), jnp.float32),
        }
        self.params = P

        # ---- kernel-layout parameters (bf16 matmul operands, f32 biases) ----
        bf16 = jnp.bfloat16
        A = output_size
        head_n = _round_up(A + 1, 128)
        perm = np.arange(flat).reshape(64, self.s3 * self.s3).T.reshape(-1)   # (c,t) -> (t,c)
        whead = jnp.zeros((lstm_size, head_n), jnp.float32)
        whead = whead.at[:, :A].set(P["pi_w"]).at[:, A].set(P["v_w"][:, 0])
        bhead = jnp.zeros((1, head_n), jnp.float32)
        bhead = bhead.at[0, :A].set(P["pi_b"]).at[0, A].set(P["v_b"][0])
        self.kparams = {
            "w1": P["conv1_w"].reshape(32, -1).T.astype(bf16),
            "b1": P["conv1_b"].reshape(1, -1),
            "w2": P["conv2_w"].transpose(2, 3, 1, 0).reshape(16 * 32, 64).astype(bf16),
            "b2": P["conv2_b"].reshape(1, -1),
            "w3": P["conv3_w"].transpose(2, 3, 1, 0).reshape(9 * 64, 64).astype(bf16),
            "b3": P["conv3_b"].reshape(1, -1),
            "fcw": P["fc_w"][perm].astype(bf16),
            "fcb": P["fc_b"].reshape(1, -1),
            "wih_fc": P["lstm_w_ih"][:hidden_size].astype(bf16),
            "wih_emb": P["lstm_w_ih"][hidden_size:].astype(bf16),
            "whh": P["lstm_w_hh"].astype(bf16),
            "lstm_b": P["lstm_b"].reshape(1, -1),
            "whead": whead.astype(bf16),
            "bhead": bhead,
        }
        self._sel_cache = {}
        self._fwd = jax.jit(functools.partial(_forward_fn, output_size=output_size))
        # TODO(synk): if this policy is stepped in a rollout loop, loop the
        # timesteps inside one pallas_call to keep the LSTM/fc weights VMEM
        # resident across steps instead of re-streaming them each call.

    def _selectors(self, B):
        if B not in self._sel_cache:
            self._sel_cache[B] = _build_selectors(B, self.s1, self.s2, self.s3)
        return self._sel_cache[B]

    def __call__(self, x, hx, cx, embed):
        g2, g3 = self._selectors(x.shape[0])
        # TODO(synk): torch.distributions.Categorical has no Pallas equivalent;
        # we return raw logits.
        return self._fwd(self.kparams, g2, g3, x, hx, cx, embed)


# ----------------------------------------------------------------------------
# Plain-JAX f32 reference (for a loose numerical check against the bf16 kernel)
# ----------------------------------------------------------------------------
def _reference_forward(P, x, hx, cx, embed):
    def conv(z, w, b, stride):
        y = jax.lax.conv_general_dilated(z, w, (stride, stride), "VALID",
                                         dimension_numbers=("NCHW", "OIHW", "NCHW"))
        return jax.nn.relu(y + b[None, :, None, None])
    out = conv(x, P["conv1_w"], P["conv1_b"], 4)
    out = conv(out, P["conv2_w"], P["conv2_b"], 2)
    out = conv(out, P["conv3_w"], P["conv3_b"], 1)
    out = out.reshape(out.shape[0], -1)                       # NCHW flatten
    out = jax.nn.relu(out @ P["fc_w"] + P["fc_b"])
    lstm_in = jnp.concatenate([out, embed], axis=1)
    gates = lstm_in @ P["lstm_w_ih"] + hx @ P["lstm_w_hh"] + P["lstm_b"]
    H = hx.shape[1]
    i = jax.nn.sigmoid(gates[:, :H]); f = jax.nn.sigmoid(gates[:, H:2 * H])
    g = jnp.tanh(gates[:, 2 * H:3 * H]); o = jax.nn.sigmoid(gates[:, 3 * H:])
    c = f * cx + i * g
    h = o * jnp.tanh(c)
    return h @ P["pi_w"] + P["pi_b"], h @ P["v_w"] + P["v_b"], h, c


if __name__ == "__main__":
    key = jax.random.PRNGKey(0)
    B, C, S = 2, 4, 36            # batch, input channels, spatial (36 -> 8 -> 3 -> 1)
    OUT = 6                       # action space size
    LSTM = 256

    policy = ConvLSTMPolicyPallas(jax.random.fold_in(key, 1), C, OUT, S, lstm_size=LSTM)

    kx, kh, kc, ke = jax.random.split(key, 4)
    x = jax.random.normal(kx, (B, C, S, S), jnp.float32)      # NCHW, like PyTorch
    hx = jax.random.normal(kh, (B, LSTM), jnp.float32)
    cx = jax.random.normal(kc, (B, LSTM), jnp.float32)
    embed = jax.random.normal(ke, (B, OUT + 2), jnp.float32)

    logits, value, h, c = policy(x, hx, cx, embed)
    jax.block_until_ready((logits, value, h, c))

    assert logits.shape == (B, OUT)
    assert value.shape == (B, 1)
    assert h.shape == (B, LSTM) and c.shape == (B, LSTM)

    # Loose check vs. f32 reference (kernel uses bf16 matmul operands).
    r_logits, r_value, r_h, r_c = _reference_forward(policy.params, x, hx, cx, embed)
    for got, ref in ((logits, r_logits), (value, r_value), (h, r_h), (c, r_c)):
        assert bool(jnp.allclose(got, ref, rtol=1e-1, atol=1e-1)), \
            float(jnp.max(jnp.abs(got - ref)))

    print("KERNEL_OK")
</pallas_src>

<mosaic_0001>
module attributes {stable_mosaic.version = 11 : i64} {
  func.func @_convlstm_fwd_kernel(%arg0: i32, %arg1: memref<128x256xbf16, #tpu.memory_space<vmem>>, %arg2: memref<384x128xbf16, #tpu.memory_space<vmem>>, %arg3: memref<72x24xbf16, #tpu.memory_space<vmem>>, %arg4: memref<256x32xbf16, #tpu.memory_space<vmem>>, %arg5: memref<1x32xf32, #tpu.memory_space<vmem>>, %arg6: memref<512x64xbf16, #tpu.memory_space<vmem>>, %arg7: memref<1x64xf32, #tpu.memory_space<vmem>>, %arg8: memref<576x64xbf16, #tpu.memory_space<vmem>>, %arg9: memref<1x64xf32, #tpu.memory_space<vmem>>, %arg10: memref<64x512xbf16, #tpu.memory_space<vmem>>, %arg11: memref<1x512xf32, #tpu.memory_space<vmem>>, %arg12: memref<512x1024xbf16, #tpu.memory_space<vmem>>, %arg13: memref<8x1024xbf16, #tpu.memory_space<vmem>>, %arg14: memref<256x1024xbf16, #tpu.memory_space<vmem>>, %arg15: memref<1x1024xf32, #tpu.memory_space<vmem>>, %arg16: memref<256x128xbf16, #tpu.memory_space<vmem>>, %arg17: memref<1x128xf32, #tpu.memory_space<vmem>>, %arg18: memref<8x256xf32, #tpu.memory_space<vmem>>, %arg19: memref<8x256xf32, #tpu.memory_space<vmem>>, %arg20: memref<8x8xf32, #tpu.memory_space<vmem>>, %arg21: memref<8x128xf32, #tpu.memory_space<vmem>>, %arg22: memref<8x256xf32, #tpu.memory_space<vmem>>, %arg23: memref<8x256xf32, #tpu.memory_space<vmem>>) attributes {dimension_semantics = [#tpu.dimension_semantics<arbitrary>], iteration_bounds = array<i64: 1>, scalar_prefetch = 0 : i64, scratch_operands = 0 : i64, tpu.core_type = #tpu.core_type<tc>, window_params = [{pipeline_mode = #tpu.pipeline_mode<synchronous>, transform_indices = @transform_0, window_bounds = array<i64: 128, 256>}, {pipeline_mode = #tpu.pipeline_mode<synchronous>, transform_indices = @transform_1, window_bounds = array<i64: 384, 128>}, {pipeline_mode = #tpu.pipeline_mode<synchronous>, transform_indices = @transform_2, window_bounds = array<i64: 72, 24>}, {pipeline_mode = #tpu.pipeline_mode<synchronous>, transform_indices = @transform_3, window_bounds = array<i64: 256, 32>}, {pipeline_mode = #tpu.pipeline_mode<synchronous>, transform_indices = @transform_4, window_bounds = array<i64: 1, 32>}, {pipeline_mode = #tpu.pipeline_mode<synchronous>, transform_indices = @transform_5, window_bounds = array<i64: 512, 64>}, {pipeline_mode = #tpu.pipeline_mode<synchronous>, transform_indices = @transform_6, window_bounds = array<i64: 1, 64>}, {pipeline_mode = #tpu.pipeline_mode<synchronous>, transform_indices = @transform_7, window_bounds = array<i64: 576, 64>}, {pipeline_mode = #tpu.pipeline_mode<synchronous>, transform_indices = @transform_8, window_bounds = array<i64: 1, 64>}, {pipeline_mode = #tpu.pipeline_mode<synchronous>, transform_indices = @transform_9, window_bounds = array<i64: 64, 512>}, {pipeline_mode = #tpu.pipeline_mode<synchronous>, transform_indices = @transform_10, window_bounds = array<i64: 1, 512>}, {pipeline_mode = #tpu.pipeline_mode<synchronous>, transform_indices = @transform_11, window_bounds = array<i64: 512, 1024>}, {pipeline_mode = #tpu.pipeline_mode<synchronous>, transform_indices = @transform_12, window_bounds = array<i64: 8, 1024>}, {pipeline_mode = #tpu.pipeline_mode<synchronous>, transform_indices = @transform_13, window_bounds = array<i64: 256, 1024>}, {pipeline_mode = #tpu.pipeline_mode<synchronous>, transform_indices = @transform_14, window_bounds = array<i64: 1, 1024>}, {pipeline_mode = #tpu.pipeline_mode<synchronous>, transform_indices = @transform_15, window_bounds = array<i64: 256, 128>}, {pipeline_mode = #tpu.pipeline_mode<synchronous>, transform_indices = @transform_16, window_bounds = array<i64: 1, 128>}, {pipeline_mode = #tpu.pipeline_mode<synchronous>, transform_indices = @transform_17, window_bounds = array<i64: 8, 256>}, {pipeline_mode = #tpu.pipeline_mode<synchronous>, transform_indices = @transform_18, window_bounds = array<i64: 8, 256>}, {pipeline_mode = #tpu.pipeline_mode<synchronous>, transform_indices = @transform_19, window_bounds = array<i64: 8, 8>}, {pipeline_mode = #tpu.pipeline_mode<synchronous>, transform_indices = @transform_20, window_bounds = array<i64: 8, 128>}, {pipeline_mode = #tpu.pipeline_mode<synchronous>, transform_indices = @transform_21, window_bounds = array<i64: 8, 256>}, {pipeline_mode = #tpu.pipeline_mode<synchronous>, transform_indices = @transform_22, window_bounds = array<i64: 8, 256>}]} {
    %c0 = arith.constant 0 : index
    %c0_0 = arith.constant 0 : index
    %0 = vector.load %arg1[%c0, %c0_0] : memref<128x256xbf16, #tpu.memory_space<vmem>>, vector<128x256xbf16>
    %c0_1 = arith.constant 0 : index
    %c0_2 = arith.constant 0 : index
    %1 = vector.load %arg4[%c0_1, %c0_2] : memref<256x32xbf16, #tpu.memory_space<vmem>>, vector<256x32xbf16>
    %cst = arith.constant dense<0.000000e+00> : vector<128x32xf32>
    %2 = tpu.matmul %0, %1, %cst {dimension_numbers = #tpu.dot_dimension_numbers<[1], [0], [0], [1], [0, 0, 1, 1], [], []>} : vector<128x256xbf16>, vector<256x32xbf16>, vector<128x32xf32> -> vector<128x32xf32>
    %c0_3 = arith.constant 0 : index
    %c0_4 = arith.constant 0 : index
    %3 = vector.load %arg5[%c0_3, %c0_4] : memref<1x32xf32, #tpu.memory_space<vmem>>, vector<1x32xf32>
    %4 = vector.broadcast %3 : vector<1x32xf32> to vector<128x32xf32>
    %5 = arith.addf %2, %4 : vector<128x32xf32>
    %cst_5 = arith.constant 0.000000e+00 : f32
    %6 = vector.broadcast %cst_5 : f32 to vector<128x32xf32>
    %7 = arith.maximumf %5, %6 : vector<128x32xf32>
    %8 = arith.truncf %7 : vector<128x32xf32> to vector<128x32xbf16>
    %c0_6 = arith.constant 0 : index
    %c0_7 = arith.constant 0 : index
    %9 = vector.load %arg2[%c0_6, %c0_7] : memref<384x128xbf16, #tpu.memory_space<vmem>>, vector<384x128xbf16>
    %cst_8 = arith.constant dense<0.000000e+00> : vector<384x32xf32>
    %10 = tpu.matmul %9, %8, %cst_8 {dimension_numbers = #tpu.dot_dimension_numbers<[1], [0], [0], [1], [0, 0, 1, 1], [], []>} : vector<384x128xbf16>, vector<128x32xbf16>, vector<384x32xf32> -> vector<384x32xf32>
    %c0_9 = arith.constant 0 : index
    %c0_10 = arith.constant 0 : index
    %11 = vector.load %arg6[%c0_9, %c0_10] : memref<512x64xbf16, #tpu.memory_space<vmem>>, vector<512x64xbf16>
    %cst_11 = arith.constant 0.000000e+00 : f32
    %12 = vector.broadcast %cst_11 : f32 to vector<24x64xf32>
    %13 = vector.extract_strided_slice %10 {offsets = [0, 0], sizes = [24, 32], strides = [1, 1]} : vector<384x32xf32> to vector<24x32xf32>
    %14 = arith.truncf %13 : vector<24x32xf32> to vector<24x32xbf16>
    %15 = vector.extract_strided_slice %11 {offsets = [0, 0], sizes = [32, 64], strides = [1, 1]} : vector<512x64xbf16> to vector<32x64xbf16>
    %cst_12 = arith.constant dense<0.000000e+00> : vector<24x64xf32>
    %16 = tpu.matmul %14, %15, %cst_12 {dimension_numbers = #tpu.dot_dimension_numbers<[1], [0], [0], [1], [0, 0, 1, 1], [], []>} : vector<24x32xbf16>, vector<32x64xbf16>, vector<24x64xf32> -> vector<24x64xf32>
    %17 = arith.addf %12, %16 : vector<24x64xf32>
    %18 = vector.extract_strided_slice %10 {offsets = [24, 0], sizes = [24, 32], strides = [1, 1]} : vector<384x32xf32> to vector<24x32xf32>
    %19 = arith.truncf %18 : vector<24x32xf32> to vector<24x32xbf16>
    %20 = vector.extract_strided_slice %11 {offsets = [32, 0], sizes = [32, 64], strides = [1, 1]} : vector<512x64xbf16> to vector<32x64xbf16>
    %cst_13 = arith.constant dense<0.000000e+00> : vector<24x64xf32>
    %21 = tpu.matmul %19, %20, %cst_13 {dimension_numbers = #tpu.dot_dimension_numbers<[1], [0], [0], [1], [0, 0, 1, 1], [], []>} : vector<24x32xbf16>, vector<32x64xbf16>, vector<24x64xf32> -> vector<24x64xf32>
    %22 = arith.addf %17, %21 : vector<24x64xf32>
    %23 = vector.extract_strided_slice %10 {offsets = [48, 0], sizes = [24, 32], strides = [1, 1]} : vector<384x32xf32> to vector<24x32xf32>
    %24 = arith.truncf %23 : vector<24x32xf32> to vector<24x32xbf16>
    %25 = vector.extract_strided_slice %11 {offsets = [64, 0], sizes = [32, 64], strides = [1, 1]} : vector<512x64xbf16> to vector<32x64xbf16>
    %cst_14 = arith.constant dense<0.000000e+00> : vector<24x64xf32>
    %26 = tpu.matmul %24, %25, %cst_14 {dimension_numbers = #tpu.dot_dimension_numbers<[1], [0], [0], [1], [0, 0, 1, 1], [], []>} : vector<24x32xbf16>, vector<32x64xbf16>, vector<24x64xf32> -> vector<24x64xf32>
    %27 = arith.addf %22, %26 : vector<24x64xf32>
    %28 = vector.extract_strided_slice %10 {offsets = [72, 0], sizes = [24, 32], strides = [1, 1]} : vector<384x32xf32> to vector<24x32xf32>
    %29 = arith.truncf %28 : vector<24x32xf32> to vector<24x32xbf16>
    %30 = vector.extract_strided_slice %11 {offsets = [96, 0], sizes = [32, 64], strides = [1, 1]} : vector<512x64xbf16> to vector<32x64xbf16>
    %cst_15 = arith.constant dense<0.000000e+00> : vector<24x64xf32>
    %31 = tpu.matmul %29, %30, %cst_15 {dimension_numbers = #tpu.dot_dimension_numbers<[1], [0], [0], [1], [0, 0, 1, 1], [], []>} : vector<24x32xbf16>, vector<32x64xbf16>, vector<24x64xf32> -> vector<24x64xf32>
    %32 = arith.addf %27, %31 : vector<24x64xf32>
    %33 = vector.extract_strided_slice %10 {offsets = [96, 0], sizes = [24, 32], strides = [1, 1]} : vector<384x32xf32> to vector<24x32xf32>
    %34 = arith.truncf %33 : vector<24x32xf32> to vector<24x32xbf16>
    %35 = vector.extract_strided_slice %11 {offsets = [128, 0], sizes = [32, 64], strides = [1, 1]} : vector<512x64xbf16> to vector<32x64xbf16>
    %cst_16 = arith.constant dense<0.000000e+00> : vector<24x64xf32>
    %36 = tpu.matmul %34, %35, %cst_16 {dimension_numbers = #tpu.dot_dimension_numbers<[1], [0], [0], [1], [0, 0, 1, 1], [], []>} : vector<24x32xbf16>, vector<32x64xbf16>, vector<24x64xf32> -> vector<24x64xf32>
    %37 = arith.addf %32, %36 : vector<24x64xf32>
    %38 = vector.extract_strided_slice %10 {offsets = [120, 0], sizes = [24, 32], strides = [1, 1]} : vector<384x32xf32> to vector<24x32xf32>
    %39 = arith.truncf %38 : vector<24x32xf32> to vector<24x32xbf16>
    %40 = vector.extract_strided_slice %11 {offsets = [160, 0], sizes = [32, 64], strides = [1, 1]} : vector<512x64xbf16> to vector<32x64xbf16>
    %cst_17 = arith.constant dense<0.000000e+00> : vector<24x64xf32>
    %41 = tpu.matmul %39, %40, %cst_17 {dimension_numbers = #tpu.dot_dimension_numbers<[1], [0], [0], [1], [0, 0, 1, 1], [], []>} : vector<24x32xbf16>, vector<32x64xbf16>, vector<24x64xf32> -> vector<24x64xf32>
    %42 = arith.addf %37, %41 : vector<24x64xf32>
    %43 = vector.extract_strided_slice %10 {offsets = [144, 0], sizes = [24, 32], strides = [1, 1]} : vector<384x32xf32> to vector<24x32xf32>
    %44 = arith.truncf %43 : vector<24x32xf32> to vector<24x32xbf16>
    %45 = vector.extract_strided_slice %11 {offsets = [192, 0], sizes = [32, 64], strides = [1, 1]} : vector<512x64xbf16> to vector<32x64xbf16>
    %cst_18 = arith.constant dense<0.000000e+00> : vector<24x64xf32>
    %46 = tpu.matmul %44, %45, %cst_18 {dimension_numbers = #tpu.dot_dimension_numbers<[1], [0], [0], [1], [0, 0, 1, 1], [], []>} : vector<24x32xbf16>, vector<32x64xbf16>, vector<24x64xf32> -> vector<24x64xf32>
    %47 = arith.addf %42, %46 : vector<24x64xf32>
    %48 = vector.extract_strided_slice %10 {offsets = [168, 0], sizes = [24, 32], strides = [1, 1]} : vector<384x32xf32> to vector<24x32xf32>
    %49 = arith.truncf %48 : vector<24x32xf32> to vector<24x32xbf16>
    %50 = vector.extract_strided_slice %11 {offsets = [224, 0], sizes = [32, 64], strides = [1, 1]} : vector<512x64xbf16> to vector<32x64xbf16>
    %cst_19 = arith.constant dense<0.000000e+00> : vector<24x64xf32>
    %51 = tpu.matmul %49, %50, %cst_19 {dimension_numbers = #tpu.dot_dimension_numbers<[1], [0], [0], [1], [0, 0, 1, 1], [], []>} : vector<24x32xbf16>, vector<32x64xbf16>, vector<24x64xf32> -> vector<24x64xf32>
    %52 = arith.addf %47, %51 : vector<24x64xf32>
    %53 = vector.extract_strided_slice %10 {offsets = [192, 0], sizes = [24, 32], strides = [1, 1]} : vector<384x32xf32> to vector<24x32xf32>
    %54 = arith.truncf %53 : vector<24x32xf32> to vector<24x32xbf16>
    %55 = vector.extract_strided_slice %11 {offsets = [256, 0], sizes = [32, 64], strides = [1, 1]} : vector<512x64xbf16> to vector<32x64xbf16>
    %cst_20 = arith.constant dense<0.000000e+00> : vector<24x64xf32>
    %56 = tpu.matmul %54, %55, %cst_20 {dimension_numbers = #tpu.dot_dimension_numbers<[1], [0], [0], [1], [0, 0, 1, 1], [], []>} : vector<24x32xbf16>, vector<32x64xbf16>, vector<24x64xf32> -> vector<24x64xf32>
    %57 = arith.addf %52, %56 : vector<24x64xf32>
    %58 = vector.extract_strided_slice %10 {offsets = [216, 0], sizes = [24, 32], strides = [1, 1]} : vector<384x32xf32> to vector<24x32xf32>
    %59 = arith.truncf %58 : vector<24x32xf32> to vector<24x32xbf16>
    %60 = vector.extract_strided_slice %11 {offsets = [288, 0], sizes = [32, 64], strides = [1, 1]} : vector<512x64xbf16> to vector<32x64xbf16>
    %cst_21 = arith.constant dense<0.000000e+00> : vector<24x64xf32>
    %61 = tpu.matmul %59, %60, %cst_21 {dimension_numbers = #tpu.dot_dimension_numbers<[1], [0], [0], [1], [0, 0, 1, 1], [], []>} : vector<24x32xbf16>, vector<32x64xbf16>, vector<24x64xf32> -> vector<24x64xf32>
    %62 = arith.addf %57, %61 : vector<24x64xf32>
    %63 = vector.extract_strided_slice %10 {offsets = [240, 0], sizes = [24, 32], strides = [1, 1]} : vector<384x32xf32> to vector<24x32xf32>
    %64 = arith.truncf %63 : vector<24x32xf32> to vector<24x32xbf16>
    %65 = vector.extract_strided_slice %11 {offsets = [320, 0], sizes = [32, 64], strides = [1, 1]} : vector<512x64xbf16> to vector<32x64xbf16>
    %cst_22 = arith.constant dense<0.000000e+00> : vector<24x64xf32>
    %66 = tpu.matmul %64, %65, %cst_22 {dimension_numbers = #tpu.dot_dimension_numbers<[1], [0], [0], [1], [0, 0, 1, 1], [], []>} : vector<24x32xbf16>, vector<32x64xbf16>, vector<24x64xf32> -> vector<24x64xf32>
    %67 = arith.addf %62, %66 : vector<24x64xf32>
    %68 = vector.extract_strided_slice %10 {offsets = [264, 0], sizes = [24, 32], strides = [1, 1]} : vector<384x32xf32> to vector<24x32xf32>
    %69 = arith.truncf %68 : vector<24x32xf32> to vector<24x32xbf16>
    %70 = vector.extract_strided_slice %11 {offsets = [352, 0], sizes = [32, 64], strides = [1, 1]} : vector<512x64xbf16> to vector<32x64xbf16>
    %cst_23 = arith.constant dense<0.000000e+00> : vector<24x64xf32>
    %71 = tpu.matmul %69, %70, %cst_23 {dimension_numbers = #tpu.dot_dimension_numbers<[1], [0], [0], [1], [0, 0, 1, 1], [], []>} : vector<24x32xbf16>, vector<32x64xbf16>, vector<24x64xf32> -> vector<24x64xf32>
    %72 = arith.addf %67, %71 : vector<24x64xf32>
    %73 = vector.extract_strided_slice %10 {offsets = [288, 0], sizes = [24, 32], strides = [1, 1]} : vector<384x32xf32> to vector<24x32xf32>
    %74 = arith.truncf %73 : vector<24x32xf32> to vector<24x32xbf16>
    %75 = vector.extract_strided_slice %11 {offsets = [384, 0], sizes = [32, 64], strides = [1, 1]} : vector<512x64xbf16> to vector<32x64xbf16>
    %cst_24 = arith.constant dense<0.000000e+00> : vector<24x64xf32>
    %76 = tpu.matmul %74, %75, %cst_24 {dimension_numbers = #tpu.dot_dimension_numbers<[1], [0], [0], [1], [0, 0, 1, 1], [], []>} : vector<24x32xbf16>, vector<32x64xbf16>, vector<24x64xf32> -> vector<24x64xf32>
    %77 = arith.addf %72, %76 : vector<24x64xf32>
    %78 = vector.extract_strided_slice %10 {offsets = [312, 0], sizes = [24, 32], strides = [1, 1]} : vector<384x32xf32> to vector<24x32xf32>
    %79 = arith.truncf %78 : vector<24x32xf32> to vector<24x32xbf16>
    %80 = vector.extract_strided_slice %11 {offsets = [416, 0], sizes = [32, 64], strides = [1, 1]} : vector<512x64xbf16> to vector<32x64xbf16>
    %cst_25 = arith.constant dense<0.000000e+00> : vector<24x64xf32>
    %81 = tpu.matmul %79, %80, %cst_25 {dimension_numbers = #tpu.dot_dimension_numbers<[1], [0], [0], [1], [0, 0, 1, 1], [], []>} : vector<24x32xbf16>, vector<32x64xbf16>, vector<24x64xf32> -> vector<24x64xf32>
    %82 = arith.addf %77, %81 : vector<24x64xf32>
    %83 = vector.extract_strided_slice %10 {offsets = [336, 0], sizes = [24, 32], strides = [1, 1]} : vector<384x32xf32> to vector<24x32xf32>
    %84 = arith.truncf %83 : vector<24x32xf32> to vector<24x32xbf16>
    %85 = vector.extract_strided_slice %11 {offsets = [448, 0], sizes = [32, 64], strides = [1, 1]} : vector<512x64xbf16> to vector<32x64xbf16>
    %cst_26 = arith.constant dense<0.000000e+00> : vector<24x64xf32>
    %86 = tpu.matmul %84, %85, %cst_26 {dimension_numbers = #tpu.dot_dimension_numbers<[1], [0], [0], [1], [0, 0, 1, 1], [], []>} : vector<24x32xbf16>, vector<32x64xbf16>, vector<24x64xf32> -> vector<24x64xf32>
    %87 = arith.addf %82, %86 : vector<24x64xf32>
    %88 = vector.extract_strided_slice %10 {offsets = [360, 0], sizes = [24, 32], strides = [1, 1]} : vector<384x32xf32> to vector<24x32xf32>
    %89 = arith.truncf %88 : vector<24x32xf32> to vector<24x32xbf16>
    %90 = vector.extract_strided_slice %11 {offsets = [480, 0], sizes = [32, 64], strides = [1, 1]} : vector<512x64xbf16> to vector<32x64xbf16>
    %cst_27 = arith.constant dense<0.000000e+00> : vector<24x64xf32>
    %91 = tpu.matmul %89, %90, %cst_27 {dimension_numbers = #tpu.dot_dimension_numbers<[1], [0], [0], [1], [0, 0, 1, 1], [], []>} : vector<24x32xbf16>, vector<32x64xbf16>, vector<24x64xf32> -> vector<24x64xf32>
    %92 = arith.addf %87, %91 : vector<24x64xf32>
    %c0_28 = arith.constant 0 : index
    %c0_29 = arith.constant 0 : index
    %93 = vector.load %arg7[%c0_28, %c0_29] : memref<1x64xf32, #tpu.memory_space<vmem>>, vector<1x64xf32>
    %94 = vector.broadcast %93 : vector<1x64xf32> to vector<24x64xf32>
    %95 = arith.addf %92, %94 : vector<24x64xf32>
    %cst_30 = arith.constant 0.000000e+00 : f32
    %96 = vector.broadcast %cst_30 : f32 to vector<24x64xf32>
    %97 = arith.maximumf %95, %96 : vector<24x64xf32>
    %98 = arith.truncf %97 : vector<24x64xf32> to vector<24x64xbf16>
    %c0_31 = arith.constant 0 : index
    %c0_32 = arith.constant 0 : index
    %99 = vector.load %arg3[%c0_31, %c0_32] : memref<72x24xbf16, #tpu.memory_space<vmem>>, vector<72x24xbf16>
    %cst_33 = arith.constant dense<0.000000e+00> : vector<72x64xf32>
    %100 = tpu.matmul %99, %98, %cst_33 {dimension_numbers = #tpu.dot_dimension_numbers<[1], [0], [0], [1], [0, 0, 1, 1], [], []>} : vector<72x24xbf16>, vector<24x64xbf16>, vector<72x64xf32> -> vector<72x64xf32>
    %c0_34 = arith.constant 0 : index
    %c0_35 = arith.constant 0 : index
    %101 = vector.load %arg8[%c0_34, %c0_35] : memref<576x64xbf16, #tpu.memory_space<vmem>>, vector<576x64xbf16>
    %cst_36 = arith.constant 0.000000e+00 : f32
    %102 = vector.broadcast %cst_36 : f32 to vector<8x64xf32>
    %103 = vector.extract_strided_slice %100 {offsets = [0, 0], sizes = [8, 64], strides = [1, 1]} : vector<72x64xf32> to vector<8x64xf32>
    %104 = arith.truncf %103 : vector<8x64xf32> to vector<8x64xbf16>
    %105 = vector.extract_strided_slice %101 {offsets = [0, 0], sizes = [64, 64], strides = [1, 1]} : vector<576x64xbf16> to vector<64x64xbf16>
    %cst_37 = arith.constant dense<0.000000e+00> : vector<8x64xf32>
    %106 = tpu.matmul %104, %105, %cst_37 {dimension_numbers = #tpu.dot_dimension_numbers<[1], [0], [0], [1], [0, 0, 1, 1], [], []>} : vector<8x64xbf16>, vector<64x64xbf16>, vector<8x64xf32> -> vector<8x64xf32>
    %107 = arith.addf %102, %106 : vector<8x64xf32>
    %108 = vector.extract_strided_slice %100 {offsets = [8, 0], sizes = [8, 64], strides = [1, 1]} : vector<72x64xf32> to vector<8x64xf32>
    %109 = arith.truncf %108 : vector<8x64xf32> to vector<8x64xbf16>
    %110 = vector.extract_strided_slice %101 {offsets = [64, 0], sizes = [64, 64], strides = [1, 1]} : vector<576x64xbf16> to vector<64x64xbf16>
    %cst_38 = arith.constant dense<0.000000e+00> : vector<8x64xf32>
    %111 = tpu.matmul %109, %110, %cst_38 {dimension_numbers = #tpu.dot_dimension_numbers<[1], [0], [0], [1], [0, 0, 1, 1], [], []>} : vector<8x64xbf16>, vector<64x64xbf16>, vector<8x64xf32> -> vector<8x64xf32>
    %112 = arith.addf %107, %111 : vector<8x64xf32>
    %113 = vector.extract_strided_slice %100 {offsets = [16, 0], sizes = [8, 64], strides = [1, 1]} : vector<72x64xf32> to vector<8x64xf32>
    %114 = arith.truncf %113 : vector<8x64xf32> to vector<8x64xbf16>
    %115 = vector.extract_strided_slice %101 {offsets = [128, 0], sizes = [64, 64], strides = [1, 1]} : vector<576x64xbf16> to vector<64x64xbf16>
    %cst_39 = arith.constant dense<0.000000e+00> : vector<8x64xf32>
    %116 = tpu.matmul %114, %115, %cst_39 {dimension_numbers = #tpu.dot_dimension_numbers<[1], [0], [0], [1], [0, 0, 1, 1], [], []>} : vector<8x64xbf16>, vector<64x64xbf16>, vector<8x64xf32> -> vector<8x64xf32>
    %117 = arith.addf %112, %116 : vector<8x64xf32>
    %118 = vector.extract_strided_slice %100 {offsets = [24, 0], sizes = [8, 64], strides = [1, 1]} : vector<72x64xf32> to vector<8x64xf32>
    %119 = arith.truncf %118 : vector<8x64xf32> to vector<8x64xbf16>
    %120 = vector.extract_strided_slice %101 {offsets = [192, 0], sizes = [64, 64], strides = [1, 1]} : vector<576x64xbf16> to vector<64x64xbf16>
    %cst_40 = arith.constant dense<0.000000e+00> : vector<8x64xf32>
    %121 = tpu.matmul %119, %120, %cst_40 {dimension_numbers = #tpu.dot_dimension_numbers<[1], [0], [0], [1], [0, 0, 1, 1], [], []>} : vector<8x64xbf16>, vector<64x64xbf16>, vector<8x64xf32> -> vector<8x64xf32>
    %122 = arith.addf %117, %121 : vector<8x64xf32>
    %123 = vector.extract_strided_slice %100 {offsets = [32, 0], sizes = [8, 64], strides = [1, 1]} : vector<72x64xf32> to vector<8x64xf32>
    %124 = arith.truncf %123 : vector<8x64xf32> to vector<8x64xbf16>
    %125 = vector.extract_strided_slice %101 {offsets = [256, 0], sizes = [64, 64], strides = [1, 1]} : vector<576x64xbf16> to vector<64x64xbf16>
    %cst_41 = arith.constant dense<0.000000e+00> : vector<8x64xf32>
    %126 = tpu.matmul %124, %125, %cst_41 {dimension_numbers = #tpu.dot_dimension_numbers<[1], [0], [0], [1], [0, 0, 1, 1], [], []>} : vector<8x64xbf16>, vector<64x64xbf16>, vector<8x64xf32> -> vector<8x64xf32>
    %127 = arith.addf %122, %126 : vector<8x64xf32>
    %128 = vector.extract_strided_slice %100 {offsets = [40, 0], sizes = [8, 64], strides = [1, 1]} : vector<72x64xf32> to vector<8x64xf32>
    %129 = arith.truncf %128 : vector<8x64xf32> to vector<8x64xbf16>
    %130 = vector.extract_strided_slice %101 {offsets = [320, 0], sizes = [64, 64], strides = [1, 1]} : vector<576x64xbf16> to vector<64x64xbf16>
    %cst_42 = arith.constant dense<0.000000e+00> : vector<8x64xf32>
    %131 = tpu.matmul %129, %130, %cst_42 {dimension_numbers = #tpu.dot_dimension_numbers<[1], [0], [0], [1], [0, 0, 1, 1], [], []>} : vector<8x64xbf16>, vector<64x64xbf16>, vector<8x64xf32> -> vector<8x64xf32>
    %132 = arith.addf %127, %131 : vector<8x64xf32>
    %133 = vector.extract_strided_slice %100 {offsets = [48, 0], sizes = [8, 64], strides = [1, 1]} : vector<72x64xf32> to vector<8x64xf32>
    %134 = arith.truncf %133 : vector<8x64xf32> to vector<8x64xbf16>
    %135 = vector.extract_strided_slice %101 {offsets = [384, 0], sizes = [64, 64], strides = [1, 1]} : vector<576x64xbf16> to vector<64x64xbf16>
    %cst_43 = arith.constant dense<0.000000e+00> : vector<8x64xf32>
    %136 = tpu.matmul %134, %135, %cst_43 {dimension_numbers = #tpu.dot_dimension_numbers<[1], [0], [0], [1], [0, 0, 1, 1], [], []>} : vector<8x64xbf16>, vector<64x64xbf16>, vector<8x64xf32> -> vector<8x64xf32>
    %137 = arith.addf %132, %136 : vector<8x64xf32>
    %138 = vector.extract_strided_slice %100 {offsets = [56, 0], sizes = [8, 64], strides = [1, 1]} : vector<72x64xf32> to vector<8x64xf32>
    %139 = arith.truncf %138 : vector<8x64xf32> to vector<8x64xbf16>
    %140 = vector.extract_strided_slice %101 {offsets = [448, 0], sizes = [64, 64], strides = [1, 1]} : vector<576x64xbf16> to vector<64x64xbf16>
    %cst_44 = arith.constant dense<0.000000e+00> : vector<8x64xf32>
    %141 = tpu.matmul %139, %140, %cst_44 {dimension_numbers = #tpu.dot_dimension_numbers<[1], [0], [0], [1], [0, 0, 1, 1], [], []>} : vector<8x64xbf16>, vector<64x64xbf16>, vector<8x64xf32> -> vector<8x64xf32>
    %142 = arith.addf %137, %141 : vector<8x64xf32>
    %143 = vector.extract_strided_slice %100 {offsets = [64, 0], sizes = [8, 64], strides = [1, 1]} : vector<72x64xf32> to vector<8x64xf32>
    %144 = arith.truncf %143 : vector<8x64xf32> to vector<8x64xbf16>
    %145 = vector.extract_strided_slice %101 {offsets = [512, 0], sizes = [64, 64], strides = [1, 1]} : vector<576x64xbf16> to vector<64x64xbf16>
    %cst_45 = arith.constant dense<0.000000e+00> : vector<8x64xf32>
    %146 = tpu.matmul %144, %145, %cst_45 {dimension_numbers = #tpu.dot_dimension_numbers<[1], [0], [0], [1], [0, 0, 1, 1], [], []>} : vector<8x64xbf16>, vector<64x64xbf16>, vector<8x64xf32> -> vector<8x64xf32>
    %147 = arith.addf %142, %146 : vector<8x64xf32>
    %c0_46 = arith.constant 0 : index
    %c0_47 = arith.constant 0 : index
    %148 = vector.load %arg9[%c0_46, %c0_47] : memref<1x64xf32, #tpu.memory_space<vmem>>, vector<1x64xf32>
    %149 = vector.broadcast %148 : vector<1x64xf32> to vector<8x64xf32>
    %150 = arith.addf %147, %149 : vector<8x64xf32>
    %cst_48 = arith.constant 0.000000e+00 : f32
    %151 = vector.broadcast %cst_48 : f32 to vector<8x64xf32>
    %152 = arith.maximumf %150, %151 : vector<8x64xf32>
    %c0_49 = arith.constant 0 : index
    %c0_50 = arith.constant 0 : index
    %153 = vector.load %arg10[%c0_49, %c0_50] : memref<64x512xbf16, #tpu.memory_space<vmem>>, vector<64x512xbf16>
    %cst_51 = arith.constant 0.000000e+00 : f32
    %154 = vector.broadcast %cst_51 : f32 to vector<8x512xf32>
    %155 = arith.truncf %152 : vector<8x64xf32> to vector<8x64xbf16>
    %cst_52 = arith.constant dense<0.000000e+00> : vector<8x512xf32>
    %156 = tpu.matmul %155, %153, %cst_52 {dimension_numbers = #tpu.dot_dimension_numbers<[1], [0], [0], [1], [0, 0, 1, 1], [], []>} : vector<8x64xbf16>, vector<64x512xbf16>, vector<8x512xf32> -> vector<8x512xf32>
    %157 = arith.addf %154, %156 : vector<8x512xf32>
    %c0_53 = arith.constant 0 : index
    %c0_54 = arith.constant 0 : index
    %158 = vector.load %arg11[%c0_53, %c0_54] : memref<1x512xf32, #tpu.memory_space<vmem>>, vector<1x512xf32>
    %159 = vector.broadcast %158 : vector<1x512xf32> to vector<8x512xf32>
    %160 = arith.addf %157, %159 : vector<8x512xf32>
    %cst_55 = arith.constant 0.000000e+00 : f32
    %161 = vector.broadcast %cst_55 : f32 to vector<8x512xf32>
    %162 = arith.maximumf %160, %161 : vector<8x512xf32>
    %163 = arith.truncf %162 : vector<8x512xf32> to vector<8x512xbf16>
    %c0_56 = arith.constant 0 : index
    %c0_57 = arith.constant 0 : index
    %164 = vector.load %arg12[%c0_56, %c0_57] : memref<512x1024xbf16, #tpu.memory_space<vmem>>, vector<512x1024xbf16>
    %cst_58 = arith.constant dense<0.000000e+00> : vector<8x1024xf32>
    %165 = tpu.matmul %163, %164, %cst_58 {dimension_numbers = #tpu.dot_dimension_numbers<[1], [0], [0], [1], [0, 0, 1, 1], [], []>} : vector<8x512xbf16>, vector<512x1024xbf16>, vector<8x1024xf32> -> vector<8x1024xf32>
    %c0_59 = arith.constant 0 : index
    %c0_60 = arith.constant 0 : index
    %166 = vector.load %arg20[%c0_59, %c0_60] : memref<8x8xf32, #tpu.memory_space<vmem>>, vector<8x8xf32>
    %167 = arith.truncf %166 : vector<8x8xf32> to vector<8x8xbf16>
    %c0_61 = arith.constant 0 : index
    %c0_62 = arith.constant 0 : index
    %168 = vector.load %arg13[%c0_61, %c0_62] : memref<8x1024xbf16, #tpu.memory_space<vmem>>, vector<8x1024xbf16>
    %cst_63 = arith.constant dense<0.000000e+00> : vector<8x1024xf32>
    %169 = tpu.matmul %167, %168, %cst_63 {dimension_numbers = #tpu.dot_dimension_numbers<[1], [0], [0], [1], [0, 0, 1, 1], [], []>} : vector<8x8xbf16>, vector<8x1024xbf16>, vector<8x1024xf32> -> vector<8x1024xf32>
    %170 = arith.addf %165, %169 : vector<8x1024xf32>
    %c0_64 = arith.constant 0 : index
    %c0_65 = arith.constant 0 : index
    %171 = vector.load %arg18[%c0_64, %c0_65] : memref<8x256xf32, #tpu.memory_space<vmem>>, vector<8x256xf32>
    %172 = arith.truncf %171 : vector<8x256xf32> to vector<8x256xbf16>
    %c0_66 = arith.constant 0 : index
    %c0_67 = arith.constant 0 : index
    %173 = vector.load %arg14[%c0_66, %c0_67] : memref<256x1024xbf16, #tpu.memory_space<vmem>>, vector<256x1024xbf16>
    %cst_68 = arith.constant dense<0.000000e+00> : vector<8x1024xf32>
    %174 = tpu.matmul %172, %173, %cst_68 {dimension_numbers = #tpu.dot_dimension_numbers<[1], [0], [0], [1], [0, 0, 1, 1], [], []>} : vector<8x256xbf16>, vector<256x1024xbf16>, vector<8x1024xf32> -> vector<8x1024xf32>
    %175 = arith.addf %170, %174 : vector<8x1024xf32>
    %c0_69 = arith.constant 0 : index
    %c0_70 = arith.constant 0 : index
    %176 = vector.load %arg15[%c0_69, %c0_70] : memref<1x1024xf32, #tpu.memory_space<vmem>>, vector<1x1024xf32>
    %177 = vector.broadcast %176 : vector<1x1024xf32> to vector<8x1024xf32>
    %178 = arith.addf %175, %177 : vector<8x1024xf32>
    %179 = vector.extract_strided_slice %178 {offsets = [0, 0], sizes = [8, 256], strides = [1, 1]} : vector<8x1024xf32> to vector<8x256xf32>
    %180 = arith.negf %179 : vector<8x256xf32>
    %181 = math.exp %180 : vector<8x256xf32>
    %cst_71 = arith.constant 1.000000e+00 : f32
    %182 = vector.broadcast %cst_71 : f32 to vector<8x256xf32>
    %183 = arith.addf %182, %181 : vector<8x256xf32>
    %184 = arith.divf %182, %183 : vector<8x256xf32>
    %185 = vector.extract_strided_slice %178 {offsets = [0, 256], sizes = [8, 256], strides = [1, 1]} : vector<8x1024xf32> to vector<8x256xf32>
    %186 = arith.negf %185 : vector<8x256xf32>
    %187 = math.exp %186 : vector<8x256xf32>
    %cst_72 = arith.constant 1.000000e+00 : f32
    %188 = vector.broadcast %cst_72 : f32 to vector<8x256xf32>
    %189 = arith.addf %188, %187 : vector<8x256xf32>
    %190 = arith.divf %188, %189 : vector<8x256xf32>
    %191 = vector.extract_strided_slice %178 {offsets = [0, 512], sizes = [8, 256], strides = [1, 1]} : vector<8x1024xf32> to vector<8x256xf32>
    %192 = math.tanh %191 : vector<8x256xf32>
    %193 = vector.extract_strided_slice %178 {offsets = [0, 768], sizes = [8, 256], strides = [1, 1]} : vector<8x1024xf32> to vector<8x256xf32>
    %194 = arith.negf %193 : vector<8x256xf32>
    %195 = math.exp %194 : vector<8x256xf32>
    %cst_73 = arith.constant 1.000000e+00 : f32
    %196 = vector.broadcast %cst_73 : f32 to vector<8x256xf32>
    %197 = arith.addf %196, %195 : vector<8x256xf32>
    %198 = arith.divf %196, %197 : vector<8x256xf32>
    %c0_74 = arith.constant 0 : index
    %c0_75 = arith.constant 0 : index
    %199 = vector.load %arg19[%c0_74, %c0_75] : memref<8x256xf32, #tpu.memory_space<vmem>>, vector<8x256xf32>
    %200 = arith.mulf %190, %199 : vector<8x256xf32>
    %201 = arith.mulf %184, %192 : vector<8x256xf32>
    %202 = arith.addf %200, %201 : vector<8x256xf32>
    %203 = math.tanh %202 : vector<8x256xf32>
    %204 = arith.mulf %198, %203 : vector<8x256xf32>
    %c0_76 = arith.constant 0 : index
    %c0_77 = arith.constant 0 : index
    %205 = vector.load %arg23[%c0_76, %c0_77] : memref<8x256xf32, #tpu.memory_space<vmem>>, vector<8x256xf32>
    tpu.vector_store %arg23[%c0_76, %c0_77], %202 {strides = array<i32>} : memref<8x256xf32, #tpu.memory_space<vmem>>, vector<8x256xf32>,
    %c0_78 = arith.constant 0 : index
    %c0_79 = arith.constant 0 : index
    %206 = vector.load %arg22[%c0_78, %c0_79] : memref<8x256xf32, #tpu.memory_space<vmem>>, vector<8x256xf32>
    tpu.vector_store %arg22[%c0_78, %c0_79], %204 {strides = array<i32>} : memref<8x256xf32, #tpu.memory_space<vmem>>, vector<8x256xf32>,
    %207 = arith.truncf %204 : vector<8x256xf32> to vector<8x256xbf16>
    %c0_80 = arith.constant 0 : index
    %c0_81 = arith.constant 0 : index
    %208 = vector.load %arg16[%c0_80, %c0_81] : memref<256x128xbf16, #tpu.memory_space<vmem>>, vector<256x128xbf16>
    %cst_82 = arith.constant dense<0.000000e+00> : vector<8x128xf32>
    %209 = tpu.matmul %207, %208, %cst_82 {dimension_numbers = #tpu.dot_dimension_numbers<[1], [0], [0], [1], [0, 0, 1, 1], [], []>} : vector<8x256xbf16>, vector<256x128xbf16>, vector<8x128xf32> -> vector<8x128xf32>
    %c0_83 = arith.constant 0 : index
    %c0_84 = arith.constant 0 : index
    %210 = vector.load %arg17[%c0_83, %c0_84] : memref<1x128xf32, #tpu.memory_space<vmem>>, vector<1x128xf32>
    %211 = vector.broadcast %210 : vector<1x128xf32> to vector<8x128xf32>
    %212 = arith.addf %209, %211 : vector<8x128xf32>
    %c0_85 = arith.constant 0 : index
    %c0_86 = arith.constant 0 : index
    %213 = vector.load %arg21[%c0_85, %c0_86] : memref<8x128xf32, #tpu.memory_space<vmem>>, vector<8x128xf32>
    tpu.vector_store %arg21[%c0_85, %c0_86], %212 {strides = array<i32>} : memref<8x128xf32, #tpu.memory_space<vmem>>, vector<8x128xf32>,
    return
  }
  func.func @transform_0(%arg0: i32) -> (i32, i32) {
    %c0_i32 = arith.constant 0 : i32
    %c0_i32_0 = arith.constant 0 : i32
    %c0_i32_1 = arith.constant 0 : i32
    return %c0_i32, %c0_i32_0 : i32, i32
  }
  func.func @transform_1(%arg0: i32) -> (i32, i32) {
    %c0_i32 = arith.constant 0 : i32
    %c0_i32_0 = arith.constant 0 : i32
    %c0_i32_1 = arith.constant 0 : i32
    return %c0_i32, %c0_i32_0 : i32, i32
  }
  func.func @transform_2(%arg0: i32) -> (i32, i32) {
    %c0_i32 = arith.constant 0 : i32
    %c0_i32_0 = arith.constant 0 : i32
    %c0_i32_1 = arith.constant 0 : i32
    return %c0_i32, %c0_i32_0 : i32, i32
  }
  func.func @transform_3(%arg0: i32) -> (i32, i32) {
    %c0_i32 = arith.constant 0 : i32
    %c0_i32_0 = arith.constant 0 : i32
    %c0_i32_1 = arith.constant 0 : i32
    return %c0_i32, %c0_i32_0 : i32, i32
  }
  func.func @transform_4(%arg0: i32) -> (i32, i32) {
    %c0_i32 = arith.constant 0 : i32
    %c0_i32_0 = arith.constant 0 : i32
    %c0_i32_1 = arith.constant 0 : i32
    return %c0_i32, %c0_i32_0 : i32, i32
  }
  func.func @transform_5(%arg0: i32) -> (i32, i32) {
    %c0_i32 = arith.constant 0 : i32
    %c0_i32_0 = arith.constant 0 : i32
    %c0_i32_1 = arith.constant 0 : i32
    return %c0_i32, %c0_i32_0 : i32, i32
  }
  func.func @transform_6(%arg0: i32) -> (i32, i32) {
    %c0_i32 = arith.constant 0 : i32
    %c0_i32_0 = arith.constant 0 : i32
    %c0_i32_1 = arith.constant 0 : i32
    return %c0_i32, %c0_i32_0 : i32, i32
  }
  func.func @transform_7(%arg0: i32) -> (i32, i32) {
    %c0_i32 = arith.constant 0 : i32
    %c0_i32_0 = arith.constant 0 : i32
    %c0_i32_1 = arith.constant 0 : i32
    return %c0_i32, %c0_i32_0 : i32, i32
  }
  func.func @transform_8(%arg0: i32) -> (i32, i32) {
    %c0_i32 = arith.constant 0 : i32
    %c0_i32_0 = arith.constant 0 : i32
    %c0_i32_1 = arith.constant 0 : i32
    return %c0_i32, %c0_i32_0 : i32, i32
  }
  func.func @transform_9(%arg0: i32) -> (i32, i32) {
    %c0_i32 = arith.constant 0 : i32
    %c0_i32_0 = arith.constant 0 : i32
    %c0_i32_1 = arith.constant 0 : i32
    return %c0_i32, %c0_i32_0 : i32, i32
  }
  func.func @transform_10(%arg0: i32) -> (i32, i32) {
    %c0_i32 = arith.constant 0 : i32
    %c0_i32_0 = arith.constant 0 : i32
    %c0_i32_1 = arith.constant 0 : i32
    return %c0_i32, %c0_i32_0 : i32, i32
  }
  func.func @transform_11(%arg0: i32) -> (i32, i32) {
    %c0_i32 = arith.constant 0 : i32
    %c0_i32_0 = arith.constant 0 : i32
    %c0_i32_1 = arith.constant 0 : i32
    return %c0_i32, %c0_i32_0 : i32, i32
  }
  func.func @transform_12(%arg0: i32) -> (i32, i32) {
    %c0_i32 = arith.constant 0 : i32
    %c0_i32_0 = arith.constant 0 : i32
    %c0_i32_1 = arith.constant 0 : i32
    return %c0_i32, %c0_i32_0 : i32, i32
  }
  func.func @transform_13(%arg0: i32) -> (i32, i32) {
    %c0_i32 = arith.constant 0 : i32
    %c0_i32_0 = arith.constant 0 : i32
    %c0_i32_1 = arith.constant 0 : i32
    return %c0_i32, %c0_i32_0 : i32, i32
  }
  func.func @transform_14(%arg0: i32) -> (i32, i32) {
    %c0_i32 = arith.constant 0 : i32
    %c0_i32_0 = arith.constant 0 : i32
    %c0_i32_1 = arith.constant 0 : i32
    return %c0_i32, %c0_i32_0 : i32, i32
  }
  func.func @transform_15(%arg0: i32) -> (i32, i32) {
    %c0_i32 = arith.constant 0 : i32
    %c0_i32_0 = arith.constant 0 : i32
    %c0_i32_1 = arith.constant 0 : i32
    return %c0_i32, %c0_i32_0 : i32, i32
  }
  func.func @transform_16(%arg0: i32) -> (i32, i32) {
    %c0_i32 = arith.constant 0 : i32
    %c0_i32_0 = arith.constant 0 : i32
    %c0_i32_1 = arith.constant 0 : i32
    return %c0_i32, %c0_i32_0 : i32, i32
  }
  func.func @transform_17(%arg0: i32) -> (i32, i32) {
    %c0_i32 = arith.constant 0 : i32
    %c0_i32_0 = arith.constant 0 : i32
    %c0_i32_1 = arith.constant 0 : i32
    return %c0_i32, %c0_i32_0 : i32, i32
  }
  func.func @transform_18(%arg0: i32) -> (i32, i32) {
    %c0_i32 = arith.constant 0 : i32
    %c0_i32_0 = arith.constant 0 : i32
    %c0_i32_1 = arith.constant 0 : i32
    return %c0_i32, %c0_i32_0 : i32, i32
  }
  func.func @transform_19(%arg0: i32) -> (i32, i32) {
    %c0_i32 = arith.constant 0 : i32
    %c0_i32_0 = arith.constant 0 : i32
    %c0_i32_1 = arith.constant 0 : i32
    return %c0_i32, %c0_i32_0 : i32, i32
  }
  func.func @transform_20(%arg0: i32) -> (i32, i32) {
    %c0_i32 = arith.constant 0 : i32
    %c0_i32_0 = arith.constant 0 : i32
    %c0_i32_1 = arith.constant 0 : i32
    return %c0_i32, %c0_i32_0 : i32, i32
  }
  func.func @transform_21(%arg0: i32) -> (i32, i32) {
    %c0_i32 = arith.constant 0 : i32
    %c0_i32_0 = arith.constant 0 : i32
    %c0_i32_1 = arith.constant 0 : i32
    return %c0_i32, %c0_i32_0 : i32, i32
  }
  func.func @transform_22(%arg0: i32) -> (i32, i32) {
    %c0_i32 = arith.constant 0 : i32
    %c0_i32_0 = arith.constant 0 : i32
    %c0_i32_1 = arith.constant 0 : i32
    return %c0_i32, %c0_i32_0 : i32, i32
  }
}

</mosaic_0001>

<llo_original>
// kernel: _forward_fn.1
$region0: #{_forward_fn.1}
  #allocation0 [shape = 'u32[]', space=smem, size = 0x4, offset = 0x4, fixed_abs, tag = 'smem constant byte address 0x4 - core index']
  #allocation1 [shape = 'u32[144,128]{1,0:T(1,128)}', space=vmem, size = 0x12000, scoped, tag = 'internal scratch']
  %s0 = inlined_call_operand.vmem [shape: bf16[128,256], index: 0, kind: input, shape index: {}]
  %s1 = inlined_call_operand.vmem [shape: bf16[384,128], index: 1, kind: input, shape index: {}]
  %s2 = inlined_call_operand.vmem [shape: bf16[72,24], index: 2, kind: input, shape index: {}]
  %s3 = inlined_call_operand.vmem [shape: bf16[256,32], index: 3, kind: input, shape index: {}]
  %s4 = inlined_call_operand.vmem [shape: f32[1,32], index: 4, kind: input, shape index: {}]
  %s5 = inlined_call_operand.vmem [shape: bf16[512,64], index: 5, kind: input, shape index: {}]
  %s6 = inlined_call_operand.vmem [shape: f32[1,64], index: 6, kind: input, shape index: {}]
  %s7 = inlined_call_operand.vmem [shape: bf16[576,64], index: 7, kind: input, shape index: {}]
  %s8 = inlined_call_operand.vmem [shape: f32[1,64], index: 8, kind: input, shape index: {}]
  %s9 = inlined_call_operand.vmem [shape: bf16[64,512], index: 9, kind: input, shape index: {}]
  %s10 = inlined_call_operand.vmem [shape: f32[1,512], index: 10, kind: input, shape index: {}]
  %s11 = inlined_call_operand.vmem [shape: bf16[512,1024], index: 11, kind: input, shape index: {}]
  %s12 = inlined_call_operand.vmem [shape: bf16[8,1024], index: 12, kind: input, shape index: {}]
  %s13 = inlined_call_operand.vmem [shape: bf16[256,1024], index: 13, kind: input, shape index: {}]
  %s14 = inlined_call_operand.vmem [shape: f32[1,1024], index: 14, kind: input, shape index: {}]
  %s15 = inlined_call_operand.vmem [shape: bf16[256,128], index: 15, kind: input, shape index: {}]
  %s16 = inlined_call_operand.vmem [shape: f32[1,128], index: 16, kind: input, shape index: {}]
  %s17 = inlined_call_operand.vmem [shape: f32[8,256], index: 17, kind: input, shape index: {}]
  %s18 = inlined_call_operand.vmem [shape: f32[8,256], index: 18, kind: input, shape index: {}]
  %s19 = inlined_call_operand.vmem [shape: f32[8,8], index: 19, kind: input, shape index: {}]
  %s20 = inlined_call_operand.vmem [shape: f32[8,128], index: 20, kind: output, shape index: {0}]
  %s21 = inlined_call_operand.vmem [shape: f32[8,256], index: 21, kind: output, shape index: {1}]
  %s22 = inlined_call_operand.vmem [shape: f32[8,256], index: 22, kind: output, shape index: {2}]
  %23 = xla_tuple %s20, %s21, %s22
  %s24 = sld [smem:[#allocation0]]
  $region106: #{_forward_fn.1} parent=0
    _
  %s26 = ssub.s32 1, %s24
  %s27 = scalar_select 0, %s26, %s24
  // Predicated region
  $region2: #{_forward_fn.1} parent=0 // pred_check
    _
  $region3: #{_forward_fn.1} parent=0 // pred_check_branch
    %29 = sbr.rel (0) target = $region5
  $region4: #{_forward_fn.1} parent=0 // pred_region
    _
  $region5: #{_forward_fn.1} parent=0 // pred_fallthru
    _
  // Predicated region
  $region6: #{_forward_fn.1} parent=0 // pred_check
    _
  $region7: #{_forward_fn.1} parent=0 // pred_check_branch
    %31 = sbr.rel (0) target = $region9
  $region8: #{_forward_fn.1} parent=0 // pred_region
    _
  $region9: #{_forward_fn.1} parent=0 // pred_fallthru
    _
  // Predicated region
  $region10: #{_forward_fn.1} parent=0 // pred_check
    _
  $region11: #{_forward_fn.1} parent=0 // pred_check_branch
    %33 = sbr.rel (0) target = $region13
  $region12: #{_forward_fn.1} parent=0 // pred_region
    _
  $region13: #{_forward_fn.1} parent=0 // pred_fallthru
    _
  // Predicated region
  $region14: #{_forward_fn.1} parent=0 // pred_check
    _
  $region15: #{_forward_fn.1} parent=0 // pred_check_branch
    %35 = sbr.rel (0) target = $region17
  $region16: #{_forward_fn.1} parent=0 // pred_region
    _
  $region17: #{_forward_fn.1} parent=0 // pred_fallthru
    _
  // Predicated region
  $region18: #{_forward_fn.1} parent=0 // pred_check
    _
  $region19: #{_forward_fn.1} parent=0 // pred_check_branch
    %37 = sbr.rel (0) target = $region21
  $region20: #{_forward_fn.1} parent=0 // pred_region
    _
  $region21: #{_forward_fn.1} parent=0 // pred_fallthru
    _
  // Predicated region
  $region22: #{_forward_fn.1} parent=0 // pred_check
    _
  $region23: #{_forward_fn.1} parent=0 // pred_check_branch
    %39 = sbr.rel (0) target = $region25
  $region24: #{_forward_fn.1} parent=0 // pred_region
    _
  $region25: #{_forward_fn.1} parent=0 // pred_fallthru
    _
  // Predicated region
  $region26: #{_forward_fn.1} parent=0 // pred_check
    _
  $region27: #{_forward_fn.1} parent=0 // pred_check_branch
    %41 = sbr.rel (0) target = $region29
  $region28: #{_forward_fn.1} parent=0 // pred_region
    _
  $region29: #{_forward_fn.1} parent=0 // pred_fallthru
    _
  // Predicated region
  $region30: #{_forward_fn.1} parent=0 // pred_check
    _
  $region31: #{_forward_fn.1} parent=0 // pred_check_branch
    %43 = sbr.rel (0) target = $region33
  $region32: #{_forward_fn.1} parent=0 // pred_region
    _
  $region33: #{_forward_fn.1} parent=0 // pred_fallthru
    _
  // Predicated region
  $region34: #{_forward_fn.1} parent=0 // pred_check
    _
  $region35: #{_forward_fn.1} parent=0 // pred_check_branch
    %45 = sbr.rel (0) target = $region37
  $region36: #{_forward_fn.1} parent=0 // pred_region
    _
  $region37: #{_forward_fn.1} parent=0 // pred_fallthru
    _
  // Predicated region
  $region38: #{_forward_fn.1} parent=0 // pred_check
    _
  $region39: #{_forward_fn.1} parent=0 // pred_check_branch
    %47 = sbr.rel (0) target = $region41
  $region40: #{_forward_fn.1} parent=0 // pred_region
    _
  $region41: #{_forward_fn.1} parent=0 // pred_fallthru
    _
  // Predicated region
  $region42: #{_forward_fn.1} parent=0 // pred_check
    _
  $region43: #{_forward_fn.1} parent=0 // pred_check_branch
    %49 = sbr.rel (0) target = $region45
  $region44: #{_forward_fn.1} parent=0 // pred_region
    _
  $region45: #{_forward_fn.1} parent=0 // pred_fallthru
    _
  // Predicated region
  $region46: #{_forward_fn.1} parent=0 // pred_check
    _
  $region47: #{_forward_fn.1} parent=0 // pred_check_branch
    %51 = sbr.rel (0) target = $region49
  $region48: #{_forward_fn.1} parent=0 // pred_region
    _
  $region49: #{_forward_fn.1} parent=0 // pred_fallthru
    _
  // Predicated region
  $region50: #{_forward_fn.1} parent=0 // pred_check
    _
  $region51: #{_forward_fn.1} parent=0 // pred_check_branch
    %53 = sbr.rel (0) target = $region53
  $region52: #{_forward_fn.1} parent=0 // pred_region
    _
  $region53: #{_forward_fn.1} parent=0 // pred_fallthru
    _
  // Predicated region
  $region54: #{_forward_fn.1} parent=0 // pred_check
    _
  $region55: #{_forward_fn.1} parent=0 // pred_check_branch
    %55 = sbr.rel (0) target = $region57
  $region56: #{_forward_fn.1} parent=0 // pred_region
    _
  $region57: #{_forward_fn.1} parent=0 // pred_fallthru
    _
  // Predicated region
  $region58: #{_forward_fn.1} parent=0 // pred_check
    _
  $region59: #{_forward_fn.1} parent=0 // pred_check_branch
    %57 = sbr.rel (0) target = $region61
  $region60: #{_forward_fn.1} parent=0 // pred_region
    _
  $region61: #{_forward_fn.1} parent=0 // pred_fallthru
    _
  // Predicated region
  $region62: #{_forward_fn.1} parent=0 // pred_check
    _
  $region63: #{_forward_fn.1} parent=0 // pred_check_branch
    %59 = sbr.rel (0) target = $region65
  $region64: #{_forward_fn.1} parent=0 // pred_region
    _
  $region65: #{_forward_fn.1} parent=0 // pred_fallthru
    _
  // Predicated region
  $region66: #{_forward_fn.1} parent=0 // pred_check
    _
  $region67: #{_forward_fn.1} parent=0 // pred_check_branch
    %61 = sbr.rel (0) target = $region69
  $region68: #{_forward_fn.1} parent=0 // pred_region
    _
  $region69: #{_forward_fn.1} parent=0 // pred_fallthru
    _
  // Predicated region
  $region70: #{_forward_fn.1} parent=0 // pred_check
    _
  $region71: #{_forward_fn.1} parent=0 // pred_check_branch
    %63 = sbr.rel (0) target = $region73
  $region72: #{_forward_fn.1} parent=0 // pred_region
    _
  $region73: #{_forward_fn.1} parent=0 // pred_fallthru
    _
  // Predicated region
  $region74: #{_forward_fn.1} parent=0 // pred_check
    _
  $region75: #{_forward_fn.1} parent=0 // pred_check_branch
    %65 = sbr.rel (0) target = $region77
  $region76: #{_forward_fn.1} parent=0 // pred_region
    _
  $region77: #{_forward_fn.1} parent=0 // pred_fallthru
    _
  // Predicated region
  $region78: #{_forward_fn.1} parent=0 // pred_check
    _
  $region79: #{_forward_fn.1} parent=0 // pred_check_branch
    %67 = sbr.rel (0) target = $region81
  $region80: #{_forward_fn.1} parent=0 // pred_region
    _
  $region81: #{_forward_fn.1} parent=0 // pred_fallthru
    _
  %v69 = vld [vmem:[%s0] sm:$0xff]
  %v70 = vld [vmem:[%s0 + $0x8] sm:$0xff]
  %v71 = vld [vmem:[%s0 + $0x10] sm:$0xff]
  %v72 = vld [vmem:[%s0 + $0x18] sm:$0xff]
  %v73 = vld [vmem:[%s0 + $0x20] sm:$0xff]
  %v74 = vld [vmem:[%s0 + $0x28] sm:$0xff]
  %v75 = vld [vmem:[%s0 + $0x30] sm:$0xff]
  %v76 = vld [vmem:[%s0 + $0x38] sm:$0xff]
  %v77 = vld [vmem:[%s0 + $0x40] sm:$0xff]
  %v78 = vld [vmem:[%s0 + $0x48] sm:$0xff]
  %v79 = vld [vmem:[%s0 + $0x50] sm:$0xff]
  %v80 = vld [vmem:[%s0 + $0x58] sm:$0xff]
  %v81 = vld [vmem:[%s0 + $0x60] sm:$0xff]
  %v82 = vld [vmem:[%s0 + $0x68] sm:$0xff]
  %v83 = vld [vmem:[%s0 + $0x70] sm:$0xff]
  %v84 = vld [vmem:[%s0 + $0x78] sm:$0xff]
  %v85 = vld [vmem:[%s3] sm:$0xf]
  %v86 = vld [vmem:[%s3 + $0x4] sm:$0xf]
  %v87 = vld [vmem:[%s3 + $0x8] sm:$0xf]
  %v88 = vld [vmem:[%s3 + $0xc] sm:$0xf]
  %v89 = vld [vmem:[%s3 + $0x10] sm:$0xf]
  %v90 = vld [vmem:[%s3 + $0x14] sm:$0xf]
  %v91 = vld [vmem:[%s3 + $0x18] sm:$0xf]
  %v92 = vld [vmem:[%s3 + $0x1c] sm:$0xf]
  %v93 = vld [vmem:[%s3 + $0x20] sm:$0xf]
  %v94 = vld [vmem:[%s3 + $0x24] sm:$0xf]
  %v95 = vld [vmem:[%s3 + $0x28] sm:$0xf]
  %v96 = vld [vmem:[%s3 + $0x2c] sm:$0xf]
  %v97 = vld [vmem:[%s3 + $0x30] sm:$0xf]
  %v98 = vld [vmem:[%s3 + $0x34] sm:$0xf]
  %v99 = vld [vmem:[%s3 + $0x38] sm:$0xf]
  %v100 = vld [vmem:[%s3 + $0x3c] sm:$0xf]
  %v101 = vld [vmem:[%s3 + $0x40] sm:$0xf]
  %v102 = vld [vmem:[%s3 + $0x44] sm:$0xf]
  %v103 = vld [vmem:[%s3 + $0x48] sm:$0xf]
  %v104 = vld [vmem:[%s3 + $0x4c] sm:$0xf]
  %v105 = vld [vmem:[%s3 + $0x50] sm:$0xf]
  %v106 = vld [vmem:[%s3 + $0x54] sm:$0xf]
  %v107 = vld [vmem:[%s3 + $0x58] sm:$0xf]
  %v108 = vld [vmem:[%s3 + $0x5c] sm:$0xf]
  %v109 = vld [vmem:[%s3 + $0x60] sm:$0xf]
  %v110 = vld [vmem:[%s3 + $0x64] sm:$0xf]
  %v111 = vld [vmem:[%s3 + $0x68] sm:$0xf]
  %v112 = vld [vmem:[%s3 + $0x6c] sm:$0xf]
  %v113 = vld [vmem:[%s3 + $0x70] sm:$0xf]
  %v114 = vld [vmem:[%s3 + $0x74] sm:$0xf]
  %v115 = vld [vmem:[%s3 + $0x78] sm:$0xf]
  %v116 = vld [vmem:[%s3 + $0x7c] sm:$0xf]
  %v117 = vld [vmem:[%s4] sm:$0x1]
  %v119 = vlaneseq
  %v120 = vshrl.u32 %v119, 7
  %v121 = vsub.s32 0, %v120
  %v122 = vrot.slane %v117, %v121
  %v140 = vunpack.c.l.b16 %v69
  %v141 = vunpack.c.h.b16 %v69
  %v142 = vunpack.c.l.b16 %v70
  %v143 = vunpack.c.h.b16 %v70
  %v144 = vunpack.c.l.b16 %v71
  %v145 = vunpack.c.h.b16 %v71
  %v146 = vunpack.c.l.b16 %v72
  %v147 = vunpack.c.h.b16 %v72
  %v148 = vunpack.c.l.b16 %v73
  %v149 = vunpack.c.h.b16 %v73
  %v150 = vunpack.c.l.b16 %v74
  %v151 = vunpack.c.h.b16 %v74
  %v152 = vunpack.c.l.b16 %v75
  %v153 = vunpack.c.h.b16 %v75
  %v154 = vunpack.c.l.b16 %v76
  %v155 = vunpack.c.h.b16 %v76
  %v156 = vunpack.c.l.b16 %v77
  %v157 = vunpack.c.h.b16 %v77
  %v158 = vunpack.c.l.b16 %v78
  %v159 = vunpack.c.h.b16 %v78
  %v160 = vunpack.c.l.b16 %v79
  %v161 = vunpack.c.h.b16 %v79
  %v162 = vunpack.c.l.b16 %v80
  %v163 = vunpack.c.h.b16 %v80
  %v164 = vunpack.c.l.b16 %v81
  %v165 = vunpack.c.h.b16 %v81
  %v166 = vunpack.c.l.b16 %v82
  %v167 = vunpack.c.h.b16 %v82
  %v168 = vunpack.c.l.b16 %v83
  %v169 = vunpack.c.h.b16 %v83
  %v170 = vunpack.c.l.b16 %v84
  %v171 = vunpack.c.h.b16 %v84
  %v172 = vpack.c.b16 %v142, %v140
  %v173 = vpack.c.b16 %v143, %v141
  %v174 = vpack.c.b16 %v146, %v144
  %v175 = vpack.c.b16 %v147, %v145
  %v176 = vpack.c.b16 %v150, %v148
  %v177 = vpack.c.b16 %v151, %v149
  %v178 = vpack.c.b16 %v154, %v152
  %v179 = vpack.c.b16 %v155, %v153
  %v180 = vpack.c.b16 %v158, %v156
  %v181 = vpack.c.b16 %v159, %v157
  %v182 = vpack.c.b16 %v162, %v160
  %v183 = vpack.c.b16 %v163, %v161
  %v184 = vpack.c.b16 %v166, %v164
  %v185 = vpack.c.b16 %v167, %v165
  %v186 = vpack.c.b16 %v170, %v168
  %v187 = vpack.c.b16 %v171, %v169
  %v236 = vunpack.c.l.b16 %v85
  %v237 = vunpack.c.l.b16 %v86
  %v238 = vunpack.c.l.b16 %v87
  %v239 = vunpack.c.l.b16 %v88
  %v240 = vunpack.c.l.b16 %v89
  %v241 = vunpack.c.l.b16 %v90
  %v242 = vunpack.c.l.b16 %v91
  %v243 = vunpack.c.l.b16 %v92
  %v244 = vunpack.c.l.b16 %v93
  %v245 = vunpack.c.l.b16 %v94
  %v246 = vunpack.c.l.b16 %v95
  %v247 = vunpack.c.l.b16 %v96
  %v248 = vunpack.c.l.b16 %v97
  %v249 = vunpack.c.l.b16 %v98
  %v250 = vunpack.c.l.b16 %v99
  %v251 = vunpack.c.l.b16 %v100
  %v252 = vunpack.c.l.b16 %v101
  %v253 = vunpack.c.l.b16 %v102
  %v254 = vunpack.c.l.b16 %v103
  %v255 = vunpack.c.l.b16 %v104
  %v256 = vunpack.c.l.b16 %v105
  %v257 = vunpack.c.l.b16 %v106
  %v258 = vunpack.c.l.b16 %v107
  %v259 = vunpack.c.l.b16 %v108
  %v260 = vunpack.c.l.b16 %v109
  %v261 = vunpack.c.l.b16 %v110
  %v262 = vunpack.c.l.b16 %v111
  %v263 = vunpack.c.l.b16 %v112
  %v264 = vunpack.c.l.b16 %v113
  %v265 = vunpack.c.l.b16 %v114
  %v266 = vunpack.c.l.b16 %v115
  %v267 = vunpack.c.l.b16 %v116
  %v268 = vpack.c.b16 %v237, %v236
  %v269 = vpack.c.b16 %v239, %v238
  %v270 = vpack.c.b16 %v241, %v240
  %v271 = vpack.c.b16 %v243, %v242
  %v272 = vpack.c.b16 %v245, %v244
  %v273 = vpack.c.b16 %v247, %v246
  %v274 = vpack.c.b16 %v249, %v248
  %v275 = vpack.c.b16 %v251, %v250
  %v276 = vpack.c.b16 %v253, %v252
  %v277 = vpack.c.b16 %v255, %v254
  %v278 = vpack.c.b16 %v257, %v256
  %v279 = vpack.c.b16 %v259, %v258
  %v280 = vpack.c.b16 %v261, %v260
  %v281 = vpack.c.b16 %v263, %v262
  %v282 = vpack.c.b16 %v265, %v264
  %v283 = vpack.c.b16 %v267, %v266
  %300 = vmatprep.subr.bf16.mxu0 0
  %301 = vmatpush1.bf16.msra.mxu0 %v275
  %302 = vmatprep.subr.bf16.mxu0 0
  %303 = vmatpush1.bf16.msra.mxu0 %v274
  %304 = vmatprep.subr.bf16.mxu0 0
  %305 = vmatpush1.bf16.msra.mxu0 %v273
  %306 = vmatprep.subr.bf16.mxu0 0
  %307 = vmatpush1.bf16.msra.mxu0 %v272
  %308 = vmatprep.subr.bf16.mxu0 0
  %309 = vmatpush1.bf16.msra.mxu0 %v271
  %310 = vmatprep.subr.bf16.mxu0 0
  %311 = vmatpush1.bf16.msra.mxu0 %v270
  %312 = vmatprep.subr.bf16.mxu0 0
  %313 = vmatpush1.bf16.msra.mxu0 %v269
  %314 = vmatprep.subr.bf16.mxu0 0
  %315 = vmatpush1.bf16.msra.mxu0 %v268
  %316 = vmatprep.subr.bf16.mxu0 0
  %317 = vmatpush2.bf16.msra.mxu0 %v283
  %318 = vmatprep.subr.bf16.mxu0 0
  %319 = vmatpush2.bf16.msra.mxu0 %v282
  %320 = vmatprep.subr.bf16.mxu0 0
  %321 = vmatpush2.bf16.msra.mxu0 %v281
  %322 = vmatprep.subr.bf16.mxu0 0
  %323 = vmatpush2.bf16.msra.mxu0 %v280
  %324 = vmatprep.subr.bf16.mxu0 0
  %325 = vmatpush2.bf16.msra.mxu0 %v279
  %326 = vmatprep.subr.bf16.mxu0 0
  %327 = vmatpush2.bf16.msra.mxu0 %v278
  %328 = vmatprep.subr.bf16.mxu0 0
  %329 = vmatpush2.bf16.msra.mxu0 %v277
  %330 = vmatprep.subr.bf16.mxu0 0
  %331 = vmatpush2.bf16.msra.mxu0 %v276
  %332 = vmatprep.mubr.bf16.mxu0 %v173
  %333 = vmatmul.mubr.bf16.gmra.mxu0 %v172
  %v334 = vpop.f32.mrf.mxu0
  %v335 = vadd.f32 %v122, %v334
  %v336 = vpop.f32.mrf.mxu0
  %v337 = vpop.f32.mrf.mxu0
  %v338 = vadd.f32 %v122, %v337
  %v339 = vpop.f32.mrf.mxu0
  %340 = vmatprep.mubr.bf16.mxu0 %v175
  %341 = vmatmul.mubr.bf16.gmra.mxu0 %v174
  %v342 = vpop.f32.mrf.mxu0
  %v343 = vadd.f32 %v122, %v342
  %v344 = vpop.f32.mrf.mxu0
  %v345 = vpop.f32.mrf.mxu0
  %v346 = vadd.f32 %v122, %v345
  %v347 = vpop.f32.mrf.mxu0
  %348 = vmatprep.mubr.bf16.mxu0 %v177
  %349 = vmatmul.mubr.bf16.gmra.mxu0 %v176
  %v350 = vpop.f32.mrf.mxu0
  %v351 = vadd.f32 %v122, %v350
  %v352 = vpop.f32.mrf.mxu0
  %v353 = vpop.f32.mrf.mxu0
  %v354 = vadd.f32 %v122, %v353
  %v355 = vpop.f32.mrf.mxu0
  %356 = vmatprep.mubr.bf16.mxu0 %v179
  %357 = vmatmul.mubr.bf16.gmra.mxu0 %v178
  %v358 = vpop.f32.mrf.mxu0
  %v359 = vadd.f32 %v122, %v358
  %v360 = vpop.f32.mrf.mxu0
  %v361 = vpop.f32.mrf.mxu0
  %v362 = vadd.f32 %v122, %v361
  %v363 = vpop.f32.mrf.mxu0
  %364 = vmatprep.mubr.bf16.mxu0 %v181
  %365 = vmatmul.mubr.bf16.gmra.mxu0 %v180
  %v366 = vpop.f32.mrf.mxu0
  %v367 = vadd.f32 %v122, %v366
  %v368 = vpop.f32.mrf.mxu0
  %v369 = vpop.f32.mrf.mxu0
  %v370 = vadd.f32 %v122, %v369
  %v371 = vpop.f32.mrf.mxu0
  %372 = vmatprep.mubr.bf16.mxu0 %v183
  %373 = vmatmul.mubr.bf16.gmra.mxu0 %v182
  %v374 = vpop.f32.mrf.mxu0
  %v375 = vadd.f32 %v122, %v374
  %v376 = vpop.f32.mrf.mxu0
  %v377 = vpop.f32.mrf.mxu0
  %v378 = vadd.f32 %v122, %v377
  %v379 = vpop.f32.mrf.mxu0
  %380 = vmatprep.mubr.bf16.mxu0 %v185
  %381 = vmatmul.mubr.bf16.gmra.mxu0 %v184
  %v382 = vpop.f32.mrf.mxu0
  %v383 = vadd.f32 %v122, %v382
  %v384 = vpop.f32.mrf.mxu0
  %v385 = vpop.f32.mrf.mxu0
  %v386 = vadd.f32 %v122, %v385
  %v387 = vpop.f32.mrf.mxu0
  %388 = vmatprep.mubr.bf16.mxu0 %v187
  %389 = vmatmul.mubr.bf16.gmra.mxu0 %v186
  %v390 = vpop.f32.mrf.mxu0
  %v391 = vadd.f32 %v122, %v390
  %v392 = vpop.f32.mrf.mxu0
  %v393 = vpop.f32.mrf.mxu0
  %v394 = vadd.f32 %v122, %v393
  %v395 = vpop.f32.mrf.mxu0
  %396 = vdwg.mxu0
  %v397 = vmax.f32 %v335, 0.0
  %v398 = vmax.f32 %v338, 0.0
  %v399 = vmax.f32 %v343, 0.0
  %v400 = vmax.f32 %v346, 0.0
  %v401 = vmax.f32 %v351, 0.0
  %v402 = vmax.f32 %v354, 0.0
  %v403 = vmax.f32 %v359, 0.0
  %v404 = vmax.f32 %v362, 0.0
  %v405 = vmax.f32 %v367, 0.0
  %v406 = vmax.f32 %v370, 0.0
  %v407 = vmax.f32 %v375, 0.0
  %v408 = vmax.f32 %v378, 0.0
  %v409 = vmax.f32 %v383, 0.0
  %v410 = vmax.f32 %v386, 0.0
  %v411 = vmax.f32 %v391, 0.0
  %v412 = vmax.f32 %v394, 0.0
  %v413 = vpack.c.bf16 %v398, %v397
  %v414 = vpack.c.bf16 %v400, %v399
  %v415 = vpack.c.bf16 %v402, %v401
  %v416 = vpack.c.bf16 %v404, %v403
  %v417 = vpack.c.bf16 %v406, %v405
  %v418 = vpack.c.bf16 %v408, %v407
  %v419 = vpack.c.bf16 %v410, %v409
  %v420 = vpack.c.bf16 %v412, %v411
  %v421 = vld [vmem:[%s1] sm:$0xf]
  %v422 = vld [vmem:[%s1 + $0x4] sm:$0xf]
  %v423 = vld [vmem:[%s1 + $0x8] sm:$0xf]
  %v424 = vld [vmem:[%s1 + $0xc] sm:$0xf]
  %v425 = vld [vmem:[%s1 + $0x10] sm:$0xf]
  %v426 = vld [vmem:[%s1 + $0x14] sm:$0xf]
  %v427 = vld [vmem:[%s1 + $0x18] sm:$0xf]
  %v428 = vld [vmem:[%s1 + $0x1c] sm:$0xf]
  %v429 = vld [vmem:[%s1 + $0x20] sm:$0xf]
  %v430 = vld [vmem:[%s1 + $0x24] sm:$0xf]
  %v431 = vld [vmem:[%s1 + $0x28] sm:$0xf]
  %v432 = vld [vmem:[%s1 + $0x2c] sm:$0xf]
  %v433 = vld [vmem:[%s1 + $0x30] sm:$0xf]
  %v434 = vld [vmem:[%s1 + $0x34] sm:$0xf]
  %v435 = vld [vmem:[%s1 + $0x38] sm:$0xf]
  %v436 = vld [vmem:[%s1 + $0x3c] sm:$0xf]
  %v437 = vld [vmem:[%s1 + $0x40] sm:$0xf]
  %v438 = vld [vmem:[%s1 + $0x44] sm:$0xf]
  %v439 = vld [vmem:[%s1 + $0x48] sm:$0xf]
  %v440 = vld [vmem:[%s1 + $0x4c] sm:$0xf]
  %v441 = vld [vmem:[%s1 + $0x50] sm:$0xf]
  %v442 = vld [vmem:[%s1 + $0x54] sm:$0xf]
  %v443 = vld [vmem:[%s1 + $0x58] sm:$0xf]
  %v444 = vld [vmem:[%s1 + $0x5c] sm:$0xf]
  %v445 = vld [vmem:[%s1 + $0x60] sm:$0xf]
  %v446 = vld [vmem:[%s1 + $0x64] sm:$0xf]
  %v447 = vld [vmem:[%s1 + $0x68] sm:$0xf]
  %v448 = vld [vmem:[%s1 + $0x6c] sm:$0xf]
  %v449 = vld [vmem:[%s1 + $0x70] sm:$0xf]
  %v450 = vld [vmem:[%s1 + $0x74] sm:$0xf]
  %v451 = vld [vmem:[%s1 + $0x78] sm:$0xf]
  %v452 = vld [vmem:[%s1 + $0x7c] sm:$0xf]
  %v453 = vld [vmem:[%s1 + $0x80] sm:$0xf]
  %v454 = vld [vmem:[%s1 + $0x84] sm:$0xf]
  %v455 = vld [vmem:[%s1 + $0x88] sm:$0xf]
  %v456 = vld [vmem:[%s1 + $0x8c] sm:$0xf]
  %v457 = vld [vmem:[%s1 + $0x90] sm:$0xf]
  %v458 = vld [vmem:[%s1 + $0x94] sm:$0xf]
  %v459 = vld [vmem:[%s1 + $0x98] sm:$0xf]
  %v460 = vld [vmem:[%s1 + $0x9c] sm:$0xf]
  %v461 = vld [vmem:[%s1 + $0xa0] sm:$0xf]
  %v462 = vld [vmem:[%s1 + $0xa4] sm:$0xf]
  %v463 = vld [vmem:[%s1 + $0xa8] sm:$0xf]
  %v464 = vld [vmem:[%s1 + $0xac] sm:$0xf]
  %v465 = vld [vmem:[%s1 + $0xb0] sm:$0xf]
  %v466 = vld [vmem:[%s1 + $0xb4] sm:$0xf]
  %v467 = vld [vmem:[%s1 + $0xb8] sm:$0xf]
  %v468 = vld [vmem:[%s1 + $0xbc] sm:$0xf]
  %v517 = vunpack.c.l.b16 %v421
  %v518 = vunpack.c.l.b16 %v422
  %v519 = vunpack.c.l.b16 %v423
  %v520 = vunpack.c.l.b16 %v424
  %v521 = vunpack.c.l.b16 %v425
  %v522 = vunpack.c.l.b16 %v426
  %v523 = vunpack.c.l.b16 %v427
  %v524 = vunpack.c.l.b16 %v428
  %v525 = vunpack.c.l.b16 %v429
  %v526 = vunpack.c.l.b16 %v430
  %v527 = vunpack.c.l.b16 %v431
  %v528 = vunpack.c.l.b16 %v432
  %v529 = vunpack.c.l.b16 %v433
  %v530 = vunpack.c.l.b16 %v434
  %v531 = vunpack.c.l.b16 %v435
  %v532 = vunpack.c.l.b16 %v436
  %v533 = vunpack.c.l.b16 %v437
  %v534 = vunpack.c.l.b16 %v438
  %v535 = vunpack.c.l.b16 %v439
  %v536 = vunpack.c.l.b16 %v440
  %v537 = vunpack.c.l.b16 %v441
  %v538 = vunpack.c.l.b16 %v442
  %v539 = vunpack.c.l.b16 %v443
  %v540 = vunpack.c.l.b16 %v444
  %v541 = vunpack.c.l.b16 %v445
  %v542 = vunpack.c.l.b16 %v446
  %v543 = vunpack.c.l.b16 %v447
  %v544 = vunpack.c.l.b16 %v448
  %v545 = vunpack.c.l.b16 %v449
  %v546 = vunpack.c.l.b16 %v450
  %v547 = vunpack.c.l.b16 %v451
  %v548 = vunpack.c.l.b16 %v452
  %v549 = vunpack.c.l.b16 %v453
  %v550 = vunpack.c.l.b16 %v454
  %v551 = vunpack.c.l.b16 %v455
  %v552 = vunpack.c.l.b16 %v456
  %v553 = vunpack.c.l.b16 %v457
  %v554 = vunpack.c.l.b16 %v458
  %v555 = vunpack.c.l.b16 %v459
  %v556 = vunpack.c.l.b16 %v460
  %v557 = vunpack.c.l.b16 %v461
  %v558 = vunpack.c.l.b16 %v462
  %v559 = vunpack.c.l.b16 %v463
  %v560 = vunpack.c.l.b16 %v464
  %v561 = vunpack.c.l.b16 %v465
  %v562 = vunpack.c.l.b16 %v466
  %v563 = vunpack.c.l.b16 %v467
  %v564 = vunpack.c.l.b16 %v468
  %v565 = vpack.c.b16 %v518, %v517
  %v566 = vpack.c.b16 %v520, %v519
  %v567 = vpack.c.b16 %v522, %v521
  %v568 = vpack.c.b16 %v524, %v523
  %v569 = vpack.c.b16 %v526, %v525
  %v570 = vpack.c.b16 %v528, %v527
  %v571 = vpack.c.b16 %v530, %v529
  %v572 = vpack.c.b16 %v532, %v531
  %v573 = vpack.c.b16 %v534, %v533
  %v574 = vpack.c.b16 %v536, %v535
  %v575 = vpack.c.b16 %v538, %v537
  %v576 = vpack.c.b16 %v540, %v539
  %v577 = vpack.c.b16 %v542, %v541
  %v578 = vpack.c.b16 %v544, %v543
  %v579 = vpack.c.b16 %v546, %v545
  %v580 = vpack.c.b16 %v548, %v547
  %v581 = vpack.c.b16 %v550, %v549
  %v582 = vpack.c.b16 %v552, %v551
  %v583 = vpack.c.b16 %v554, %v553
  %v584 = vpack.c.b16 %v556, %v555
  %v585 = vpack.c.b16 %v558, %v557
  %v586 = vpack.c.b16 %v560, %v559
  %v587 = vpack.c.b16 %v562, %v561
  %v588 = vpack.c.b16 %v564, %v563
  %613 = vmatprep.subr.bf16.mxu0 0
  %614 = vmatpush1.bf16.msra.mxu0 %v420
  %615 = vmatprep.subr.bf16.mxu0 0
  %616 = vmatpush1.bf16.msra.mxu0 %v419
  %617 = vmatprep.subr.bf16.mxu0 0
  %618 = vmatpush1.bf16.msra.mxu0 %v418
  %619 = vmatprep.subr.bf16.mxu0 0
  %620 = vmatpush1.bf16.msra.mxu0 %v417
  %621 = vmatprep.subr.bf16.mxu0 0
  %622 = vmatpush1.bf16.msra.mxu0 %v416
  %623 = vmatprep.subr.bf16.mxu0 0
  %624 = vmatpush1.bf16.msra.mxu0 %v415
  %625 = vmatprep.subr.bf16.mxu0 0
  %626 = vmatpush1.bf16.msra.mxu0 %v414
  %627 = vmatprep.subr.bf16.mxu0 0
  %628 = vmatpush1.bf16.msra.mxu0 %v413
  %629 = vmatprep.subr.bf16.mxu0 0
  %630 = vmatpush2.bf16.msra.mxu0 0
  %631 = vmatprep.subr.bf16.mxu0 0
  %632 = vmatpush2.bf16.msra.mxu0 0
  %633 = vmatprep.subr.bf16.mxu0 0
  %634 = vmatpush2.bf16.msra.mxu0 0
  %635 = vmatprep.subr.bf16.mxu0 0
  %636 = vmatpush2.bf16.msra.mxu0 0
  %637 = vmatprep.subr.bf16.mxu0 0
  %638 = vmatpush2.bf16.msra.mxu0 0
  %639 = vmatprep.subr.bf16.mxu0 0
  %640 = vmatpush2.bf16.msra.mxu0 0
  %641 = vmatprep.subr.bf16.mxu0 0
  %642 = vmatpush2.bf16.msra.mxu0 0
  %643 = vmatprep.subr.bf16.mxu0 0
  %644 = vmatpush2.bf16.msra.mxu0 0
  %645 = vmatprep.mubr.bf16.mxu0 0
  %646 = vmatmul.mubr.bf16.gmra.mxu0 %v565
  %v647 = vpop.f32.mrf.mxu0
  %v648 = vadd.f32 0.0, %v647
  %v649 = vpop.f32.mrf.mxu0
  %v650 = vpop.f32.mrf.mxu0
  %v651 = vadd.f32 0.0, %v650
  %v652 = vpop.f32.mrf.mxu0
  %653 = vmatprep.mubr.bf16.mxu0 0
  %654 = vmatmul.mubr.bf16.gmra.mxu0 %v566
  %v655 = vpop.f32.mrf.mxu0
  %v656 = vadd.f32 0.0, %v655
  %v657 = vpop.f32.mrf.mxu0
  %v658 = vpop.f32.mrf.mxu0
  %v659 = vadd.f32 0.0, %v658
  %v660 = vpop.f32.mrf.mxu0
  %661 = vmatprep.mubr.bf16.mxu0 0
  %662 = vmatmul.mubr.bf16.gmra.mxu0 %v567
  %v663 = vpop.f32.mrf.mxu0
  %v664 = vadd.f32 0.0, %v663
  %v665 = vpop.f32.mrf.mxu0
  %v666 = vpop.f32.mrf.mxu0
  %v667 = vadd.f32 0.0, %v666
  %v668 = vpop.f32.mrf.mxu0
  %669 = vmatprep.mubr.bf16.mxu0 0
  %670 = vmatmul.mubr.bf16.gmra.mxu0 %v568
  %v671 = vpop.f32.mrf.mxu0
  %v672 = vadd.f32 0.0, %v671
  %v673 = vpop.f32.mrf.mxu0
  %v674 = vpop.f32.mrf.mxu0
  %v675 = vadd.f32 0.0, %v674
  %v676 = vpop.f32.mrf.mxu0
  %677 = vmatprep.mubr.bf16.mxu0 0
  %678 = vmatmul.mubr.bf16.gmra.mxu0 %v569
  %v679 = vpop.f32.mrf.mxu0
  %v680 = vadd.f32 0.0, %v679
  %v681 = vpop.f32.mrf.mxu0
  %v682 = vpop.f32.mrf.mxu0
  %v683 = vadd.f32 0.0, %v682
  %v684 = vpop.f32.mrf.mxu0
  %685 = vmatprep.mubr.bf16.mxu0 0
  %686 = vmatmul.mubr.bf16.gmra.mxu0 %v570
  %v687 = vpop.f32.mrf.mxu0
  %v688 = vadd.f32 0.0, %v687
  %v689 = vpop.f32.mrf.mxu0
  %v690 = vpop.f32.mrf.mxu0
  %v691 = vadd.f32 0.0, %v690
  %v692 = vpop.f32.mrf.mxu0
  %693 = vmatprep.mubr.bf16.mxu0 0
  %694 = vmatmul.mubr.bf16.gmra.mxu0 %v571
  %v695 = vpop.f32.mrf.mxu0
  %v696 = vadd.f32 0.0, %v695
  %v697 = vpop.f32.mrf.mxu0
  %v698 = vpop.f32.mrf.mxu0
  %v699 = vadd.f32 0.0, %v698
  %v700 = vpop.f32.mrf.mxu0
  %701 = vmatprep.mubr.bf16.mxu0 0
  %702 = vmatmul.mubr.bf16.gmra.mxu0 %v572
  %v703 = vpop.f32.mrf.mxu0
  %v704 = vadd.f32 0.0, %v703
  %v705 = vpop.f32.mrf.mxu0
  %v706 = vpop.f32.mrf.mxu0
  %v707 = vadd.f32 0.0, %v706
  %v708 = vpop.f32.mrf.mxu0
  %709 = vmatprep.mubr.bf16.mxu0 0
  %710 = vmatmul.mubr.bf16.gmra.mxu0 %v573
  %v711 = vpop.f32.mrf.mxu0
  %v712 = vadd.f32 0.0, %v711
  %v713 = vpop.f32.mrf.mxu0
  %v714 = vpop.f32.mrf.mxu0
  %v715 = vadd.f32 0.0, %v714
  %v716 = vpop.f32.mrf.mxu0
  %717 = vmatprep.mubr.bf16.mxu0 0
  %718 = vmatmul.mubr.bf16.gmra.mxu0 %v574
  %v719 = vpop.f32.mrf.mxu0
  %v720 = vadd.f32 0.0, %v719
  %v721 = vpop.f32.mrf.mxu0
  %v722 = vpop.f32.mrf.mxu0
  %v723 = vadd.f32 0.0, %v722
  %v724 = vpop.f32.mrf.mxu0
  %725 = vmatprep.mubr.bf16.mxu0 0
  %726 = vmatmul.mubr.bf16.gmra.mxu0 %v575
  %v727 = vpop.f32.mrf.mxu0
  %v728 = vadd.f32 0.0, %v727
  %v729 = vpop.f32.mrf.mxu0
  %v730 = vpop.f32.mrf.mxu0
  %v731 = vadd.f32 0.0, %v730
  %v732 = vpop.f32.mrf.mxu0
  %733 = vmatprep.mubr.bf16.mxu0 0
  %734 = vmatmul.mubr.bf16.gmra.mxu0 %v576
  %v735 = vpop.f32.mrf.mxu0
  %v736 = vadd.f32 0.0, %v735
  %v737 = vpop.f32.mrf.mxu0
  %v738 = vpop.f32.mrf.mxu0
  %v739 = vadd.f32 0.0, %v738
  %v740 = vpop.f32.mrf.mxu0
  %741 = vmatprep.mubr.bf16.mxu0 0
  %742 = vmatmul.mubr.bf16.gmra.mxu0 %v577
  %v743 = vpop.f32.mrf.mxu0
  %v744 = vadd.f32 0.0, %v743
  %v745 = vpop.f32.mrf.mxu0
  %v746 = vpop.f32.mrf.mxu0
  %v747 = vadd.f32 0.0, %v746
  %v748 = vpop.f32.mrf.mxu0
  %749 = vmatprep.mubr.bf16.mxu0 0
  %750 = vmatmul.mubr.bf16.gmra.mxu0 %v578
  %v751 = vpop.f32.mrf.mxu0
  %v752 = vadd.f32 0.0, %v751
  %v753 = vpop.f32.mrf.mxu0
  %v754 = vpop.f32.mrf.mxu0
  %v755 = vadd.f32 0.0, %v754
  %v756 = vpop.f32.mrf.mxu0
  %757 = vmatprep.mubr.bf16.mxu0 0
  %758 = vmatmul.mubr.bf16.gmra.mxu0 %v579
  %v759 = vpop.f32.mrf.mxu0
  %v760 = vadd.f32 0.0, %v759
  %v761 = vpop.f32.mrf.mxu0
  %v762 = vpop.f32.mrf.mxu0
  %v763 = vadd.f32 0.0, %v762
  %v764 = vpop.f32.mrf.mxu0
  %765 = vmatprep.mubr.bf16.mxu0 0
  %766 = vmatmul.mubr.bf16.gmra.mxu0 %v580
  %v767 = vpop.f32.mrf.mxu0
  %v768 = vadd.f32 0.0, %v767
  %v769 = vpop.f32.mrf.mxu0
  %v770 = vpop.f32.mrf.mxu0
  %v771 = vadd.f32 0.0, %v770
  %v772 = vpop.f32.mrf.mxu0
  %773 = vmatprep.mubr.bf16.mxu0 0
  %774 = vmatmul.mubr.bf16.gmra.mxu0 %v581
  %v775 = vpop.f32.mrf.mxu0
  %v776 = vadd.f32 0.0, %v775
  %v777 = vpop.f32.mrf.mxu0
  %v778 = vpop.f32.mrf.mxu0
  %v779 = vadd.f32 0.0, %v778
  %v780 = vpop.f32.mrf.mxu0
  %781 = vmatprep.mubr.bf16.mxu0 0
  %782 = vmatmul.mubr.bf16.gmra.mxu0 %v582
  %v783 = vpop.f32.mrf.mxu0
  %v784 = vadd.f32 0.0, %v783
  %v785 = vpop.f32.mrf.mxu0
  %v786 = vpop.f32.mrf.mxu0
  %v787 = vadd.f32 0.0, %v786
  %v788 = vpop.f32.mrf.mxu0
  %789 = vmatprep.mubr.bf16.mxu0 0
  %790 = vmatmul.mubr.bf16.gmra.mxu0 %v583
  %v791 = vpop.f32.mrf.mxu0
  %v792 = vadd.f32 0.0, %v791
  %v793 = vpop.f32.mrf.mxu0
  %v794 = vpop.f32.mrf.mxu0
  %v795 = vadd.f32 0.0, %v794
  %v796 = vpop.f32.mrf.mxu0
  %797 = vmatprep.mubr.bf16.mxu0 0
  %798 = vmatmul.mubr.bf16.gmra.mxu0 %v584
  %v799 = vpop.f32.mrf.mxu0
  %v800 = vadd.f32 0.0, %v799
  %v801 = vpop.f32.mrf.mxu0
  %v802 = vpop.f32.mrf.mxu0
  %v803 = vadd.f32 0.0, %v802
  %v804 = vpop.f32.mrf.mxu0
  %805 = vmatprep.mubr.bf16.mxu0 0
  %806 = vmatmul.mubr.bf16.gmra.mxu0 %v585
  %v807 = vpop.f32.mrf.mxu0
  %v808 = vadd.f32 0.0, %v807
  %v809 = vpop.f32.mrf.mxu0
  %v810 = vpop.f32.mrf.mxu0
  %v811 = vadd.f32 0.0, %v810
  %v812 = vpop.f32.mrf.mxu0
  %813 = vmatprep.mubr.bf16.mxu0 0
  %814 = vmatmul.mubr.bf16.gmra.mxu0 %v586
  %v815 = vpop.f32.mrf.mxu0
  %v816 = vadd.f32 0.0, %v815
  %v817 = vpop.f32.mrf.mxu0
  %v818 = vpop.f32.mrf.mxu0
  %v819 = vadd.f32 0.0, %v818
  %v820 = vpop.f32.mrf.mxu0
  %821 = vmatprep.mubr.bf16.mxu0 0
  %822 = vmatmul.mubr.bf16.gmra.mxu0 %v587
  %v823 = vpop.f32.mrf.mxu0
  %v824 = vadd.f32 0.0, %v823
  %v825 = vpop.f32.mrf.mxu0
  %v826 = vpop.f32.mrf.mxu0
  %v827 = vadd.f32 0.0, %v826
  %v828 = vpop.f32.mrf.mxu0
  %829 = vmatprep.mubr.bf16.mxu0 0
  %830 = vmatmul.mubr.bf16.gmra.mxu0 %v588
  %v831 = vpop.f32.mrf.mxu0
  %v832 = vadd.f32 0.0, %v831
  %v833 = vpop.f32.mrf.mxu0
  %v834 = vpop.f32.mrf.mxu0
  %v835 = vadd.f32 0.0, %v834
  %v836 = vpop.f32.mrf.mxu0
  %837 = vdwg.mxu0
  %v838 = vld [vmem:[%s5] sm:$0xf]
  %v839 = vld [vmem:[%s5 + $0x4] sm:$0xf]
  %v840 = vld [vmem:[%s5 + $0x8] sm:$0xf]
  %v841 = vld [vmem:[%s5 + $0xc] sm:$0xf]
  %v842 = vld [vmem:[%s5 + $0x10] sm:$0xf]
  %v843 = vld [vmem:[%s5 + $0x14] sm:$0xf]
  %v844 = vld [vmem:[%s5 + $0x18] sm:$0xf]
  %v845 = vld [vmem:[%s5 + $0x1c] sm:$0xf]
  %v846 = vld [vmem:[%s5 + $0x20] sm:$0xf]
  %v847 = vld [vmem:[%s5 + $0x24] sm:$0xf]
  %v848 = vld [vmem:[%s5 + $0x28] sm:$0xf]
  %v849 = vld [vmem:[%s5 + $0x2c] sm:$0xf]
  %v850 = vld [vmem:[%s5 + $0x30] sm:$0xf]
  %v851 = vld [vmem:[%s5 + $0x34] sm:$0xf]
  %v852 = vld [vmem:[%s5 + $0x38] sm:$0xf]
  %v853 = vld [vmem:[%s5 + $0x3c] sm:$0xf]
  %v854 = vld [vmem:[%s5 + $0x40] sm:$0xf]
  %v855 = vld [vmem:[%s5 + $0x44] sm:$0xf]
  %v856 = vld [vmem:[%s5 + $0x48] sm:$0xf]
  %v857 = vld [vmem:[%s5 + $0x4c] sm:$0xf]
  %v858 = vld [vmem:[%s5 + $0x50] sm:$0xf]
  %v859 = vld [vmem:[%s5 + $0x54] sm:$0xf]
  %v860 = vld [vmem:[%s5 + $0x58] sm:$0xf]
  %v861 = vld [vmem:[%s5 + $0x5c] sm:$0xf]
  %v862 = vld [vmem:[%s5 + $0x60] sm:$0xf]
  %v863 = vld [vmem:[%s5 + $0x64] sm:$0xf]
  %v864 = vld [vmem:[%s5 + $0x68] sm:$0xf]
  %v865 = vld [vmem:[%s5 + $0x6c] sm:$0xf]
  %v866 = vld [vmem:[%s5 + $0x70] sm:$0xf]
  %v867 = vld [vmem:[%s5 + $0x74] sm:$0xf]
  %v868 = vld [vmem:[%s5 + $0x78] sm:$0xf]
  %v869 = vld [vmem:[%s5 + $0x7c] sm:$0xf]
  %v870 = vld [vmem:[%s5 + $0x80] sm:$0xf]
  %v871 = vld [vmem:[%s5 + $0x84] sm:$0xf]
  %v872 = vld [vmem:[%s5 + $0x88] sm:$0xf]
  %v873 = vld [vmem:[%s5 + $0x8c] sm:$0xf]
  %v874 = vld [vmem:[%s5 + $0x90] sm:$0xf]
  %v875 = vld [vmem:[%s5 + $0x94] sm:$0xf]
  %v876 = vld [vmem:[%s5 + $0x98] sm:$0xf]
  %v877 = vld [vmem:[%s5 + $0x9c] sm:$0xf]
  %v878 = vld [vmem:[%s5 + $0xa0] sm:$0xf]
  %v879 = vld [vmem:[%s5 + $0xa4] sm:$0xf]
  %v880 = vld [vmem:[%s5 + $0xa8] sm:$0xf]
  %v881 = vld [vmem:[%s5 + $0xac] sm:$0xf]
  %v882 = vld [vmem:[%s5 + $0xb0] sm:$0xf]
  %v883 = vld [vmem:[%s5 + $0xb4] sm:$0xf]
  %v884 = vld [vmem:[%s5 + $0xb8] sm:$0xf]
  %v885 = vld [vmem:[%s5 + $0xbc] sm:$0xf]
  %v886 = vld [vmem:[%s5 + $0xc0] sm:$0xf]
  %v887 = vld [vmem:[%s5 + $0xc4] sm:$0xf]
  %v888 = vld [vmem:[%s5 + $0xc8] sm:$0xf]
  %v889 = vld [vmem:[%s5 + $0xcc] sm:$0xf]
  %v890 = vld [vmem:[%s5 + $0xd0] sm:$0xf]
  %v891 = vld [vmem:[%s5 + $0xd4] sm:$0xf]
  %v892 = vld [vmem:[%s5 + $0xd8] sm:$0xf]
  %v893 = vld [vmem:[%s5 + $0xdc] sm:$0xf]
  %v894 = vld [vmem:[%s5 + $0xe0] sm:$0xf]
  %v895 = vld [vmem:[%s5 + $0xe4] sm:$0xf]
  %v896 = vld [vmem:[%s5 + $0xe8] sm:$0xf]
  %v897 = vld [vmem:[%s5 + $0xec] sm:$0xf]
  %v898 = vld [vmem:[%s5 + $0xf0] sm:$0xf]
  %v899 = vld [vmem:[%s5 + $0xf4] sm:$0xf]
  %v900 = vld [vmem:[%s5 + $0xf8] sm:$0xf]
  %v901 = vld [vmem:[%s5 + $0xfc] sm:$0xf]
  %v902 = vpack.c.bf16 %v651, %v648
  %v903 = vpack.c.bf16 %v656, %v656
  %v904 = vpack.c.bf16 %v664, %v659
  %v905 = vpack.c.bf16 %v667, %v667
  %v910 = vunpack.c.l.b16 %v842
  %v911 = vunpack.c.l.b16 %v843
  %v912 = vunpack.c.l.b16 %v844
  %v913 = vunpack.c.l.b16 %v845
  %v914 = vpack.c.b16 %v911, %v910
  %v915 = vpack.c.b16 %v913, %v912
  %vm918 = vcmask 261120
  %v920 = vsel %vm918, %v904, 0
  %v923 = vsel %vm918, %v905, 0
  %925 = vmatprep.subr.bf16.mxu0 0
  %926 = vmatpush1.bf16.msra.mxu0 0
  %927 = vmatprep.subr.bf16.mxu0 0
  %928 = vmatpush1.bf16.msra.mxu0 0
  %929 = vmatprep.subr.bf16.mxu0 0
  %930 = vmatpush1.bf16.msra.mxu0 0
  %931 = vmatprep.subr.bf16.mxu0 0
  %932 = vmatpush1.bf16.msra.mxu0 0
  %933 = vmatprep.subr.bf16.mxu0 0
  %934 = vmatpush1.bf16.msra.mxu0 0
  %935 = vmatprep.subr.bf16.mxu0 0
  %936 = vmatpush1.bf16.msra.mxu0 0
  %937 = vmatprep.subr.bf16.mxu0 0
  %938 = vmatpush1.bf16.msra.mxu0 %v915
  %939 = vmatprep.subr.bf16.mxu0 0
  %940 = vmatpush1.bf16.msra.mxu0 %v914
  %941 = vmatprep.subr.bf16.mxu0 0
  %942 = vmatpush2.bf16.msra.mxu0 0
  %943 = vmatprep.subr.bf16.mxu0 0
  %944 = vmatpush2.bf16.msra.mxu0 0
  %945 = vmatprep.subr.bf16.mxu0 0
  %946 = vmatpush2.bf16.msra.mxu0 0
  %947 = vmatprep.subr.bf16.mxu0 0
  %948 = vmatpush2.bf16.msra.mxu0 0
  %949 = vmatprep.subr.bf16.mxu0 0
  %950 = vmatpush2.bf16.msra.mxu0 0
  %951 = vmatprep.subr.bf16.mxu0 0
  %952 = vmatpush2.bf16.msra.mxu0 0
  %953 = vmatprep.subr.bf16.mxu0 0
  %954 = vmatpush2.bf16.msra.mxu0 0
  %955 = vmatprep.subr.bf16.mxu0 0
  %956 = vmatpush2.bf16.msra.mxu0 0
  %957 = vmatprep.mubr.bf16.mxu0 0
  %958 = vmatmul.mubr.bf16.gmra.mxu0 %v920
  %v959 = vpop.f32.mrf.mxu0
  %v960 = vadd.f32 0.0, %v959
  %v961 = vpop.f32.mrf.mxu0
  %v962 = vpop.f32.mrf.mxu0
  %v963 = vadd.f32 0.0, %v962
  %v964 = vpop.f32.mrf.mxu0
  %965 = vmatprep.mubr.bf16.mxu0 0
  %966 = vmatmul.mubr.bf16.gmra.mxu0 %v923
  %v967 = vpop.f32.mrf.mxu0
  %v968 = vadd.f32 0.0, %v967
  %v969 = vpop.f32.mrf.mxu0
  %v970 = vpop.f32.mrf.mxu0
  %v971 = vpop.f32.mrf.mxu0
  %972 = vdwg.mxu0
  %v977 = vunpack.c.l.b16 %v838
  %v978 = vunpack.c.l.b16 %v839
  %v979 = vunpack.c.l.b16 %v840
  %v980 = vunpack.c.l.b16 %v841
  %v981 = vpack.c.b16 %v978, %v977
  %v982 = vpack.c.b16 %v980, %v979
  %v986 = vsel %vm918, %v902, 0
  %v989 = vsel %vm918, %v903, 0
  %991 = vmatprep.subr.bf16.mxu0 0
  %992 = vmatpush1.bf16.msra.mxu0 0
  %993 = vmatprep.subr.bf16.mxu0 0
  %994 = vmatpush1.bf16.msra.mxu0 0
  %995 = vmatprep.subr.bf16.mxu0 0
  %996 = vmatpush1.bf16.msra.mxu0 0
  %997 = vmatprep.subr.bf16.mxu0 0
  %998 = vmatpush1.bf16.msra.mxu0 0
  %999 = vmatprep.subr.bf16.mxu0 0
  %1000 = vmatpush1.bf16.msra.mxu0 0
  %1001 = vmatprep.subr.bf16.mxu0 0
  %1002 = vmatpush1.bf16.msra.mxu0 0
  %1003 = vmatprep.subr.bf16.mxu0 0
  %1004 = vmatpush1.bf16.msra.mxu0 %v982
  %1005 = vmatprep.subr.bf16.mxu0 0
  %1006 = vmatpush1.bf16.msra.mxu0 %v981
  %1007 = vmatprep.subr.bf16.mxu0 0
  %1008 = vmatpush2.bf16.msra.mxu0 0
  %1009 = vmatprep.subr.bf16.mxu0 0
  %1010 = vmatpush2.bf16.msra.mxu0 0
  %1011 = vmatprep.subr.bf16.mxu0 0
  %1012 = vmatpush2.bf16.msra.mxu0 0
  %1013 = vmatprep.subr.bf16.mxu0 0
  %1014 = vmatpush2.bf16.msra.mxu0 0
  %1015 = vmatprep.subr.bf16.mxu0 0
  %1016 = vmatpush2.bf16.msra.mxu0 0
  %1017 = vmatprep.subr.bf16.mxu0 0
  %1018 = vmatpush2.bf16.msra.mxu0 0
  %1019 = vmatprep.subr.bf16.mxu0 0
  %1020 = vmatpush2.bf16.msra.mxu0 0
  %1021 = vmatprep.subr.bf16.mxu0 0
  %1022 = vmatpush2.bf16.msra.mxu0 0
  %1023 = vmatprep.mubr.bf16.mxu0 0
  %1024 = vmatmul.mubr.bf16.gmra.mxu0 %v986
  %v1025 = vpop.f32.mrf.mxu0
  %v1026 = vadd.f32 %v960, %v1025
  %v1027 = vpop.f32.mrf.mxu0
  %v1028 = vpop.f32.mrf.mxu0
  %v1029 = vadd.f32 %v963, %v1028
  %v1030 = vpop.f32.mrf.mxu0
  %1031 = vmatprep.mubr.bf16.mxu0 0
  %1032 = vmatmul.mubr.bf16.gmra.mxu0 %v989
  %v1033 = vpop.f32.mrf.mxu0
  %v1034 = vadd.f32 %v968, %v1033
  %v1035 = vpop.f32.mrf.mxu0
  %v1036 = vpop.f32.mrf.mxu0
  %v1037 = vpop.f32.mrf.mxu0
  %1038 = vdwg.mxu0
  %v1039 = vpack.c.bf16 %v675, %v672
  %v1040 = vpack.c.bf16 %v680, %v680
  %v1045 = vunpack.c.l.b16 %v846
  %v1046 = vunpack.c.l.b16 %v847
  %v1047 = vunpack.c.l.b16 %v848
  %v1048 = vunpack.c.l.b16 %v849
  %v1049 = vpack.c.b16 %v1046, %v1045
  %v1050 = vpack.c.b16 %v1048, %v1047
  %v1054 = vsel %vm918, %v1039, 0
  %v1057 = vsel %vm918, %v1040, 0
  %1059 = vmatprep.subr.bf16.mxu0 0
  %1060 = vmatpush1.bf16.msra.mxu0 0
  %1061 = vmatprep.subr.bf16.mxu0 0
  %1062 = vmatpush1.bf16.msra.mxu0 0
  %1063 = vmatprep.subr.bf16.mxu0 0
  %1064 = vmatpush1.bf16.msra.mxu0 0
  %1065 = vmatprep.subr.bf16.mxu0 0
  %1066 = vmatpush1.bf16.msra.mxu0 0
  %1067 = vmatprep.subr.bf16.mxu0 0
  %1068 = vmatpush1.bf16.msra.mxu0 0
  %1069 = vmatprep.subr.bf16.mxu0 0
  %1070 = vmatpush1.bf16.msra.mxu0 0
  %1071 = vmatprep.subr.bf16.mxu0 0
  %1072 = vmatpush1.bf16.msra.mxu0 %v1050
  %1073 = vmatprep.subr.bf16.mxu0 0
  %1074 = vmatpush1.bf16.msra.mxu0 %v1049
  %1075 = vmatprep.subr.bf16.mxu0 0
  %1076 = vmatpush2.bf16.msra.mxu0 0
  %1077 = vmatprep.subr.bf16.mxu0 0
  %1078 = vmatpush2.bf16.msra.mxu0 0
  %1079 = vmatprep.subr.bf16.mxu0 0
  %1080 = vmatpush2.bf16.msra.mxu0 0
  %1081 = vmatprep.subr.bf16.mxu0 0
  %1082 = vmatpush2.bf16.msra.mxu0 0
  %1083 = vmatprep.subr.bf16.mxu0 0
  %1084 = vmatpush2.bf16.msra.mxu0 0
  %1085 = vmatprep.subr.bf16.mxu0 0
  %1086 = vmatpush2.bf16.msra.mxu0 0
  %1087 = vmatprep.subr.bf16.mxu0 0
  %1088 = vmatpush2.bf16.msra.mxu0 0
  %1089 = vmatprep.subr.bf16.mxu0 0
  %1090 = vmatpush2.bf16.msra.mxu0 0
  %1091 = vmatprep.mubr.bf16.mxu0 0
  %1092 = vmatmul.mubr.bf16.gmra.mxu0 %v1054
  %v1093 = vpop.f32.mrf.mxu0
  %v1094 = vadd.f32 0.0, %v1093
  %v1095 = vpop.f32.mrf.mxu0
  %v1096 = vpop.f32.mrf.mxu0
  %v1097 = vadd.f32 0.0, %v1096
  %v1098 = vpop.f32.mrf.mxu0
  %1099 = vmatprep.mubr.bf16.mxu0 0
  %1100 = vmatmul.mubr.bf16.gmra.mxu0 %v1057
  %v1101 = vpop.f32.mrf.mxu0
  %v1102 = vadd.f32 0.0, %v1101
  %v1103 = vpop.f32.mrf.mxu0
  %v1104 = vpop.f32.mrf.mxu0
  %v1105 = vpop.f32.mrf.mxu0
  %1106 = vdwg.mxu0
  %v1107 = vadd.f32 %v1026, %v1094
  %v1108 = vadd.f32 %v1029, %v1097
  %v1109 = vadd.f32 %v1034, %v1102
  %v1110 = vpack.c.bf16 %v688, %v683
  %v1111 = vpack.c.bf16 %v691, %v691
  %v1116 = vunpack.c.l.b16 %v850
  %v1117 = vunpack.c.l.b16 %v851
  %v1118 = vunpack.c.l.b16 %v852
  %v1119 = vunpack.c.l.b16 %v853
  %v1120 = vpack.c.b16 %v1117, %v1116
  %v1121 = vpack.c.b16 %v1119, %v1118
  %v1125 = vsel %vm918, %v1110, 0
  %v1128 = vsel %vm918, %v1111, 0
  %1130 = vmatprep.subr.bf16.mxu0 0
  %1131 = vmatpush1.bf16.msra.mxu0 0
  %1132 = vmatprep.subr.bf16.mxu0 0
  %1133 = vmatpush1.bf16.msra.mxu0 0
  %1134 = vmatprep.subr.bf16.mxu0 0
  %1135 = vmatpush1.bf16.msra.mxu0 0
  %1136 = vmatprep.subr.bf16.mxu0 0
  %1137 = vmatpush1.bf16.msra.mxu0 0
  %1138 = vmatprep.subr.bf16.mxu0 0
  %1139 = vmatpush1.bf16.msra.mxu0 0
  %1140 = vmatprep.subr.bf16.mxu0 0
  %1141 = vmatpush1.bf16.msra.mxu0 0
  %1142 = vmatprep.subr.bf16.mxu0 0
  %1143 = vmatpush1.bf16.msra.mxu0 %v1121
  %1144 = vmatprep.subr.bf16.mxu0 0
  %1145 = vmatpush1.bf16.msra.mxu0 %v1120
  %1146 = vmatprep.subr.bf16.mxu0 0
  %1147 = vmatpush2.bf16.msra.mxu0 0
  %1148 = vmatprep.subr.bf16.mxu0 0
  %1149 = vmatpush2.bf16.msra.mxu0 0
  %1150 = vmatprep.subr.bf16.mxu0 0
  %1151 = vmatpush2.bf16.msra.mxu0 0
  %1152 = vmatprep.subr.bf16.mxu0 0
  %1153 = vmatpush2.bf16.msra.mxu0 0
  %1154 = vmatprep.subr.bf16.mxu0 0
  %1155 = vmatpush2.bf16.msra.mxu0 0
  %1156 = vmatprep.subr.bf16.mxu0 0
  %1157 = vmatpush2.bf16.msra.mxu0 0
  %1158 = vmatprep.subr.bf16.mxu0 0
  %1159 = vmatpush2.bf16.msra.mxu0 0
  %1160 = vmatprep.subr.bf16.mxu0 0
  %1161 = vmatpush2.bf16.msra.mxu0 0
  %1162 = vmatprep.mubr.bf16.mxu0 0
  %1163 = vmatmul.mubr.bf16.gmra.mxu0 %v1125
  %v1164 = vpop.f32.mrf.mxu0
  %v1165 = vadd.f32 0.0, %v1164
  %v1166 = vpop.f32.mrf.mxu0
  %v1167 = vpop.f32.mrf.mxu0
  %v1168 = vadd.f32 0.0, %v1167
  %v1169 = vpop.f32.mrf.mxu0
  %1170 = vmatprep.mubr.bf16.mxu0 0
  %1171 = vmatmul.mubr.bf16.gmra.mxu0 %v1128
  %v1172 = vpop.f32.mrf.mxu0
  %v1173 = vadd.f32 0.0, %v1172
  %v1174 = vpop.f32.mrf.mxu0
  %v1175 = vpop.f32.mrf.mxu0
  %v1176 = vpop.f32.mrf.mxu0
  %1177 = vdwg.mxu0
  %v1178 = vadd.f32 %v1107, %v1165
  %v1179 = vadd.f32 %v1108, %v1168
  %v1180 = vadd.f32 %v1109, %v1173
  %v1181 = vpack.c.bf16 %v699, %v696
  %v1182 = vpack.c.bf16 %v704, %v704
  %v1187 = vunpack.c.l.b16 %v854
  %v1188 = vunpack.c.l.b16 %v855
  %v1189 = vunpack.c.l.b16 %v856
  %v1190 = vunpack.c.l.b16 %v857
  %v1191 = vpack.c.b16 %v1188, %v1187
  %v1192 = vpack.c.b16 %v1190, %v1189
  %v1196 = vsel %vm918, %v1181, 0
  %v1199 = vsel %vm918, %v1182, 0
  %1201 = vmatprep.subr.bf16.mxu0 0
  %1202 = vmatpush1.bf16.msra.mxu0 0
  %1203 = vmatprep.subr.bf16.mxu0 0
  %1204 = vmatpush1.bf16.msra.mxu0 0
  %1205 = vmatprep.subr.bf16.mxu0 0
  %1206 = vmatpush1.bf16.msra.mxu0 0
  %1207 = vmatprep.subr.bf16.mxu0 0
  %1208 = vmatpush1.bf16.msra.mxu0 0
  %1209 = vmatprep.subr.bf16.mxu0 0
  %1210 = vmatpush1.bf16.msra.mxu0 0
  %1211 = vmatprep.subr.bf16.mxu0 0
  %1212 = vmatpush1.bf16.msra.mxu0 0
  %1213 = vmatprep.subr.bf16.mxu0 0
  %1214 = vmatpush1.bf16.msra.mxu0 %v1192
  %1215 = vmatprep.subr.bf16.mxu0 0
  %1216 = vmatpush1.bf16.msra.mxu0 %v1191
  %1217 = vmatprep.subr.bf16.mxu0 0
  %1218 = vmatpush2.bf16.msra.mxu0 0
  %1219 = vmatprep.subr.bf16.mxu0 0
  %1220 = vmatpush2.bf16.msra.mxu0 0
  %1221 = vmatprep.subr.bf16.mxu0 0
  %1222 = vmatpush2.bf16.msra.mxu0 0
  %1223 = vmatprep.subr.bf16.mxu0 0
  %1224 = vmatpush2.bf16.msra.mxu0 0
  %1225 = vmatprep.subr.bf16.mxu0 0
  %1226 = vmatpush2.bf16.msra.mxu0 0
  %1227 = vmatprep.subr.bf16.mxu0 0
  %1228 = vmatpush2.bf16.msra.mxu0 0
  %1229 = vmatprep.subr.bf16.mxu0 0
  %1230 = vmatpush2.bf16.msra.mxu0 0
  %1231 = vmatprep.subr.bf16.mxu0 0
  %1232 = vmatpush2.bf16.msra.mxu0 0
  %1233 = vmatprep.mubr.bf16.mxu0 0
  %1234 = vmatmul.mubr.bf16.gmra.mxu0 %v1196
  %v1235 = vpop.f32.mrf.mxu0
  %v1236 = vadd.f32 0.0, %v1235
  %v1237 = vpop.f32.mrf.mxu0
  %v1238 = vpop.f32.mrf.mxu0
  %v1239 = vadd.f32 0.0, %v1238
  %v1240 = vpop.f32.mrf.mxu0
  %1241 = vmatprep.mubr.bf16.mxu0 0
  %1242 = vmatmul.mubr.bf16.gmra.mxu0 %v1199
  %v1243 = vpop.f32.mrf.mxu0
  %v1244 = vadd.f32 0.0, %v1243
  %v1245 = vpop.f32.mrf.mxu0
  %v1246 = vpop.f32.mrf.mxu0
  %v1247 = vpop.f32.mrf.mxu0
  %1248 = vdwg.mxu0
  %v1249 = vadd.f32 %v1178, %v1236
  %v1250 = vadd.f32 %v1179, %v1239
  %v1251 = vadd.f32 %v1180, %v1244
  %v1252 = vpack.c.bf16 %v712, %v707
  %v1253 = vpack.c.bf16 %v715, %v715
  %v1258 = vunpack.c.l.b16 %v858
  %v1259 = vunpack.c.l.b16 %v859
  %v1260 = vunpack.c.l.b16 %v860
  %v1261 = vunpack.c.l.b16 %v861
  %v1262 = vpack.c.b16 %v1259, %v1258
  %v1263 = vpack.c.b16 %v1261, %v1260
  %v1267 = vsel %vm918, %v1252, 0
  %v1270 = vsel %vm918, %v1253, 0
  %1272 = vmatprep.subr.bf16.mxu0 0
  %1273 = vmatpush1.bf16.msra.mxu0 0
  %1274 = vmatprep.subr.bf16.mxu0 0
  %1275 = vmatpush1.bf16.msra.mxu0 0
  %1276 = vmatprep.subr.bf16.mxu0 0
  %1277 = vmatpush1.bf16.msra.mxu0 0
  %1278 = vmatprep.subr.bf16.mxu0 0
  %1279 = vmatpush1.bf16.msra.mxu0 0
  %1280 = vmatprep.subr.bf16.mxu0 0
  %1281 = vmatpush1.bf16.msra.mxu0 0
  %1282 = vmatprep.subr.bf16.mxu0 0
  %1283 = vmatpush1.bf16.msra.mxu0 0
  %1284 = vmatprep.subr.bf16.mxu0 0
  %1285 = vmatpush1.bf16.msra.mxu0 %v1263
  %1286 = vmatprep.subr.bf16.mxu0 0
  %1287 = vmatpush1.bf16.msra.mxu0 %v1262
  %1288 = vmatprep.subr.bf16.mxu0 0
  %1289 = vmatpush2.bf16.msra.mxu0 0
  %1290 = vmatprep.subr.bf16.mxu0 0
  %1291 = vmatpush2.bf16.msra.mxu0 0
  %1292 = vmatprep.subr.bf16.mxu0 0
  %1293 = vmatpush2.bf16.msra.mxu0 0
  %1294 = vmatprep.subr.bf16.mxu0 0
  %1295 = vmatpush2.bf16.msra.mxu0 0
  %1296 = vmatprep.subr.bf16.mxu0 0
  %1297 = vmatpush2.bf16.msra.mxu0 0
  %1298 = vmatprep.subr.bf16.mxu0 0
  %1299 = vmatpush2.bf16.msra.mxu0 0
  %1300 = vmatprep.subr.bf16.mxu0 0
  %1301 = vmatpush2.bf16.msra.mxu0 0
  %1302 = vmatprep.subr.bf16.mxu0 0
  %1303 = vmatpush2.bf16.msra.mxu0 0
  %1304 = vmatprep.mubr.bf16.mxu0 0
  %1305 = vmatmul.mubr.bf16.gmra.mxu0 %v1267
  %v1306 = vpop.f32.mrf.mxu0
  %v1307 = vadd.f32 0.0, %v1306
  %v1308 = vpop.f32.mrf.mxu0
  %v1309 = vpop.f32.mrf.mxu0
  %v1310 = vadd.f32 0.0, %v1309
  %v1311 = vpop.f32.mrf.mxu0
  %1312 = vmatprep.mubr.bf16.mxu0 0
  %1313 = vmatmul.mubr.bf16.gmra.mxu0 %v1270
  %v1314 = vpop.f32.mrf.mxu0
  %v1315 = vadd.f32 0.0, %v1314
  %v1316 = vpop.f32.mrf.mxu0
  %v1317 = vpop.f32.mrf.mxu0
  %v1318 = vpop.f32.mrf.mxu0
  %1319 = vdwg.mxu0
  %v1320 = vadd.f32 %v1249, %v1307
  %v1321 = vadd.f32 %v1250, %v1310
  %v1322 = vadd.f32 %v1251, %v1315
  %v1323 = vpack.c.bf16 %v723, %v720
  %v1324 = vpack.c.bf16 %v728, %v728
  %v1329 = vunpack.c.l.b16 %v862
  %v1330 = vunpack.c.l.b16 %v863
  %v1331 = vunpack.c.l.b16 %v864
  %v1332 = vunpack.c.l.b16 %v865
  %v1333 = vpack.c.b16 %v1330, %v1329
  %v1334 = vpack.c.b16 %v1332, %v1331
  %v1338 = vsel %vm918, %v1323, 0
  %v1341 = vsel %vm918, %v1324, 0
  %1343 = vmatprep.subr.bf16.mxu0 0
  %1344 = vmatpush1.bf16.msra.mxu0 0
  %1345 = vmatprep.subr.bf16.mxu0 0
  %1346 = vmatpush1.bf16.msra.mxu0 0
  %1347 = vmatprep.subr.bf16.mxu0 0
  %1348 = vmatpush1.bf16.msra.mxu0 0
  %1349 = vmatprep.subr.bf16.mxu0 0
  %1350 = vmatpush1.bf16.msra.mxu0 0
  %1351 = vmatprep.subr.bf16.mxu0 0
  %1352 = vmatpush1.bf16.msra.mxu0 0
  %1353 = vmatprep.subr.bf16.mxu0 0
  %1354 = vmatpush1.bf16.msra.mxu0 0
  %1355 = vmatprep.subr.bf16.mxu0 0
  %1356 = vmatpush1.bf16.msra.mxu0 %v1334
  %1357 = vmatprep.subr.bf16.mxu0 0
  %1358 = vmatpush1.bf16.msra.mxu0 %v1333
  %1359 = vmatprep.subr.bf16.mxu0 0
  %1360 = vmatpush2.bf16.msra.mxu0 0
  %1361 = vmatprep.subr.bf16.mxu0 0
  %1362 = vmatpush2.bf16.msra.mxu0 0
  %1363 = vmatprep.subr.bf16.mxu0 0
  %1364 = vmatpush2.bf16.msra.mxu0 0
  %1365 = vmatprep.subr.bf16.mxu0 0
  %1366 = vmatpush2.bf16.msra.mxu0 0
  %1367 = vmatprep.subr.bf16.mxu0 0
  %1368 = vmatpush2.bf16.msra.mxu0 0
  %1369 = vmatprep.subr.bf16.mxu0 0
  %1370 = vmatpush2.bf16.msra.mxu0 0
  %1371 = vmatprep.subr.bf16.mxu0 0
  %1372 = vmatpush2.bf16.msra.mxu0 0
  %1373 = vmatprep.subr.bf16.mxu0 0
  %1374 = vmatpush2.bf16.msra.mxu0 0
  %1375 = vmatprep.mubr.bf16.mxu0 0
  %1376 = vmatmul.mubr.bf16.gmra.mxu0 %v1338
  %v1377 = vpop.f32.mrf.mxu0
  %v1378 = vadd.f32 0.0, %v1377
  %v1379 = vpop.f32.mrf.mxu0
  %v1380 = vpop.f32.mrf.mxu0
  %v1381 = vadd.f32 0.0, %v1380
  %v1382 = vpop.f32.mrf.mxu0
  %1383 = vmatprep.mubr.bf16.mxu0 0
  %1384 = vmatmul.mubr.bf16.gmra.mxu0 %v1341
  %v1385 = vpop.f32.mrf.mxu0
  %v1386 = vadd.f32 0.0, %v1385
  %v1387 = vpop.f32.mrf.mxu0
  %v1388 = vpop.f32.mrf.mxu0
  %v1389 = vpop.f32.mrf.mxu0
  %1390 = vdwg.mxu0
  %v1391 = vadd.f32 %v1320, %v1378
  %v1392 = vadd.f32 %v1321, %v1381
  %v1393 = vadd.f32 %v1322, %v1386
  %v1394 = vpack.c.bf16 %v736, %v731
  %v1395 = vpack.c.bf16 %v739, %v739
  %v1400 = vunpack.c.l.b16 %v866
  %v1401 = vunpack.c.l.b16 %v867
  %v1402 = vunpack.c.l.b16 %v868
  %v1403 = vunpack.c.l.b16 %v869
  %v1404 = vpack.c.b16 %v1401, %v1400
  %v1405 = vpack.c.b16 %v1403, %v1402
  %v1409 = vsel %vm918, %v1394, 0
  %v1412 = vsel %vm918, %v1395, 0
  %1414 = vmatprep.subr.bf16.mxu0 0
  %1415 = vmatpush1.bf16.msra.mxu0 0
  %1416 = vmatprep.subr.bf16.mxu0 0
  %1417 = vmatpush1.bf16.msra.mxu0 0
  %1418 = vmatprep.subr.bf16.mxu0 0
  %1419 = vmatpush1.bf16.msra.mxu0 0
  %1420 = vmatprep.subr.bf16.mxu0 0
  %1421 = vmatpush1.bf16.msra.mxu0 0
  %1422 = vmatprep.subr.bf16.mxu0 0
  %1423 = vmatpush1.bf16.msra.mxu0 0
  %1424 = vmatprep.subr.bf16.mxu0 0
  %1425 = vmatpush1.bf16.msra.mxu0 0
  %1426 = vmatprep.subr.bf16.mxu0 0
  %1427 = vmatpush1.bf16.msra.mxu0 %v1405
  %1428 = vmatprep.subr.bf16.mxu0 0
  %1429 = vmatpush1.bf16.msra.mxu0 %v1404
  %1430 = vmatprep.subr.bf16.mxu0 0
  %1431 = vmatpush2.bf16.msra.mxu0 0
  %1432 = vmatprep.subr.bf16.mxu0 0
  %1433 = vmatpush2.bf16.msra.mxu0 0
  %1434 = vmatprep.subr.bf16.mxu0 0
  %1435 = vmatpush2.bf16.msra.mxu0 0
  %1436 = vmatprep.subr.bf16.mxu0 0
  %1437 = vmatpush2.bf16.msra.mxu0 0
  %1438 = vmatprep.subr.bf16.mxu0 0
  %1439 = vmatpush2.bf16.msra.mxu0 0
  %1440 = vmatprep.subr.bf16.mxu0 0
  %1441 = vmatpush2.bf16.msra.mxu0 0
  %1442 = vmatprep.subr.bf16.mxu0 0
  %1443 = vmatpush2.bf16.msra.mxu0 0
  %1444 = vmatprep.subr.bf16.mxu0 0
  %1445 = vmatpush2.bf16.msra.mxu0 0
  %1446 = vmatprep.mubr.bf16.mxu0 0
  %1447 = vmatmul.mubr.bf16.gmra.mxu0 %v1409
  %v1448 = vpop.f32.mrf.mxu0
  %v1449 = vadd.f32 0.0, %v1448
  %v1450 = vpop.f32.mrf.mxu0
  %v1451 = vpop.f32.mrf.mxu0
  %v1452 = vadd.f32 0.0, %v1451
  %v1453 = vpop.f32.mrf.mxu0
  %1454 = vmatprep.mubr.bf16.mxu0 0
  %1455 = vmatmul.mubr.bf16.gmra.mxu0 %v1412
  %v1456 = vpop.f32.mrf.mxu0
  %v1457 = vadd.f32 0.0, %v1456
  %v1458 = vpop.f32.mrf.mxu0
  %v1459 = vpop.f32.mrf.mxu0
  %v1460 = vpop.f32.mrf.mxu0
  %1461 = vdwg.mxu0
  %v1462 = vadd.f32 %v1391, %v1449
  %v1463 = vadd.f32 %v1392, %v1452
  %v1464 = vadd.f32 %v1393, %v1457
  %v1465 = vpack.c.bf16 %v747, %v744
  %v1466 = vpack.c.bf16 %v752, %v752
  %v1471 = vunpack.c.l.b16 %v870
  %v1472 = vunpack.c.l.b16 %v871
  %v1473 = vunpack.c.l.b16 %v872
  %v1474 = vunpack.c.l.b16 %v873
  %v1475 = vpack.c.b16 %v1472, %v1471
  %v1476 = vpack.c.b16 %v1474, %v1473
  %v1480 = vsel %vm918, %v1465, 0
  %v1483 = vsel %vm918, %v1466, 0
  %1485 = vmatprep.subr.bf16.mxu0 0
  %1486 = vmatpush1.bf16.msra.mxu0 0
  %1487 = vmatprep.subr.bf16.mxu0 0
  %1488 = vmatpush1.bf16.msra.mxu0 0
  %1489 = vmatprep.subr.bf16.mxu0 0
  %1490 = vmatpush1.bf16.msra.mxu0 0
  %1491 = vmatprep.subr.bf16.mxu0 0
  %1492 = vmatpush1.bf16.msra.mxu0 0
  %1493 = vmatprep.subr.bf16.mxu0 0
  %1494 = vmatpush1.bf16.msra.mxu0 0
  %1495 = vmatprep.subr.bf16.mxu0 0
  %1496 = vmatpush1.bf16.msra.mxu0 0
  %1497 = vmatprep.subr.bf16.mxu0 0
  %1498 = vmatpush1.bf16.msra.mxu0 %v1476
  %1499 = vmatprep.subr.bf16.mxu0 0
  %1500 = vmatpush1.bf16.msra.mxu0 %v1475
  %1501 = vmatprep.subr.bf16.mxu0 0
  %1502 = vmatpush2.bf16.msra.mxu0 0
  %1503 = vmatprep.subr.bf16.mxu0 0
  %1504 = vmatpush2.bf16.msra.mxu0 0
  %1505 = vmatprep.subr.bf16.mxu0 0
  %1506 = vmatpush2.bf16.msra.mxu0 0
  %1507 = vmatprep.subr.bf16.mxu0 0
  %1508 = vmatpush2.bf16.msra.mxu0 0
  %1509 = vmatprep.subr.bf16.mxu0 0
  %1510 = vmatpush2.bf16.msra.mxu0 0
  %1511 = vmatprep.subr.bf16.mxu0 0
  %1512 = vmatpush2.bf16.msra.mxu0 0
  %1513 = vmatprep.subr.bf16.mxu0 0
  %1514 = vmatpush2.bf16.msra.mxu0 0
  %1515 = vmatprep.subr.bf16.mxu0 0
  %1516 = vmatpush2.bf16.msra.mxu0 0
  %1517 = vmatprep.mubr.bf16.mxu0 0
  %1518 = vmatmul.mubr.bf16.gmra.mxu0 %v1480
  %v1519 = vpop.f32.mrf.mxu0
  %v1520 = vadd.f32 0.0, %v1519
  %v1521 = vpop.f32.mrf.mxu0
  %v1522 = vpop.f32.mrf.mxu0
  %v1523 = vadd.f32 0.0, %v1522
  %v1524 = vpop.f32.mrf.mxu0
  %1525 = vmatprep.mubr.bf16.mxu0 0
  %1526 = vmatmul.mubr.bf16.gmra.mxu0 %v1483
  %v1527 = vpop.f32.mrf.mxu0
  %v1528 = vadd.f32 0.0, %v1527
  %v1529 = vpop.f32.mrf.mxu0
  %v1530 = vpop.f32.mrf.mxu0
  %v1531 = vpop.f32.mrf.mxu0
  %1532 = vdwg.mxu0
  %v1533 = vadd.f32 %v1462, %v1520
  %v1534 = vadd.f32 %v1463, %v1523
  %v1535 = vadd.f32 %v1464, %v1528
  %v1536 = vpack.c.bf16 %v760, %v755
  %v1537 = vpack.c.bf16 %v763, %v763
  %v1542 = vunpack.c.l.b16 %v874
  %v1543 = vunpack.c.l.b16 %v875
  %v1544 = vunpack.c.l.b16 %v876
  %v1545 = vunpack.c.l.b16 %v877
  %v1546 = vpack.c.b16 %v1543, %v1542
  %v1547 = vpack.c.b16 %v1545, %v1544
  %v1551 = vsel %vm918, %v1536, 0
  %v1554 = vsel %vm918, %v1537, 0
  %1556 = vmatprep.subr.bf16.mxu0 0
  %1557 = vmatpush1.bf16.msra.mxu0 0
  %1558 = vmatprep.subr.bf16.mxu0 0
  %1559 = vmatpush1.bf16.msra.mxu0 0
  %1560 = vmatprep.subr.bf16.mxu0 0
  %1561 = vmatpush1.bf16.msra.mxu0 0
  %1562 = vmatprep.subr.bf16.mxu0 0
  %1563 = vmatpush1.bf16.msra.mxu0 0
  %1564 = vmatprep.subr.bf16.mxu0 0
  %1565 = vmatpush1.bf16.msra.mxu0 0
  %1566 = vmatprep.subr.bf16.mxu0 0
  %1567 = vmatpush1.bf16.msra.mxu0 0
  %1568 = vmatprep.subr.bf16.mxu0 0
  %1569 = vmatpush1.bf16.msra.mxu0 %v1547
  %1570 = vmatprep.subr.bf16.mxu0 0
  %1571 = vmatpush1.bf16.msra.mxu0 %v1546
  %1572 = vmatprep.subr.bf16.mxu0 0
  %1573 = vmatpush2.bf16.msra.mxu0 0
  %1574 = vmatprep.subr.bf16.mxu0 0
  %1575 = vmatpush2.bf16.msra.mxu0 0
  %1576 = vmatprep.subr.bf16.mxu0 0
  %1577 = vmatpush2.bf16.msra.mxu0 0
  %1578 = vmatprep.subr.bf16.mxu0 0
  %1579 = vmatpush2.bf16.msra.mxu0 0
  %1580 = vmatprep.subr.bf16.mxu0 0
  %1581 = vmatpush2.bf16.msra.mxu0 0
  %1582 = vmatprep.subr.bf16.mxu0 0
  %1583 = vmatpush2.bf16.msra.mxu0 0
  %1584 = vmatprep.subr.bf16.mxu0 0
  %1585 = vmatpush2.bf16.msra.mxu0 0
  %1586 = vmatprep.subr.bf16.mxu0 0
  %1587 = vmatpush2.bf16.msra.mxu0 0
  %1588 = vmatprep.mubr.bf16.mxu0 0
  %1589 = vmatmul.mubr.bf16.gmra.mxu0 %v1551
  %v1590 = vpop.f32.mrf.mxu0
  %v1591 = vadd.f32 0.0, %v1590
  %v1592 = vpop.f32.mrf.mxu0
  %v1593 = vpop.f32.mrf.mxu0
  %v1594 = vadd.f32 0.0, %v1593
  %v1595 = vpop.f32.mrf.mxu0
  %1596 = vmatprep.mubr.bf16.mxu0 0
  %1597 = vmatmul.mubr.bf16.gmra.mxu0 %v1554
  %v1598 = vpop.f32.mrf.mxu0
  %v1599 = vadd.f32 0.0, %v1598
  %v1600 = vpop.f32.mrf.mxu0
  %v1601 = vpop.f32.mrf.mxu0
  %v1602 = vpop.f32.mrf.mxu0
  %1603 = vdwg.mxu0
  %v1604 = vadd.f32 %v1533, %v1591
  %v1605 = vadd.f32 %v1534, %v1594
  %v1606 = vadd.f32 %v1535, %v1599
  %v1607 = vpack.c.bf16 %v771, %v768
  %v1608 = vpack.c.bf16 %v776, %v776
  %v1613 = vunpack.c.l.b16 %v878
  %v1614 = vunpack.c.l.b16 %v879
  %v1615 = vunpack.c.l.b16 %v880
  %v1616 = vunpack.c.l.b16 %v881
  %v1617 = vpack.c.b16 %v1614, %v1613
  %v1618 = vpack.c.b16 %v1616, %v1615
  %v1622 = vsel %vm918, %v1607, 0
  %v1625 = vsel %vm918, %v1608, 0
  %1627 = vmatprep.subr.bf16.mxu0 0
  %1628 = vmatpush1.bf16.msra.mxu0 0
  %1629 = vmatprep.subr.bf16.mxu0 0
  %1630 = vmatpush1.bf16.msra.mxu0 0
  %1631 = vmatprep.subr.bf16.mxu0 0
  %1632 = vmatpush1.bf16.msra.mxu0 0
  %1633 = vmatprep.subr.bf16.mxu0 0
  %1634 = vmatpush1.bf16.msra.mxu0 0
  %1635 = vmatprep.subr.bf16.mxu0 0
  %1636 = vmatpush1.bf16.msra.mxu0 0
  %1637 = vmatprep.subr.bf16.mxu0 0
  %1638 = vmatpush1.bf16.msra.mxu0 0
  %1639 = vmatprep.subr.bf16.mxu0 0
  %1640 = vmatpush1.bf16.msra.mxu0 %v1618
  %1641 = vmatprep.subr.bf16.mxu0 0
  %1642 = vmatpush1.bf16.msra.mxu0 %v1617
  %1643 = vmatprep.subr.bf16.mxu0 0
  %1644 = vmatpush2.bf16.msra.mxu0 0
  %1645 = vmatprep.subr.bf16.mxu0 0
  %1646 = vmatpush2.bf16.msra.mxu0 0
  %1647 = vmatprep.subr.bf16.mxu0 0
  %1648 = vmatpush2.bf16.msra.mxu0 0
  %1649 = vmatprep.subr.bf16.mxu0 0
  %1650 = vmatpush2.bf16.msra.mxu0 0
  %1651 = vmatprep.subr.bf16.mxu0 0
  %1652 = vmatpush2.bf16.msra.mxu0 0
  %1653 = vmatprep.subr.bf16.mxu0 0
  %1654 = vmatpush2.bf16.msra.mxu0 0
  %1655 = vmatprep.subr.bf16.mxu0 0
  %1656 = vmatpush2.bf16.msra.mxu0 0
  %1657 = vmatprep.subr.bf16.mxu0 0
  %1658 = vmatpush2.bf16.msra.mxu0 0
  %1659 = vmatprep.mubr.bf16.mxu0 0
  %1660 = vmatmul.mubr.bf16.gmra.mxu0 %v1622
  %v1661 = vpop.f32.mrf.mxu0
  %v1662 = vadd.f32 0.0, %v1661
  %v1663 = vpop.f32.mrf.mxu0
  %v1664 = vpop.f32.mrf.mxu0
  %v1665 = vadd.f32 0.0, %v1664
  %v1666 = vpop.f32.mrf.mxu0
  %1667 = vmatprep.mubr.bf16.mxu0 0
  %1668 = vmatmul.mubr.bf16.gmra.mxu0 %v1625
  %v1669 = vpop.f32.mrf.mxu0
  %v1670 = vadd.f32 0.0, %v1669
  %v1671 = vpop.f32.mrf.mxu0
  %v1672 = vpop.f32.mrf.mxu0
  %v1673 = vpop.f32.mrf.mxu0
  %1674 = vdwg.mxu0
  %v1675 = vadd.f32 %v1604, %v1662
  %v1676 = vadd.f32 %v1605, %v1665
  %v1677 = vadd.f32 %v1606, %v1670
  %v1678 = vpack.c.bf16 %v784, %v779
  %v1679 = vpack.c.bf16 %v787, %v787
  %v1684 = vunpack.c.l.b16 %v882
  %v1685 = vunpack.c.l.b16 %v883
  %v1686 = vunpack.c.l.b16 %v884
  %v1687 = vunpack.c.l.b16 %v885
  %v1688 = vpack.c.b16 %v1685, %v1684
  %v1689 = vpack.c.b16 %v1687, %v1686
  %v1693 = vsel %vm918, %v1678, 0
  %v1696 = vsel %vm918, %v1679, 0
  %1698 = vmatprep.subr.bf16.mxu0 0
  %1699 = vmatpush1.bf16.msra.mxu0 0
  %1700 = vmatprep.subr.bf16.mxu0 0
  %1701 = vmatpush1.bf16.msra.mxu0 0
  %1702 = vmatprep.subr.bf16.mxu0 0
  %1703 = vmatpush1.bf16.msra.mxu0 0
  %1704 = vmatprep.subr.bf16.mxu0 0
  %1705 = vmatpush1.bf16.msra.mxu0 0
  %1706 = vmatprep.subr.bf16.mxu0 0
  %1707 = vmatpush1.bf16.msra.mxu0 0
  %1708 = vmatprep.subr.bf16.mxu0 0
  %1709 = vmatpush1.bf16.msra.mxu0 0
  %1710 = vmatprep.subr.bf16.mxu0 0
  %1711 = vmatpush1.bf16.msra.mxu0 %v1689
  %1712 = vmatprep.subr.bf16.mxu0 0
  %1713 = vmatpush1.bf16.msra.mxu0 %v1688
  %1714 = vmatprep.subr.bf16.mxu0 0
  %1715 = vmatpush2.bf16.msra.mxu0 0
  %1716 = vmatprep.subr.bf16.mxu0 0
  %1717 = vmatpush2.bf16.msra.mxu0 0
  %1718 = vmatprep.subr.bf16.mxu0 0
  %1719 = vmatpush2.bf16.msra.mxu0 0
  %1720 = vmatprep.subr.bf16.mxu0 0
  %1721 = vmatpush2.bf16.msra.mxu0 0
  %1722 = vmatprep.subr.bf16.mxu0 0
  %1723 = vmatpush2.bf16.msra.mxu0 0
  %1724 = vmatprep.subr.bf16.mxu0 0
  %1725 = vmatpush2.bf16.msra.mxu0 0
  %1726 = vmatprep.subr.bf16.mxu0 0
  %1727 = vmatpush2.bf16.msra.mxu0 0
  %1728 = vmatprep.subr.bf16.mxu0 0
  %1729 = vmatpush2.bf16.msra.mxu0 0
  %1730 = vmatprep.mubr.bf16.mxu0 0
  %1731 = vmatmul.mubr.bf16.gmra.mxu0 %v1693
  %v1732 = vpop.f32.mrf.mxu0
  %v1733 = vadd.f32 0.0, %v1732
  %v1734 = vpop.f32.mrf.mxu0
  %v1735 = vpop.f32.mrf.mxu0
  %v1736 = vadd.f32 0.0, %v1735
  %v1737 = vpop.f32.mrf.mxu0
  %1738 = vmatprep.mubr.bf16.mxu0 0
  %1739 = vmatmul.mubr.bf16.gmra.mxu0 %v1696
  %v1740 = vpop.f32.mrf.mxu0
  %v1741 = vadd.f32 0.0, %v1740
  %v1742 = vpop.f32.mrf.mxu0
  %v1743 = vpop.f32.mrf.mxu0
  %v1744 = vpop.f32.mrf.mxu0
  %1745 = vdwg.mxu0
  %v1746 = vadd.f32 %v1675, %v1733
  %v1747 = vadd.f32 %v1676, %v1736
  %v1748 = vadd.f32 %v1677, %v1741
  %v1749 = vpack.c.bf16 %v795, %v792
  %v1750 = vpack.c.bf16 %v800, %v800
  %v1755 = vunpack.c.l.b16 %v886
  %v1756 = vunpack.c.l.b16 %v887
  %v1757 = vunpack.c.l.b16 %v888
  %v1758 = vunpack.c.l.b16 %v889
  %v1759 = vpack.c.b16 %v1756, %v1755
  %v1760 = vpack.c.b16 %v1758, %v1757
  %v1764 = vsel %vm918, %v1749, 0
  %v1767 = vsel %vm918, %v1750, 0
  %1769 = vmatprep.subr.bf16.mxu0 0
  %1770 = vmatpush1.bf16.msra.mxu0 0
  %1771 = vmatprep.subr.bf16.mxu0 0
  %1772 = vmatpush1.bf16.msra.mxu0 0
  %1773 = vmatprep.subr.bf16.mxu0 0
  %1774 = vmatpush1.bf16.msra.mxu0 0
  %1775 = vmatprep.subr.bf16.mxu0 0
  %1776 = vmatpush1.bf16.msra.mxu0 0
  %1777 = vmatprep.subr.bf16.mxu0 0
  %1778 = vmatpush1.bf16.msra.mxu0 0
  %1779 = vmatprep.subr.bf16.mxu0 0
  %1780 = vmatpush1.bf16.msra.mxu0 0
  %1781 = vmatprep.subr.bf16.mxu0 0
  %1782 = vmatpush1.bf16.msra.mxu0 %v1760
  %1783 = vmatprep.subr.bf16.mxu0 0
  %1784 = vmatpush1.bf16.msra.mxu0 %v1759
  %1785 = vmatprep.subr.bf16.mxu0 0
  %1786 = vmatpush2.bf16.msra.mxu0 0
  %1787 = vmatprep.subr.bf16.mxu0 0
  %1788 = vmatpush2.bf16.msra.mxu0 0
  %1789 = vmatprep.subr.bf16.mxu0 0
  %1790 = vmatpush2.bf16.msra.mxu0 0
  %1791 = vmatprep.subr.bf16.mxu0 0
  %1792 = vmatpush2.bf16.msra.mxu0 0
  %1793 = vmatprep.subr.bf16.mxu0 0
  %1794 = vmatpush2.bf16.msra.mxu0 0
  %1795 = vmatprep.subr.bf16.mxu0 0
  %1796 = vmatpush2.bf16.msra.mxu0 0
  %1797 = vmatprep.subr.bf16.mxu0 0
  %1798 = vmatpush2.bf16.msra.mxu0 0
  %1799 = vmatprep.subr.bf16.mxu0 0
  %1800 = vmatpush2.bf16.msra.mxu0 0
  %1801 = vmatprep.mubr.bf16.mxu0 0
  %1802 = vmatmul.mubr.bf16.gmra.mxu0 %v1764
  %v1803 = vpop.f32.mrf.mxu0
  %v1804 = vadd.f32 0.0, %v1803
  %v1805 = vpop.f32.mrf.mxu0
  %v1806 = vpop.f32.mrf.mxu0
  %v1807 = vadd.f32 0.0, %v1806
  %v1808 = vpop.f32.mrf.mxu0
  %1809 = vmatprep.mubr.bf16.mxu0 0
  %1810 = vmatmul.mubr.bf16.gmra.mxu0 %v1767
  %v1811 = vpop.f32.mrf.mxu0
  %v1812 = vadd.f32 0.0, %v1811
  %v1813 = vpop.f32.mrf.mxu0
  %v1814 = vpop.f32.mrf.mxu0
  %v1815 = vpop.f32.mrf.mxu0
  %1816 = vdwg.mxu0
  %v1817 = vadd.f32 %v1746, %v1804
  %v1818 = vadd.f32 %v1747, %v1807
  %v1819 = vadd.f32 %v1748, %v1812
  %v1820 = vpack.c.bf16 %v808, %v803
  %v1821 = vpack.c.bf16 %v811, %v811
  %v1826 = vunpack.c.l.b16 %v890
  %v1827 = vunpack.c.l.b16 %v891
  %v1828 = vunpack.c.l.b16 %v892
  %v1829 = vunpack.c.l.b16 %v893
  %v1830 = vpack.c.b16 %v1827, %v1826
  %v1831 = vpack.c.b16 %v1829, %v1828
  %v1835 = vsel %vm918, %v1820, 0
  %v1838 = vsel %vm918, %v1821, 0
  %1840 = vmatprep.subr.bf16.mxu0 0
  %1841 = vmatpush1.bf16.msra.mxu0 0
  %1842 = vmatprep.subr.bf16.mxu0 0
  %1843 = vmatpush1.bf16.msra.mxu0 0
  %1844 = vmatprep.subr.bf16.mxu0 0
  %1845 = vmatpush1.bf16.msra.mxu0 0
  %1846 = vmatprep.subr.bf16.mxu0 0
  %1847 = vmatpush1.bf16.msra.mxu0 0
  %1848 = vmatprep.subr.bf16.mxu0 0
  %1849 = vmatpush1.bf16.msra.mxu0 0
  %1850 = vmatprep.subr.bf16.mxu0 0
  %1851 = vmatpush1.bf16.msra.mxu0 0
  %1852 = vmatprep.subr.bf16.mxu0 0
  %1853 = vmatpush1.bf16.msra.mxu0 %v1831
  %1854 = vmatprep.subr.bf16.mxu0 0
  %1855 = vmatpush1.bf16.msra.mxu0 %v1830
  %1856 = vmatprep.subr.bf16.mxu0 0
  %1857 = vmatpush2.bf16.msra.mxu0 0
  %1858 = vmatprep.subr.bf16.mxu0 0
  %1859 = vmatpush2.bf16.msra.mxu0 0
  %1860 = vmatprep.subr.bf16.mxu0 0
  %1861 = vmatpush2.bf16.msra.mxu0 0
  %1862 = vmatprep.subr.bf16.mxu0 0
  %1863 = vmatpush2.bf16.msra.mxu0 0
  %1864 = vmatprep.subr.bf16.mxu0 0
  %1865 = vmatpush2.bf16.msra.mxu0 0
  %1866 = vmatprep.subr.bf16.mxu0 0
  %1867 = vmatpush2.bf16.msra.mxu0 0
  %1868 = vmatprep.subr.bf16.mxu0 0
  %1869 = vmatpush2.bf16.msra.mxu0 0
  %1870 = vmatprep.subr.bf16.mxu0 0
  %1871 = vmatpush2.bf16.msra.mxu0 0
  %1872 = vmatprep.mubr.bf16.mxu0 0
  %1873 = vmatmul.mubr.bf16.gmra.mxu0 %v1835
  %v1874 = vpop.f32.mrf.mxu0
  %v1875 = vadd.f32 0.0, %v1874
  %v1876 = vpop.f32.mrf.mxu0
  %v1877 = vpop.f32.mrf.mxu0
  %v1878 = vadd.f32 0.0, %v1877
  %v1879 = vpop.f32.mrf.mxu0
  %1880 = vmatprep.mubr.bf16.mxu0 0
  %1881 = vmatmul.mubr.bf16.gmra.mxu0 %v1838
  %v1882 = vpop.f32.mrf.mxu0
  %v1883 = vadd.f32 0.0, %v1882
  %v1884 = vpop.f32.mrf.mxu0
  %v1885 = vpop.f32.mrf.mxu0
  %v1886 = vpop.f32.mrf.mxu0
  %1887 = vdwg.mxu0
  %v1888 = vadd.f32 %v1817, %v1875
  %v1889 = vadd.f32 %v1818, %v1878
  %v1890 = vadd.f32 %v1819, %v1883
  %v1891 = vpack.c.bf16 %v819, %v816
  %v1892 = vpack.c.bf16 %v824, %v824
  %v1897 = vunpack.c.l.b16 %v894
  %v1898 = vunpack.c.l.b16 %v895
  %v1899 = vunpack.c.l.b16 %v896
  %v1900 = vunpack.c.l.b16 %v897
  %v1901 = vpack.c.b16 %v1898, %v1897
  %v1902 = vpack.c.b16 %v1900, %v1899
  %v1906 = vsel %vm918, %v1891, 0
  %v1909 = vsel %vm918, %v1892, 0
  %1911 = vmatprep.subr.bf16.mxu0 0
  %1912 = vmatpush1.bf16.msra.mxu0 0
  %1913 = vmatprep.subr.bf16.mxu0 0
  %1914 = vmatpush1.bf16.msra.mxu0 0
  %1915 = vmatprep.subr.bf16.mxu0 0
  %1916 = vmatpush1.bf16.msra.mxu0 0
  %1917 = vmatprep.subr.bf16.mxu0 0
  %1918 = vmatpush1.bf16.msra.mxu0 0
  %1919 = vmatprep.subr.bf16.mxu0 0
  %1920 = vmatpush1.bf16.msra.mxu0 0
  %1921 = vmatprep.subr.bf16.mxu0 0
  %1922 = vmatpush1.bf16.msra.mxu0 0
  %1923 = vmatprep.subr.bf16.mxu0 0
  %1924 = vmatpush1.bf16.msra.mxu0 %v1902
  %1925 = vmatprep.subr.bf16.mxu0 0
  %1926 = vmatpush1.bf16.msra.mxu0 %v1901
  %1927 = vmatprep.subr.bf16.mxu0 0
  %1928 = vmatpush2.bf16.msra.mxu0 0
  %1929 = vmatprep.subr.bf16.mxu0 0
  %1930 = vmatpush2.bf16.msra.mxu0 0
  %1931 = vmatprep.subr.bf16.mxu0 0
  %1932 = vmatpush2.bf16.msra.mxu0 0
  %1933 = vmatprep.subr.bf16.mxu0 0
  %1934 = vmatpush2.bf16.msra.mxu0 0
  %1935 = vmatprep.subr.bf16.mxu0 0
  %1936 = vmatpush2.bf16.msra.mxu0 0
  %1937 = vmatprep.subr.bf16.mxu0 0
  %1938 = vmatpush2.bf16.msra.mxu0 0
  %1939 = vmatprep.subr.bf16.mxu0 0
  %1940 = vmatpush2.bf16.msra.mxu0 0
  %1941 = vmatprep.subr.bf16.mxu0 0
  %1942 = vmatpush2.bf16.msra.mxu0 0
  %1943 = vmatprep.mubr.bf16.mxu0 0
  %1944 = vmatmul.mubr.bf16.gmra.mxu0 %v1906
  %v1945 = vpop.f32.mrf.mxu0
  %v1946 = vadd.f32 0.0, %v1945
  %v1947 = vpop.f32.mrf.mxu0
  %v1948 = vpop.f32.mrf.mxu0
  %v1949 = vadd.f32 0.0, %v1948
  %v1950 = vpop.f32.mrf.mxu0
  %1951 = vmatprep.mubr.bf16.mxu0 0
  %1952 = vmatmul.mubr.bf16.gmra.mxu0 %v1909
  %v1953 = vpop.f32.mrf.mxu0
  %v1954 = vadd.f32 0.0, %v1953
  %v1955 = vpop.f32.mrf.mxu0
  %v1956 = vpop.f32.mrf.mxu0
  %v1957 = vpop.f32.mrf.mxu0
  %1958 = vdwg.mxu0
  %v1959 = vadd.f32 %v1888, %v1946
  %v1960 = vadd.f32 %v1889, %v1949
  %v1961 = vadd.f32 %v1890, %v1954
  %v1962 = vpack.c.bf16 %v832, %v827
  %v1963 = vpack.c.bf16 %v835, %v835
  %v1968 = vunpack.c.l.b16 %v898
  %v1969 = vunpack.c.l.b16 %v899
  %v1970 = vunpack.c.l.b16 %v900
  %v1971 = vunpack.c.l.b16 %v901
  %v1972 = vpack.c.b16 %v1969, %v1968
  %v1973 = vpack.c.b16 %v1971, %v1970
  %v1977 = vsel %vm918, %v1962, 0
  %v1980 = vsel %vm918, %v1963, 0
  %1982 = vmatprep.subr.bf16.mxu0 0
  %1983 = vmatpush1.bf16.msra.mxu0 0
  %1984 = vmatprep.subr.bf16.mxu0 0
  %1985 = vmatpush1.bf16.msra.mxu0 0
  %1986 = vmatprep.subr.bf16.mxu0 0
  %1987 = vmatpush1.bf16.msra.mxu0 0
  %1988 = vmatprep.subr.bf16.mxu0 0
  %1989 = vmatpush1.bf16.msra.mxu0 0
  %1990 = vmatprep.subr.bf16.mxu0 0
  %1991 = vmatpush1.bf16.msra.mxu0 0
  %1992 = vmatprep.subr.bf16.mxu0 0
  %1993 = vmatpush1.bf16.msra.mxu0 0
  %1994 = vmatprep.subr.bf16.mxu0 0
  %1995 = vmatpush1.bf16.msra.mxu0 %v1973
  %1996 = vmatprep.subr.bf16.mxu0 0
  %1997 = vmatpush1.bf16.msra.mxu0 %v1972
  %1998 = vmatprep.subr.bf16.mxu0 0
  %1999 = vmatpush2.bf16.msra.mxu0 0
  %2000 = vmatprep.subr.bf16.mxu0 0
  %2001 = vmatpush2.bf16.msra.mxu0 0
  %2002 = vmatprep.subr.bf16.mxu0 0
  %2003 = vmatpush2.bf16.msra.mxu0 0
  %2004 = vmatprep.subr.bf16.mxu0 0
  %2005 = vmatpush2.bf16.msra.mxu0 0
  %2006 = vmatprep.subr.bf16.mxu0 0
  %2007 = vmatpush2.bf16.msra.mxu0 0
  %2008 = vmatprep.subr.bf16.mxu0 0
  %2009 = vmatpush2.bf16.msra.mxu0 0
  %2010 = vmatprep.subr.bf16.mxu0 0
  %2011 = vmatpush2.bf16.msra.mxu0 0
  %2012 = vmatprep.subr.bf16.mxu0 0
  %2013 = vmatpush2.bf16.msra.mxu0 0
  %2014 = vmatprep.mubr.bf16.mxu0 0
  %2015 = vmatmul.mubr.bf16.gmra.mxu0 %v1977
  %v2016 = vpop.f32.mrf.mxu0
  %v2017 = vadd.f32 0.0, %v2016
  %v2018 = vpop.f32.mrf.mxu0
  %v2019 = vpop.f32.mrf.mxu0
  %v2020 = vadd.f32 0.0, %v2019
  %v2021 = vpop.f32.mrf.mxu0
  %2022 = vmatprep.mubr.bf16.mxu0 0
  %2023 = vmatmul.mubr.bf16.gmra.mxu0 %v1980
  %v2024 = vpop.f32.mrf.mxu0
  %v2025 = vadd.f32 0.0, %v2024
  %v2026 = vpop.f32.mrf.mxu0
  %v2027 = vpop.f32.mrf.mxu0
  %v2028 = vpop.f32.mrf.mxu0
  %2029 = vdwg.mxu0
  %v2030 = vadd.f32 %v1959, %v2017
  %v2031 = vadd.f32 %v1960, %v2020
  %v2032 = vadd.f32 %v1961, %v2025
  %v2033 = vld [vmem:[%s6] sm:$0x1]
  %v2035 = vlaneseq
  %v2036 = vshrl.u32 %v2035, 7
  %v2037 = vsub.s32 0, %v2036
  %v2038 = vrot.slane %v2033, %v2037
  %v2040 = vadd.f32 %v2030, %v2038
  %v2041 = vadd.f32 %v2031, %v2038
  %v2042 = vadd.f32 %v2032, %v2038
  %v2043 = vmax.f32 %v2040, 0.0
  %v2044 = vmax.f32 %v2041, 0.0
  %v2045 = vmax.f32 %v2042, 0.0
  %v2046 = vpack.c.bf16 %v2044, %v2043
  %v2047 = vpack.c.bf16 %v2045, %v2045
  %v2048 = vld [vmem:[%s2] sm:$0xf]
  %v2049 = vld [vmem:[%s2 + $0x4] sm:$0xf]
  %v2050 = vld [vmem:[%s2 + $0x8] sm:$0xf]
  %v2051 = vld [vmem:[%s2 + $0xc] sm:$0xf]
  %v2052 = vld [vmem:[%s2 + $0x10] sm:$0xf]
  %v2053 = vld [vmem:[%s2 + $0x14] sm:$0xf]
  %v2054 = vld [vmem:[%s2 + $0x18] sm:$0xf]
  %v2055 = vld [vmem:[%s2 + $0x1c] sm:$0xf]
  %v2056 = vld [vmem:[%s2 + $0x20] sm:$0xf]
  %v2066 = vunpack.c.l.b16 %v2048
  %v2067 = vunpack.c.l.b16 %v2049
  %v2068 = vunpack.c.l.b16 %v2050
  %v2069 = vunpack.c.l.b16 %v2051
  %v2070 = vunpack.c.l.b16 %v2052
  %v2071 = vunpack.c.l.b16 %v2053
  %v2072 = vunpack.c.l.b16 %v2054
  %v2073 = vunpack.c.l.b16 %v2055
  %v2074 = vunpack.c.l.b16 %v2056
  %v2075 = vpack.c.b16 %v2067, %v2066
  %v2076 = vpack.c.b16 %v2069, %v2068
  %v2077 = vpack.c.b16 %v2071, %v2070
  %v2078 = vpack.c.b16 %v2073, %v2072
  %v2079 = vpack.c.b16 %v2074, %v2074
  %vm2080 = vcmask 195584
  %v2082 = vsel %vm2080, %v2075, 0
  %v2085 = vsel %vm2080, %v2076, 0
  %v2088 = vsel %vm2080, %v2077, 0
  %v2091 = vsel %vm2080, %v2078, 0
  %v2094 = vsel %vm2080, %v2079, 0
  %vm2096 = vcmask 1043456
  %v2098 = vsel %vm2096, %v2047, 0
  %2100 = vmatprep.subr.bf16.mxu0 0
  %2101 = vmatpush1.bf16.msra.mxu0 0
  %2102 = vmatprep.subr.bf16.mxu0 0
  %2103 = vmatpush1.bf16.msra.mxu0 0
  %2104 = vmatprep.subr.bf16.mxu0 0
  %2105 = vmatpush1.bf16.msra.mxu0 0
  %2106 = vmatprep.subr.bf16.mxu0 0
  %2107 = vmatpush1.bf16.msra.mxu0 0
  %2108 = vmatprep.subr.bf16.mxu0 0
  %2109 = vmatpush1.bf16.msra.mxu0 0
  %2110 = vmatprep.subr.bf16.mxu0 0
  %2111 = vmatpush1.bf16.msra.mxu0 0
  %2112 = vmatprep.subr.bf16.mxu0 0
  %2113 = vmatpush1.bf16.msra.mxu0 %v2098
  %2114 = vmatprep.subr.bf16.mxu0 0
  %2115 = vmatpush1.bf16.msra.mxu0 %v2046
  %2116 = vmatprep.subr.bf16.mxu0 0
  %2117 = vmatpush2.bf16.msra.mxu0 0
  %2118 = vmatprep.subr.bf16.mxu0 0
  %2119 = vmatpush2.bf16.msra.mxu0 0
  %2120 = vmatprep.subr.bf16.mxu0 0
  %2121 = vmatpush2.bf16.msra.mxu0 0
  %2122 = vmatprep.subr.bf16.mxu0 0
  %2123 = vmatpush2.bf16.msra.mxu0 0
  %2124 = vmatprep.subr.bf16.mxu0 0
  %2125 = vmatpush2.bf16.msra.mxu0 0
  %2126 = vmatprep.subr.bf16.mxu0 0
  %2127 = vmatpush2.bf16.msra.mxu0 0
  %2128 = vmatprep.subr.bf16.mxu0 0
  %2129 = vmatpush2.bf16.msra.mxu0 0
  %2130 = vmatprep.subr.bf16.mxu0 0
  %2131 = vmatpush2.bf16.msra.mxu0 0
  %2132 = vmatprep.mubr.bf16.mxu0 0
  %2133 = vmatmul.mubr.bf16.gmra.mxu0 %v2082
  %v2134 = vpop.f32.mrf.mxu0
  %v2135 = vadd.f32 0.0, %v2134
  %v2136 = vpop.f32.mrf.mxu0
  %v2137 = vpop.f32.mrf.mxu0
  %v2138 = vadd.f32 0.0, %v2137
  %v2139 = vpop.f32.mrf.mxu0
  %2140 = vmatprep.mubr.bf16.mxu0 0
  %2141 = vmatmul.mubr.bf16.gmra.mxu0 %v2085
  %v2142 = vpop.f32.mrf.mxu0
  %v2143 = vadd.f32 0.0, %v2142
  %v2144 = vpop.f32.mrf.mxu0
  %v2145 = vpop.f32.mrf.mxu0
  %v2146 = vadd.f32 0.0, %v2145
  %v2147 = vpop.f32.mrf.mxu0
  %2148 = vmatprep.mubr.bf16.mxu0 0
  %2149 = vmatmul.mubr.bf16.gmra.mxu0 %v2088
  %v2150 = vpop.f32.mrf.mxu0
  %v2151 = vadd.f32 0.0, %v2150
  %v2152 = vpop.f32.mrf.mxu0
  %v2153 = vpop.f32.mrf.mxu0
  %v2154 = vadd.f32 0.0, %v2153
  %v2155 = vpop.f32.mrf.mxu0
  %2156 = vmatprep.mubr.bf16.mxu0 0
  %2157 = vmatmul.mubr.bf16.gmra.mxu0 %v2091
  %v2158 = vpop.f32.mrf.mxu0
  %v2159 = vadd.f32 0.0, %v2158
  %v2160 = vpop.f32.mrf.mxu0
  %v2161 = vpop.f32.mrf.mxu0
  %v2162 = vadd.f32 0.0, %v2161
  %v2163 = vpop.f32.mrf.mxu0
  %2164 = vmatprep.mubr.bf16.mxu0 0
  %2165 = vmatmul.mubr.bf16.gmra.mxu0 %v2094
  %v2166 = vpop.f32.mrf.mxu0
  %v2167 = vadd.f32 0.0, %v2166
  %v2168 = vpop.f32.mrf.mxu0
  %v2169 = vpop.f32.mrf.mxu0
  %v2170 = vpop.f32.mrf.mxu0
  %2171 = vdwg.mxu0
  %v2172 = vld [vmem:[%s7] sm:$0xf]
  %v2173 = vld [vmem:[%s7 + $0x4] sm:$0xf]
  %v2174 = vld [vmem:[%s7 + $0x8] sm:$0xf]
  %v2175 = vld [vmem:[%s7 + $0xc] sm:$0xf]
  %v2176 = vld [vmem:[%s7 + $0x10] sm:$0xf]
  %v2177 = vld [vmem:[%s7 + $0x14] sm:$0xf]
  %v2178 = vld [vmem:[%s7 + $0x18] sm:$0xf]
  %v2179 = vld [vmem:[%s7 + $0x1c] sm:$0xf]
  %v2180 = vld [vmem:[%s7 + $0x20] sm:$0xf]
  %v2181 = vld [vmem:[%s7 + $0x24] sm:$0xf]
  %v2182 = vld [vmem:[%s7 + $0x28] sm:$0xf]
  %v2183 = vld [vmem:[%s7 + $0x2c] sm:$0xf]
  %v2184 = vld [vmem:[%s7 + $0x30] sm:$0xf]
  %v2185 = vld [vmem:[%s7 + $0x34] sm:$0xf]
  %v2186 = vld [vmem:[%s7 + $0x38] sm:$0xf]
  %v2187 = vld [vmem:[%s7 + $0x3c] sm:$0xf]
  %v2188 = vld [vmem:[%s7 + $0x40] sm:$0xf]
  %v2189 = vld [vmem:[%s7 + $0x44] sm:$0xf]
  %v2190 = vld [vmem:[%s7 + $0x48] sm:$0xf]
  %v2191 = vld [vmem:[%s7 + $0x4c] sm:$0xf]
  %v2192 = vld [vmem:[%s7 + $0x50] sm:$0xf]
  %v2193 = vld [vmem:[%s7 + $0x54] sm:$0xf]
  %v2194 = vld [vmem:[%s7 + $0x58] sm:$0xf]
  %v2195 = vld [vmem:[%s7 + $0x5c] sm:$0xf]
  %v2196 = vld [vmem:[%s7 + $0x60] sm:$0xf]
  %v2197 = vld [vmem:[%s7 + $0x64] sm:$0xf]
  %v2198 = vld [vmem:[%s7 + $0x68] sm:$0xf]
  %v2199 = vld [vmem:[%s7 + $0x6c] sm:$0xf]
  %v2200 = vld [vmem:[%s7 + $0x70] sm:$0xf]
  %v2201 = vld [vmem:[%s7 + $0x74] sm:$0xf]
  %v2202 = vld [vmem:[%s7 + $0x78] sm:$0xf]
  %v2203 = vld [vmem:[%s7 + $0x7c] sm:$0xf]
  %v2204 = vld [vmem:[%s7 + $0x80] sm:$0xf]
  %v2205 = vld [vmem:[%s7 + $0x84] sm:$0xf]
  %v2206 = vld [vmem:[%s7 + $0x88] sm:$0xf]
  %v2207 = vld [vmem:[%s7 + $0x8c] sm:$0xf]
  %v2208 = vld [vmem:[%s7 + $0x90] sm:$0xf]
  %v2209 = vld [vmem:[%s7 + $0x94] sm:$0xf]
  %v2210 = vld [vmem:[%s7 + $0x98] sm:$0xf]
  %v2211 = vld [vmem:[%s7 + $0x9c] sm:$0xf]
  %v2212 = vld [vmem:[%s7 + $0xa0] sm:$0xf]
  %v2213 = vld [vmem:[%s7 + $0xa4] sm:$0xf]
  %v2214 = vld [vmem:[%s7 + $0xa8] sm:$0xf]
  %v2215 = vld [vmem:[%s7 + $0xac] sm:$0xf]
  %v2216 = vld [vmem:[%s7 + $0xb0] sm:$0xf]
  %v2217 = vld [vmem:[%s7 + $0xb4] sm:$0xf]
  %v2218 = vld [vmem:[%s7 + $0xb8] sm:$0xf]
  %v2219 = vld [vmem:[%s7 + $0xbc] sm:$0xf]
  %v2220 = vld [vmem:[%s7 + $0xc0] sm:$0xf]
  %v2221 = vld [vmem:[%s7 + $0xc4] sm:$0xf]
  %v2222 = vld [vmem:[%s7 + $0xc8] sm:$0xf]
  %v2223 = vld [vmem:[%s7 + $0xcc] sm:$0xf]
  %v2224 = vld [vmem:[%s7 + $0xd0] sm:$0xf]
  %v2225 = vld [vmem:[%s7 + $0xd4] sm:$0xf]
  %v2226 = vld [vmem:[%s7 + $0xd8] sm:$0xf]
  %v2227 = vld [vmem:[%s7 + $0xdc] sm:$0xf]
  %v2228 = vld [vmem:[%s7 + $0xe0] sm:$0xf]
  %v2229 = vld [vmem:[%s7 + $0xe4] sm:$0xf]
  %v2230 = vld [vmem:[%s7 + $0xe8] sm:$0xf]
  %v2231 = vld [vmem:[%s7 + $0xec] sm:$0xf]
  %v2232 = vld [vmem:[%s7 + $0xf0] sm:$0xf]
  %v2233 = vld [vmem:[%s7 + $0xf4] sm:$0xf]
  %v2234 = vld [vmem:[%s7 + $0xf8] sm:$0xf]
  %v2235 = vld [vmem:[%s7 + $0xfc] sm:$0xf]
  %v2236 = vld [vmem:[%s7 + $0x100] sm:$0xf]
  %v2237 = vld [vmem:[%s7 + $0x104] sm:$0xf]
  %v2238 = vld [vmem:[%s7 + $0x108] sm:$0xf]
  %v2239 = vld [vmem:[%s7 + $0x10c] sm:$0xf]
  %v2240 = vld [vmem:[%s7 + $0x110] sm:$0xf]
  %v2241 = vld [vmem:[%s7 + $0x114] sm:$0xf]
  %v2242 = vld [vmem:[%s7 + $0x118] sm:$0xf]
  %v2243 = vld [vmem:[%s7 + $0x11c] sm:$0xf]
  %v2244 = vpack.c.bf16 %v2135, %v2135
  %v2245 = vpack.c.bf16 %v2138, %v2138
  %v2254 = vunpack.c.l.b16 %v2180
  %v2255 = vunpack.c.l.b16 %v2181
  %v2256 = vunpack.c.l.b16 %v2182
  %v2257 = vunpack.c.l.b16 %v2183
  %v2258 = vunpack.c.l.b16 %v2184
  %v2259 = vunpack.c.l.b16 %v2185
  %v2260 = vunpack.c.l.b16 %v2186
  %v2261 = vunpack.c.l.b16 %v2187
  %v2262 = vpack.c.b16 %v2255, %v2254
  %v2263 = vpack.c.b16 %v2257, %v2256
  %v2264 = vpack.c.b16 %v2259, %v2258
  %v2265 = vpack.c.b16 %v2261, %v2260
  %vm2270 = vcmask 523264
  %v2272 = vsel %vm2270, %v2245, 0
  %2274 = vmatprep.subr.bf16.mxu0 0
  %2275 = vmatpush1.bf16.msra.mxu0 0
  %2276 = vmatprep.subr.bf16.mxu0 0
  %2277 = vmatpush1.bf16.msra.mxu0 0
  %2278 = vmatprep.subr.bf16.mxu0 0
  %2279 = vmatpush1.bf16.msra.mxu0 0
  %2280 = vmatprep.subr.bf16.mxu0 0
  %2281 = vmatpush1.bf16.msra.mxu0 0
  %2282 = vmatprep.subr.bf16.mxu0 0
  %2283 = vmatpush1.bf16.msra.mxu0 %v2265
  %2284 = vmatprep.subr.bf16.mxu0 0
  %2285 = vmatpush1.bf16.msra.mxu0 %v2264
  %2286 = vmatprep.subr.bf16.mxu0 0
  %2287 = vmatpush1.bf16.msra.mxu0 %v2263
  %2288 = vmatprep.subr.bf16.mxu0 0
  %2289 = vmatpush1.bf16.msra.mxu0 %v2262
  %2290 = vmatprep.subr.bf16.mxu0 0
  %2291 = vmatpush2.bf16.msra.mxu0 0
  %2292 = vmatprep.subr.bf16.mxu0 0
  %2293 = vmatpush2.bf16.msra.mxu0 0
  %2294 = vmatprep.subr.bf16.mxu0 0
  %2295 = vmatpush2.bf16.msra.mxu0 0
  %2296 = vmatprep.subr.bf16.mxu0 0
  %2297 = vmatpush2.bf16.msra.mxu0 0
  %2298 = vmatprep.subr.bf16.mxu0 0
  %2299 = vmatpush2.bf16.msra.mxu0 0
  %2300 = vmatprep.subr.bf16.mxu0 0
  %2301 = vmatpush2.bf16.msra.mxu0 0
  %2302 = vmatprep.subr.bf16.mxu0 0
  %2303 = vmatpush2.bf16.msra.mxu0 0
  %2304 = vmatprep.subr.bf16.mxu0 0
  %2305 = vmatpush2.bf16.msra.mxu0 0
  %2306 = vmatprep.mubr.bf16.mxu0 0
  %2307 = vmatmul.mubr.bf16.gmra.mxu0 %v2272
  %v2308 = vpop.f32.mrf.mxu0
  %v2309 = vadd.f32 0.0, %v2308
  %v2310 = vpop.f32.mrf.mxu0
  %v2311 = vpop.f32.mrf.mxu0
  %v2312 = vpop.f32.mrf.mxu0
  %2313 = vdwg.mxu0
  %v2322 = vunpack.c.l.b16 %v2172
  %v2323 = vunpack.c.l.b16 %v2173
  %v2324 = vunpack.c.l.b16 %v2174
  %v2325 = vunpack.c.l.b16 %v2175
  %v2326 = vunpack.c.l.b16 %v2176
  %v2327 = vunpack.c.l.b16 %v2177
  %v2328 = vunpack.c.l.b16 %v2178
  %v2329 = vunpack.c.l.b16 %v2179
  %v2330 = vpack.c.b16 %v2323, %v2322
  %v2331 = vpack.c.b16 %v2325, %v2324
  %v2332 = vpack.c.b16 %v2327, %v2326
  %v2333 = vpack.c.b16 %v2329, %v2328
  %v2339 = vsel %vm2270, %v2244, 0
  %2341 = vmatprep.subr.bf16.mxu0 0
  %2342 = vmatpush1.bf16.msra.mxu0 0
  %2343 = vmatprep.subr.bf16.mxu0 0
  %2344 = vmatpush1.bf16.msra.mxu0 0
  %2345 = vmatprep.subr.bf16.mxu0 0
  %2346 = vmatpush1.bf16.msra.mxu0 0
  %2347 = vmatprep.subr.bf16.mxu0 0
  %2348 = vmatpush1.bf16.msra.mxu0 0
  %2349 = vmatprep.subr.bf16.mxu0 0
  %2350 = vmatpush1.bf16.msra.mxu0 %v2333
  %2351 = vmatprep.subr.bf16.mxu0 0
  %2352 = vmatpush1.bf16.msra.mxu0 %v2332
  %2353 = vmatprep.subr.bf16.mxu0 0
  %2354 = vmatpush1.bf16.msra.mxu0 %v2331
  %2355 = vmatprep.subr.bf16.mxu0 0
  %2356 = vmatpush1.bf16.msra.mxu0 %v2330
  %2357 = vmatprep.subr.bf16.mxu0 0
  %2358 = vmatpush2.bf16.msra.mxu0 0
  %2359 = vmatprep.subr.bf16.mxu0 0
  %2360 = vmatpush2.bf16.msra.mxu0 0
  %2361 = vmatprep.subr.bf16.mxu0 0
  %2362 = vmatpush2.bf16.msra.mxu0 0
  %2363 = vmatprep.subr.bf16.mxu0 0
  %2364 = vmatpush2.bf16.msra.mxu0 0
  %2365 = vmatprep.subr.bf16.mxu0 0
  %2366 = vmatpush2.bf16.msra.mxu0 0
  %2367 = vmatprep.subr.bf16.mxu0 0
  %2368 = vmatpush2.bf16.msra.mxu0 0
  %2369 = vmatprep.subr.bf16.mxu0 0
  %2370 = vmatpush2.bf16.msra.mxu0 0
  %2371 = vmatprep.subr.bf16.mxu0 0
  %2372 = vmatpush2.bf16.msra.mxu0 0
  %2373 = vmatprep.mubr.bf16.mxu0 0
  %2374 = vmatmul.mubr.bf16.gmra.mxu0 %v2339
  %v2375 = vpop.f32.mrf.mxu0
  %v2376 = vadd.f32 %v2309, %v2375
  %v2377 = vpop.f32.mrf.mxu0
  %v2378 = vpop.f32.mrf.mxu0
  %v2379 = vpop.f32.mrf.mxu0
  %2380 = vdwg.mxu0
  %v2381 = vpack.c.bf16 %v2143, %v2143
  %v2390 = vunpack.c.l.b16 %v2188
  %v2391 = vunpack.c.l.b16 %v2189
  %v2392 = vunpack.c.l.b16 %v2190
  %v2393 = vunpack.c.l.b16 %v2191
  %v2394 = vunpack.c.l.b16 %v2192
  %v2395 = vunpack.c.l.b16 %v2193
  %v2396 = vunpack.c.l.b16 %v2194
  %v2397 = vunpack.c.l.b16 %v2195
  %v2398 = vpack.c.b16 %v2391, %v2390
  %v2399 = vpack.c.b16 %v2393, %v2392
  %v2400 = vpack.c.b16 %v2395, %v2394
  %v2401 = vpack.c.b16 %v2397, %v2396
  %v2407 = vsel %vm2270, %v2381, 0
  %2409 = vmatprep.subr.bf16.mxu0 0
  %2410 = vmatpush1.bf16.msra.mxu0 0
  %2411 = vmatprep.subr.bf16.mxu0 0
  %2412 = vmatpush1.bf16.msra.mxu0 0
  %2413 = vmatprep.subr.bf16.mxu0 0
  %2414 = vmatpush1.bf16.msra.mxu0 0
  %2415 = vmatprep.subr.bf16.mxu0 0
  %2416 = vmatpush1.bf16.msra.mxu0 0
  %2417 = vmatprep.subr.bf16.mxu0 0
  %2418 = vmatpush1.bf16.msra.mxu0 %v2401
  %2419 = vmatprep.subr.bf16.mxu0 0
  %2420 = vmatpush1.bf16.msra.mxu0 %v2400
  %2421 = vmatprep.subr.bf16.mxu0 0
  %2422 = vmatpush1.bf16.msra.mxu0 %v2399
  %2423 = vmatprep.subr.bf16.mxu0 0
  %2424 = vmatpush1.bf16.msra.mxu0 %v2398
  %2425 = vmatprep.subr.bf16.mxu0 0
  %2426 = vmatpush2.bf16.msra.mxu0 0
  %2427 = vmatprep.subr.bf16.mxu0 0
  %2428 = vmatpush2.bf16.msra.mxu0 0
  %2429 = vmatprep.subr.bf16.mxu0 0
  %2430 = vmatpush2.bf16.msra.mxu0 0
  %2431 = vmatprep.subr.bf16.mxu0 0
  %2432 = vmatpush2.bf16.msra.mxu0 0
  %2433 = vmatprep.subr.bf16.mxu0 0
  %2434 = vmatpush2.bf16.msra.mxu0 0
  %2435 = vmatprep.subr.bf16.mxu0 0
  %2436 = vmatpush2.bf16.msra.mxu0 0
  %2437 = vmatprep.subr.bf16.mxu0 0
  %2438 = vmatpush2.bf16.msra.mxu0 0
  %2439 = vmatprep.subr.bf16.mxu0 0
  %2440 = vmatpush2.bf16.msra.mxu0 0
  %2441 = vmatprep.mubr.bf16.mxu0 0
  %2442 = vmatmul.mubr.bf16.gmra.mxu0 %v2407
  %v2443 = vpop.f32.mrf.mxu0
  %v2444 = vadd.f32 0.0, %v2443
  %v2445 = vpop.f32.mrf.mxu0
  %v2446 = vpop.f32.mrf.mxu0
  %v2447 = vpop.f32.mrf.mxu0
  %2448 = vdwg.mxu0
  %v2449 = vadd.f32 %v2376, %v2444
  %v2450 = vpack.c.bf16 %v2146, %v2146
  %v2459 = vunpack.c.l.b16 %v2196
  %v2460 = vunpack.c.l.b16 %v2197
  %v2461 = vunpack.c.l.b16 %v2198
  %v2462 = vunpack.c.l.b16 %v2199
  %v2463 = vunpack.c.l.b16 %v2200
  %v2464 = vunpack.c.l.b16 %v2201
  %v2465 = vunpack.c.l.b16 %v2202
  %v2466 = vunpack.c.l.b16 %v2203
  %v2467 = vpack.c.b16 %v2460, %v2459
  %v2468 = vpack.c.b16 %v2462, %v2461
  %v2469 = vpack.c.b16 %v2464, %v2463
  %v2470 = vpack.c.b16 %v2466, %v2465
  %v2476 = vsel %vm2270, %v2450, 0
  %2478 = vmatprep.subr.bf16.mxu0 0
  %2479 = vmatpush1.bf16.msra.mxu0 0
  %2480 = vmatprep.subr.bf16.mxu0 0
  %2481 = vmatpush1.bf16.msra.mxu0 0
  %2482 = vmatprep.subr.bf16.mxu0 0
  %2483 = vmatpush1.bf16.msra.mxu0 0
  %2484 = vmatprep.subr.bf16.mxu0 0
  %2485 = vmatpush1.bf16.msra.mxu0 0
  %2486 = vmatprep.subr.bf16.mxu0 0
  %2487 = vmatpush1.bf16.msra.mxu0 %v2470
  %2488 = vmatprep.subr.bf16.mxu0 0
  %2489 = vmatpush1.bf16.msra.mxu0 %v2469
  %2490 = vmatprep.subr.bf16.mxu0 0
  %2491 = vmatpush1.bf16.msra.mxu0 %v2468
  %2492 = vmatprep.subr.bf16.mxu0 0
  %2493 = vmatpush1.bf16.msra.mxu0 %v2467
  %2494 = vmatprep.subr.bf16.mxu0 0
  %2495 = vmatpush2.bf16.msra.mxu0 0
  %2496 = vmatprep.subr.bf16.mxu0 0
  %2497 = vmatpush2.bf16.msra.mxu0 0
  %2498 = vmatprep.subr.bf16.mxu0 0
  %2499 = vmatpush2.bf16.msra.mxu0 0
  %2500 = vmatprep.subr.bf16.mxu0 0
  %2501 = vmatpush2.bf16.msra.mxu0 0
  %2502 = vmatprep.subr.bf16.mxu0 0
  %2503 = vmatpush2.bf16.msra.mxu0 0
  %2504 = vmatprep.subr.bf16.mxu0 0
  %2505 = vmatpush2.bf16.msra.mxu0 0
  %2506 = vmatprep.subr.bf16.mxu0 0
  %2507 = vmatpush2.bf16.msra.mxu0 0
  %2508 = vmatprep.subr.bf16.mxu0 0
  %2509 = vmatpush2.bf16.msra.mxu0 0
  %2510 = vmatprep.mubr.bf16.mxu0 0
  %2511 = vmatmul.mubr.bf16.gmra.mxu0 %v2476
  %v2512 = vpop.f32.mrf.mxu0
  %v2513 = vadd.f32 0.0, %v2512
  %v2514 = vpop.f32.mrf.mxu0
  %v2515 = vpop.f32.mrf.mxu0
  %v2516 = vpop.f32.mrf.mxu0
  %2517 = vdwg.mxu0
  %v2518 = vadd.f32 %v2449, %v2513
  %v2519 = vpack.c.bf16 %v2151, %v2151
  %v2528 = vunpack.c.l.b16 %v2204
  %v2529 = vunpack.c.l.b16 %v2205
  %v2530 = vunpack.c.l.b16 %v2206
  %v2531 = vunpack.c.l.b16 %v2207
  %v2532 = vunpack.c.l.b16 %v2208
  %v2533 = vunpack.c.l.b16 %v2209
  %v2534 = vunpack.c.l.b16 %v2210
  %v2535 = vunpack.c.l.b16 %v2211
  %v2536 = vpack.c.b16 %v2529, %v2528
  %v2537 = vpack.c.b16 %v2531, %v2530
  %v2538 = vpack.c.b16 %v2533, %v2532
  %v2539 = vpack.c.b16 %v2535, %v2534
  %v2545 = vsel %vm2270, %v2519, 0
  %2547 = vmatprep.subr.bf16.mxu0 0
  %2548 = vmatpush1.bf16.msra.mxu0 0
  %2549 = vmatprep.subr.bf16.mxu0 0
  %2550 = vmatpush1.bf16.msra.mxu0 0
  %2551 = vmatprep.subr.bf16.mxu0 0
  %2552 = vmatpush1.bf16.msra.mxu0 0
  %2553 = vmatprep.subr.bf16.mxu0 0
  %2554 = vmatpush1.bf16.msra.mxu0 0
  %2555 = vmatprep.subr.bf16.mxu0 0
  %2556 = vmatpush1.bf16.msra.mxu0 %v2539
  %2557 = vmatprep.subr.bf16.mxu0 0
  %2558 = vmatpush1.bf16.msra.mxu0 %v2538
  %2559 = vmatprep.subr.bf16.mxu0 0
  %2560 = vmatpush1.bf16.msra.mxu0 %v2537
  %2561 = vmatprep.subr.bf16.mxu0 0
  %2562 = vmatpush1.bf16.msra.mxu0 %v2536
  %2563 = vmatprep.subr.bf16.mxu0 0
  %2564 = vmatpush2.bf16.msra.mxu0 0
  %2565 = vmatprep.subr.bf16.mxu0 0
  %2566 = vmatpush2.bf16.msra.mxu0 0
  %2567 = vmatprep.subr.bf16.mxu0 0
  %2568 = vmatpush2.bf16.msra.mxu0 0
  %2569 = vmatprep.subr.bf16.mxu0 0
  %2570 = vmatpush2.bf16.msra.mxu0 0
  %2571 = vmatprep.subr.bf16.mxu0 0
  %2572 = vmatpush2.bf16.msra.mxu0 0
  %2573 = vmatprep.subr.bf16.mxu0 0
  %2574 = vmatpush2.bf16.msra.mxu0 0
  %2575 = vmatprep.subr.bf16.mxu0 0
  %2576 = vmatpush2.bf16.msra.mxu0 0
  %2577 = vmatprep.subr.bf16.mxu0 0
  %2578 = vmatpush2.bf16.msra.mxu0 0
  %2579 = vmatprep.mubr.bf16.mxu0 0
  %2580 = vmatmul.mubr.bf16.gmra.mxu0 %v2545
  %v2581 = vpop.f32.mrf.mxu0
  %v2582 = vadd.f32 0.0, %v2581
  %v2583 = vpop.f32.mrf.mxu0
  %v2584 = vpop.f32.mrf.mxu0
  %v2585 = vpop.f32.mrf.mxu0
  %2586 = vdwg.mxu0
  %v2587 = vadd.f32 %v2518, %v2582
  %v2588 = vpack.c.bf16 %v2154, %v2154
  %v2597 = vunpack.c.l.b16 %v2212
  %v2598 = vunpack.c.l.b16 %v2213
  %v2599 = vunpack.c.l.b16 %v2214
  %v2600 = vunpack.c.l.b16 %v2215
  %v2601 = vunpack.c.l.b16 %v2216
  %v2602 = vunpack.c.l.b16 %v2217
  %v2603 = vunpack.c.l.b16 %v2218
  %v2604 = vunpack.c.l.b16 %v2219
  %v2605 = vpack.c.b16 %v2598, %v2597
  %v2606 = vpack.c.b16 %v2600, %v2599
  %v2607 = vpack.c.b16 %v2602, %v2601
  %v2608 = vpack.c.b16 %v2604, %v2603
  %v2614 = vsel %vm2270, %v2588, 0
  %2616 = vmatprep.subr.bf16.mxu0 0
  %2617 = vmatpush1.bf16.msra.mxu0 0
  %2618 = vmatprep.subr.bf16.mxu0 0
  %2619 = vmatpush1.bf16.msra.mxu0 0
  %2620 = vmatprep.subr.bf16.mxu0 0
  %2621 = vmatpush1.bf16.msra.mxu0 0
  %2622 = vmatprep.subr.bf16.mxu0 0
  %2623 = vmatpush1.bf16.msra.mxu0 0
  %2624 = vmatprep.subr.bf16.mxu0 0
  %2625 = vmatpush1.bf16.msra.mxu0 %v2608
  %2626 = vmatprep.subr.bf16.mxu0 0
  %2627 = vmatpush1.bf16.msra.mxu0 %v2607
  %2628 = vmatprep.subr.bf16.mxu0 0
  %2629 = vmatpush1.bf16.msra.mxu0 %v2606
  %2630 = vmatprep.subr.bf16.mxu0 0
  %2631 = vmatpush1.bf16.msra.mxu0 %v2605
  %2632 = vmatprep.subr.bf16.mxu0 0
  %2633 = vmatpush2.bf16.msra.mxu0 0
  %2634 = vmatprep.subr.bf16.mxu0 0
  %2635 = vmatpush2.bf16.msra.mxu0 0
  %2636 = vmatprep.subr.bf16.mxu0 0
  %2637 = vmatpush2.bf16.msra.mxu0 0
  %2638 = vmatprep.subr.bf16.mxu0 0
  %2639 = vmatpush2.bf16.msra.mxu0 0
  %2640 = vmatprep.subr.bf16.mxu0 0
  %2641 = vmatpush2.bf16.msra.mxu0 0
  %2642 = vmatprep.subr.bf16.mxu0 0
  %2643 = vmatpush2.bf16.msra.mxu0 0
  %2644 = vmatprep.subr.bf16.mxu0 0
  %2645 = vmatpush2.bf16.msra.mxu0 0
  %2646 = vmatprep.subr.bf16.mxu0 0
  %2647 = vmatpush2.bf16.msra.mxu0 0
  %2648 = vmatprep.mubr.bf16.mxu0 0
  %2649 = vmatmul.mubr.bf16.gmra.mxu0 %v2614
  %v2650 = vpop.f32.mrf.mxu0
  %v2651 = vadd.f32 0.0, %v2650
  %v2652 = vpop.f32.mrf.mxu0
  %v2653 = vpop.f32.mrf.mxu0
  %v2654 = vpop.f32.mrf.mxu0
  %2655 = vdwg.mxu0
  %v2656 = vadd.f32 %v2587, %v2651
  %v2657 = vpack.c.bf16 %v2159, %v2159
  %v2666 = vunpack.c.l.b16 %v2220
  %v2667 = vunpack.c.l.b16 %v2221
  %v2668 = vunpack.c.l.b16 %v2222
  %v2669 = vunpack.c.l.b16 %v2223
  %v2670 = vunpack.c.l.b16 %v2224
  %v2671 = vunpack.c.l.b16 %v2225
  %v2672 = vunpack.c.l.b16 %v2226
  %v2673 = vunpack.c.l.b16 %v2227
  %v2674 = vpack.c.b16 %v2667, %v2666
  %v2675 = vpack.c.b16 %v2669, %v2668
  %v2676 = vpack.c.b16 %v2671, %v2670
  %v2677 = vpack.c.b16 %v2673, %v2672
  %v2683 = vsel %vm2270, %v2657, 0
  %2685 = vmatprep.subr.bf16.mxu0 0
  %2686 = vmatpush1.bf16.msra.mxu0 0
  %2687 = vmatprep.subr.bf16.mxu0 0
  %2688 = vmatpush1.bf16.msra.mxu0 0
  %2689 = vmatprep.subr.bf16.mxu0 0
  %2690 = vmatpush1.bf16.msra.mxu0 0
  %2691 = vmatprep.subr.bf16.mxu0 0
  %2692 = vmatpush1.bf16.msra.mxu0 0
  %2693 = vmatprep.subr.bf16.mxu0 0
  %2694 = vmatpush1.bf16.msra.mxu0 %v2677
  %2695 = vmatprep.subr.bf16.mxu0 0
  %2696 = vmatpush1.bf16.msra.mxu0 %v2676
  %2697 = vmatprep.subr.bf16.mxu0 0
  %2698 = vmatpush1.bf16.msra.mxu0 %v2675
  %2699 = vmatprep.subr.bf16.mxu0 0
  %2700 = vmatpush1.bf16.msra.mxu0 %v2674
  %2701 = vmatprep.subr.bf16.mxu0 0
  %2702 = vmatpush2.bf16.msra.mxu0 0
  %2703 = vmatprep.subr.bf16.mxu0 0
  %2704 = vmatpush2.bf16.msra.mxu0 0
  %2705 = vmatprep.subr.bf16.mxu0 0
  %2706 = vmatpush2.bf16.msra.mxu0 0
  %2707 = vmatprep.subr.bf16.mxu0 0
  %2708 = vmatpush2.bf16.msra.mxu0 0
  %2709 = vmatprep.subr.bf16.mxu0 0
  %2710 = vmatpush2.bf16.msra.mxu0 0
  %2711 = vmatprep.subr.bf16.mxu0 0
  %2712 = vmatpush2.bf16.msra.mxu0 0
  %2713 = vmatprep.subr.bf16.mxu0 0
  %2714 = vmatpush2.bf16.msra.mxu0 0
  %2715 = vmatprep.subr.bf16.mxu0 0
  %2716 = vmatpush2.bf16.msra.mxu0 0
  %2717 = vmatprep.mubr.bf16.mxu0 0
  %2718 = vmatmul.mubr.bf16.gmra.mxu0 %v2683
  %v2719 = vpop.f32.mrf.mxu0
  %v2720 = vadd.f32 0.0, %v2719
  %v2721 = vpop.f32.mrf.mxu0
  %v2722 = vpop.f32.mrf.mxu0
  %v2723 = vpop.f32.mrf.mxu0
  %2724 = vdwg.mxu0
  %v2725 = vadd.f32 %v2656, %v2720
  %v2726 = vpack.c.bf16 %v2162, %v2162
  %v2735 = vunpack.c.l.b16 %v2228
  %v2736 = vunpack.c.l.b16 %v2229
  %v2737 = vunpack.c.l.b16 %v2230
  %v2738 = vunpack.c.l.b16 %v2231
  %v2739 = vunpack.c.l.b16 %v2232
  %v2740 = vunpack.c.l.b16 %v2233
  %v2741 = vunpack.c.l.b16 %v2234
  %v2742 = vunpack.c.l.b16 %v2235
  %v2743 = vpack.c.b16 %v2736, %v2735
  %v2744 = vpack.c.b16 %v2738, %v2737
  %v2745 = vpack.c.b16 %v2740, %v2739
  %v2746 = vpack.c.b16 %v2742, %v2741
  %v2752 = vsel %vm2270, %v2726, 0
  %2754 = vmatprep.subr.bf16.mxu0 0
  %2755 = vmatpush1.bf16.msra.mxu0 0
  %2756 = vmatprep.subr.bf16.mxu0 0
  %2757 = vmatpush1.bf16.msra.mxu0 0
  %2758 = vmatprep.subr.bf16.mxu0 0
  %2759 = vmatpush1.bf16.msra.mxu0 0
  %2760 = vmatprep.subr.bf16.mxu0 0
  %2761 = vmatpush1.bf16.msra.mxu0 0
  %2762 = vmatprep.subr.bf16.mxu0 0
  %2763 = vmatpush1.bf16.msra.mxu0 %v2746
  %2764 = vmatprep.subr.bf16.mxu0 0
  %2765 = vmatpush1.bf16.msra.mxu0 %v2745
  %2766 = vmatprep.subr.bf16.mxu0 0
  %2767 = vmatpush1.bf16.msra.mxu0 %v2744
  %2768 = vmatprep.subr.bf16.mxu0 0
  %2769 = vmatpush1.bf16.msra.mxu0 %v2743
  %2770 = vmatprep.subr.bf16.mxu0 0
  %2771 = vmatpush2.bf16.msra.mxu0 0
  %2772 = vmatprep.subr.bf16.mxu0 0
  %2773 = vmatpush2.bf16.msra.mxu0 0
  %2774 = vmatprep.subr.bf16.mxu0 0
  %2775 = vmatpush2.bf16.msra.mxu0 0
  %2776 = vmatprep.subr.bf16.mxu0 0
  %2777 = vmatpush2.bf16.msra.mxu0 0
  %2778 = vmatprep.subr.bf16.mxu0 0
  %2779 = vmatpush2.bf16.msra.mxu0 0
  %2780 = vmatprep.subr.bf16.mxu0 0
  %2781 = vmatpush2.bf16.msra.mxu0 0
  %2782 = vmatprep.subr.bf16.mxu0 0
  %2783 = vmatpush2.bf16.msra.mxu0 0
  %2784 = vmatprep.subr.bf16.mxu0 0
  %2785 = vmatpush2.bf16.msra.mxu0 0
  %2786 = vmatprep.mubr.bf16.mxu0 0
  %2787 = vmatmul.mubr.bf16.gmra.mxu0 %v2752
  %v2788 = vpop.f32.mrf.mxu0
  %v2789 = vadd.f32 0.0, %v2788
  %v2790 = vpop.f32.mrf.mxu0
  %v2791 = vpop.f32.mrf.mxu0
  %v2792 = vpop.f32.mrf.mxu0
  %2793 = vdwg.mxu0
  %v2794 = vadd.f32 %v2725, %v2789
  %v2795 = vpack.c.bf16 %v2167, %v2167
  %v2804 = vunpack.c.l.b16 %v2236
  %v2805 = vunpack.c.l.b16 %v2237
  %v2806 = vunpack.c.l.b16 %v2238
  %v2807 = vunpack.c.l.b16 %v2239
  %v2808 = vunpack.c.l.b16 %v2240
  %v2809 = vunpack.c.l.b16 %v2241
  %v2810 = vunpack.c.l.b16 %v2242
  %v2811 = vunpack.c.l.b16 %v2243
  %v2812 = vpack.c.b16 %v2805, %v2804
  %v2813 = vpack.c.b16 %v2807, %v2806
  %v2814 = vpack.c.b16 %v2809, %v2808
  %v2815 = vpack.c.b16 %v2811, %v2810
  %v2821 = vsel %vm2270, %v2795, 0
  %2823 = vmatprep.subr.bf16.mxu0 0
  %2824 = vmatpush1.bf16.msra.mxu0 0
  %2825 = vmatprep.subr.bf16.mxu0 0
  %2826 = vmatpush1.bf16.msra.mxu0 0
  %2827 = vmatprep.subr.bf16.mxu0 0
  %2828 = vmatpush1.bf16.msra.mxu0 0
  %2829 = vmatprep.subr.bf16.mxu0 0
  %2830 = vmatpush1.bf16.msra.mxu0 0
  %2831 = vmatprep.subr.bf16.mxu0 0
  %2832 = vmatpush1.bf16.msra.mxu0 %v2815
  %2833 = vmatprep.subr.bf16.mxu0 0
  %2834 = vmatpush1.bf16.msra.mxu0 %v2814
  %2835 = vmatprep.subr.bf16.mxu0 0
  %2836 = vmatpush1.bf16.msra.mxu0 %v2813
  %2837 = vmatprep.subr.bf16.mxu0 0
  %2838 = vmatpush1.bf16.msra.mxu0 %v2812
  %2839 = vmatprep.subr.bf16.mxu0 0
  %2840 = vmatpush2.bf16.msra.mxu0 0
  %2841 = vmatprep.subr.bf16.mxu0 0
  %2842 = vmatpush2.bf16.msra.mxu0 0
  %2843 = vmatprep.subr.bf16.mxu0 0
  %2844 = vmatpush2.bf16.msra.mxu0 0
  %2845 = vmatprep.subr.bf16.mxu0 0
  %2846 = vmatpush2.bf16.msra.mxu0 0
  %2847 = vmatprep.subr.bf16.mxu0 0
  %2848 = vmatpush2.bf16.msra.mxu0 0
  %2849 = vmatprep.subr.bf16.mxu0 0
  %2850 = vmatpush2.bf16.msra.mxu0 0
  %2851 = vmatprep.subr.bf16.mxu0 0
  %2852 = vmatpush2.bf16.msra.mxu0 0
  %2853 = vmatprep.subr.bf16.mxu0 0
  %2854 = vmatpush2.bf16.msra.mxu0 0
  %2855 = vmatprep.mubr.bf16.mxu0 0
  %2856 = vmatmul.mubr.bf16.gmra.mxu0 %v2821
  %v2857 = vpop.f32.mrf.mxu0
  %v2858 = vadd.f32 0.0, %v2857
  %v2859 = vpop.f32.mrf.mxu0
  %v2860 = vpop.f32.mrf.mxu0
  %v2861 = vpop.f32.mrf.mxu0
  %2862 = vdwg.mxu0
  %v2863 = vadd.f32 %v2794, %v2858
  %v2864 = vld [vmem:[%s8] sm:$0x1]
  %v2866 = vlaneseq
  %v2867 = vshrl.u32 %v2866, 7
  %v2868 = vsub.s32 0, %v2867
  %v2869 = vrot.slane %v2864, %v2868
  %v2871 = vadd.f32 %v2863, %v2869
  %v2872 = vmax.f32 %v2871, 0.0
  %v2873 = vld [vmem:[%s9] sm:$0xff]
  %v2874 = vld [vmem:[%s9 + $0x8] sm:$0xff]
  %v2875 = vld [vmem:[%s9 + $0x10] sm:$0xff]
  %v2876 = vld [vmem:[%s9 + $0x18] sm:$0xff]
  %v2877 = vld [vmem:[%s9 + $0x20] sm:$0xff]
  %v2878 = vld [vmem:[%s9 + $0x28] sm:$0xff]
  %v2879 = vld [vmem:[%s9 + $0x30] sm:$0xff]
  %v2880 = vld [vmem:[%s9 + $0x38] sm:$0xff]
  %v2881 = vld [vmem:[%s9 + $0x40] sm:$0xff]
  %v2882 = vld [vmem:[%s9 + $0x48] sm:$0xff]
  %v2883 = vld [vmem:[%s9 + $0x50] sm:$0xff]
  %v2884 = vld [vmem:[%s9 + $0x58] sm:$0xff]
  %v2885 = vld [vmem:[%s9 + $0x60] sm:$0xff]
  %v2886 = vld [vmem:[%s9 + $0x68] sm:$0xff]
  %v2887 = vld [vmem:[%s9 + $0x70] sm:$0xff]
  %v2888 = vld [vmem:[%s9 + $0x78] sm:$0xff]
  %v2889 = vpack.c.bf16 %v2872, %v2872
  %v2890 = vld [vmem:[%s10] sm:$0xf]
  %v2892 = vlaneseq
  %v2893 = vshrl.u32 %v2892, 7
  %v2894 = vsub.s32 0, %v2893
  %v2895 = vrot.slane %v2890, %v2894
  %v2896 = vlaneseq
  %v2897 = vshrl.u32 %v2896, 7
  %v2898 = vsub.s32 1, %v2897
  %v2899 = vrot.slane %v2890, %v2898
  %v2900 = vlaneseq
  %v2901 = vshrl.u32 %v2900, 7
  %v2902 = vsub.s32 2, %v2901
  %v2903 = vrot.slane %v2890, %v2902
  %v2904 = vlaneseq
  %v2905 = vshrl.u32 %v2904, 7
  %v2906 = vsub.s32 3, %v2905
  %v2907 = vrot.slane %v2890, %v2906
  %v2928 = vunpack.c.l.b16 %v2873
  %v2929 = vunpack.c.h.b16 %v2873
  %v2930 = vunpack.c.l.b16 %v2874
  %v2931 = vunpack.c.h.b16 %v2874
  %v2932 = vunpack.c.l.b16 %v2875
  %v2933 = vunpack.c.h.b16 %v2875
  %v2934 = vunpack.c.l.b16 %v2876
  %v2935 = vunpack.c.h.b16 %v2876
  %v2936 = vunpack.c.l.b16 %v2877
  %v2937 = vunpack.c.h.b16 %v2877
  %v2938 = vunpack.c.l.b16 %v2878
  %v2939 = vunpack.c.h.b16 %v2878
  %v2940 = vunpack.c.l.b16 %v2879
  %v2941 = vunpack.c.h.b16 %v2879
  %v2942 = vunpack.c.l.b16 %v2880
  %v2943 = vunpack.c.h.b16 %v2880
  %v2944 = vunpack.c.l.b16 %v2881
  %v2945 = vunpack.c.h.b16 %v2881
  %v2946 = vunpack.c.l.b16 %v2882
  %v2947 = vunpack.c.h.b16 %v2882
  %v2948 = vunpack.c.l.b16 %v2883
  %v2949 = vunpack.c.h.b16 %v2883
  %v2950 = vunpack.c.l.b16 %v2884
  %v2951 = vunpack.c.h.b16 %v2884
  %v2952 = vunpack.c.l.b16 %v2885
  %v2953 = vunpack.c.h.b16 %v2885
  %v2954 = vunpack.c.l.b16 %v2886
  %v2955 = vunpack.c.h.b16 %v2886
  %v2956 = vunpack.c.l.b16 %v2887
  %v2957 = vunpack.c.h.b16 %v2887
  %v2958 = vunpack.c.l.b16 %v2888
  %v2959 = vunpack.c.h.b16 %v2888
  %v2960 = vpack.c.b16 %v2932, %v2928
  %v2961 = vpack.c.b16 %v2933, %v2929
  %v2962 = vpack.c.b16 %v2934, %v2930
  %v2963 = vpack.c.b16 %v2935, %v2931
  %v2964 = vpack.c.b16 %v2940, %v2936
  %v2965 = vpack.c.b16 %v2941, %v2937
  %v2966 = vpack.c.b16 %v2942, %v2938
  %v2967 = vpack.c.b16 %v2943, %v2939
  %v2968 = vpack.c.b16 %v2948, %v2944
  %v2969 = vpack.c.b16 %v2949, %v2945
  %v2970 = vpack.c.b16 %v2950, %v2946
  %v2971 = vpack.c.b16 %v2951, %v2947
  %v2972 = vpack.c.b16 %v2956, %v2952
  %v2973 = vpack.c.b16 %v2957, %v2953
  %v2974 = vpack.c.b16 %v2958, %v2954
  %v2975 = vpack.c.b16 %v2959, %v2955
  %v2993 = vsel %vm2270, %v2889, 0
  %2995 = vmatprep.subr.bf16.mxu0 0
  %2996 = vmatpush1.bf16.msra.mxu0 0
  %2997 = vmatprep.subr.bf16.mxu0 0
  %2998 = vmatpush1.bf16.msra.mxu0 0
  %2999 = vmatprep.subr.bf16.mxu0 0
  %3000 = vmatpush1.bf16.msra.mxu0 0
  %3001 = vmatprep.subr.bf16.mxu0 0
  %3002 = vmatpush1.bf16.msra.mxu0 0
  %3003 = vmatprep.subr.bf16.mxu0 %v2973
  %3004 = vmatpush1.bf16.msra.mxu0 %v2972
  %3005 = vmatprep.subr.bf16.mxu0 %v2969
  %3006 = vmatpush1.bf16.msra.mxu0 %v2968
  %3007 = vmatprep.subr.bf16.mxu0 %v2965
  %3008 = vmatpush1.bf16.msra.mxu0 %v2964
  %3009 = vmatprep.subr.bf16.mxu0 %v2961
  %3010 = vmatpush1.bf16.msra.mxu0 %v2960
  %3011 = vmatprep.subr.bf16.mxu0 0
  %3012 = vmatpush2.bf16.msra.mxu0 0
  %3013 = vmatprep.subr.bf16.mxu0 0
  %3014 = vmatpush2.bf16.msra.mxu0 0
  %3015 = vmatprep.subr.bf16.mxu0 0
  %3016 = vmatpush2.bf16.msra.mxu0 0
  %3017 = vmatprep.subr.bf16.mxu0 0
  %3018 = vmatpush2.bf16.msra.mxu0 0
  %3019 = vmatprep.subr.bf16.mxu0 0
  %3020 = vmatpush2.bf16.msra.mxu0 0
  %3021 = vmatprep.subr.bf16.mxu0 0
  %3022 = vmatpush2.bf16.msra.mxu0 0
  %3023 = vmatprep.subr.bf16.mxu0 0
  %3024 = vmatpush2.bf16.msra.mxu0 0
  %3025 = vmatprep.subr.bf16.mxu0 0
  %3026 = vmatpush2.bf16.msra.mxu0 0
  %3027 = vmatprep.mubr.bf16.mxu0 0
  %3028 = vmatmul.mubr.bf16.gmra.mxu0 %v2993
  %v3029 = vpop.f32.mrf.mxu0
  %v3030 = vadd.f32 %v2895, %v3029
  %v3031 = vpop.f32.mrf.mxu0
  %v3032 = vadd.f32 %v2899, %v3031
  %v3033 = vpop.f32.mrf.mxu0
  %v3034 = vpop.f32.mrf.mxu0
  %3035 = vdwg.mxu0
  %3036 = vmatprep.subr.bf16.mxu0 0
  %3037 = vmatpush1.bf16.msra.mxu0 0
  %3038 = vmatprep.subr.bf16.mxu0 0
  %3039 = vmatpush1.bf16.msra.mxu0 0
  %3040 = vmatprep.subr.bf16.mxu0 0
  %3041 = vmatpush1.bf16.msra.mxu0 0
  %3042 = vmatprep.subr.bf16.mxu0 0
  %3043 = vmatpush1.bf16.msra.mxu0 0
  %3044 = vmatprep.subr.bf16.mxu0 %v2975
  %3045 = vmatpush1.bf16.msra.mxu0 %v2974
  %3046 = vmatprep.subr.bf16.mxu0 %v2971
  %3047 = vmatpush1.bf16.msra.mxu0 %v2970
  %3048 = vmatprep.subr.bf16.mxu0 %v2967
  %3049 = vmatpush1.bf16.msra.mxu0 %v2966
  %3050 = vmatprep.subr.bf16.mxu0 %v2963
  %3051 = vmatpush1.bf16.msra.mxu0 %v2962
  %3052 = vmatprep.subr.bf16.mxu0 0
  %3053 = vmatpush2.bf16.msra.mxu0 0
  %3054 = vmatprep.subr.bf16.mxu0 0
  %3055 = vmatpush2.bf16.msra.mxu0 0
  %3056 = vmatprep.subr.bf16.mxu0 0
  %3057 = vmatpush2.bf16.msra.mxu0 0
  %3058 = vmatprep.subr.bf16.mxu0 0
  %3059 = vmatpush2.bf16.msra.mxu0 0
  %3060 = vmatprep.subr.bf16.mxu0 0
  %3061 = vmatpush2.bf16.msra.mxu0 0
  %3062 = vmatprep.subr.bf16.mxu0 0
  %3063 = vmatpush2.bf16.msra.mxu0 0
  %3064 = vmatprep.subr.bf16.mxu0 0
  %3065 = vmatpush2.bf16.msra.mxu0 0
  %3066 = vmatprep.subr.bf16.mxu0 0
  %3067 = vmatpush2.bf16.msra.mxu0 0
  %3068 = vmatprep.mubr.bf16.mxu0 0
  %3069 = vmatmul.mubr.bf16.gmra.mxu0 %v2993
  %v3070 = vpop.f32.mrf.mxu0
  %v3071 = vadd.f32 %v2903, %v3070
  %v3072 = vpop.f32.mrf.mxu0
  %v3073 = vadd.f32 %v2907, %v3072
  %v3074 = vpop.f32.mrf.mxu0
  %v3075 = vpop.f32.mrf.mxu0
  %3076 = vdwg.mxu0
  %v3077 = vmax.f32 %v3030, 0.0
  %v3078 = vmax.f32 %v3032, 0.0
  %v3079 = vmax.f32 %v3071, 0.0
  %v3080 = vmax.f32 %v3073, 0.0
  %v3081 = vpack.c.bf16 %v3077, %v3077
  %v3082 = vpack.c.bf16 %v3078, %v3078
  %v3083 = vpack.c.bf16 %v3079, %v3079
  %v3084 = vpack.c.bf16 %v3080, %v3080
  %v3085 = vld [vmem:[%s11] sm:$0xff]
  %v3086 = vld [vmem:[%s11 + $0x8] sm:$0xff]
  %v3087 = vld [vmem:[%s11 + $0x10] sm:$0xff]
  %v3088 = vld [vmem:[%s11 + $0x18] sm:$0xff]
  %v3089 = vld [vmem:[%s11 + $0x20] sm:$0xff]
  %v3090 = vld [vmem:[%s11 + $0x28] sm:$0xff]
  %v3091 = vld [vmem:[%s11 + $0x30] sm:$0xff]
  %v3092 = vld [vmem:[%s11 + $0x38] sm:$0xff]
  %v3093 = vld [vmem:[%s11 + $0x40] sm:$0xff]
  %v3094 = vld [vmem:[%s11 + $0x48] sm:$0xff]
  %v3095 = vld [vmem:[%s11 + $0x50] sm:$0xff]
  %v3096 = vld [vmem:[%s11 + $0x58] sm:$0xff]
  %v3097 = vld [vmem:[%s11 + $0x60] sm:$0xff]
  %v3098 = vld [vmem:[%s11 + $0x68] sm:$0xff]
  %v3099 = vld [vmem:[%s11 + $0x70] sm:$0xff]
  %v3100 = vld [vmem:[%s11 + $0x78] sm:$0xff]
  %v3101 = vld [vmem:[%s11 + $0x80] sm:$0xff]
  %v3102 = vld [vmem:[%s11 + $0x88] sm:$0xff]
  %v3103 = vld [vmem:[%s11 + $0x90] sm:$0xff]
  %v3104 = vld [vmem:[%s11 + $0x98] sm:$0xff]
  %v3105 = vld [vmem:[%s11 + $0xa0] sm:$0xff]
  %v3106 = vld [vmem:[%s11 + $0xa8] sm:$0xff]
  %v3107 = vld [vmem:[%s11 + $0xb0] sm:$0xff]
  %v3108 = vld [vmem:[%s11 + $0xb8] sm:$0xff]
  %v3109 = vld [vmem:[%s11 + $0xc0] sm:$0xff]
  %v3110 = vld [vmem:[%s11 + $0xc8] sm:$0xff]
  %v3111 = vld [vmem:[%s11 + $0xd0] sm:$0xff]
  %v3112 = vld [vmem:[%s11 + $0xd8] sm:$0xff]
  %v3113 = vld [vmem:[%s11 + $0xe0] sm:$0xff]
  %v3114 = vld [vmem:[%s11 + $0xe8] sm:$0xff]
  %v3115 = vld [vmem:[%s11 + $0xf0] sm:$0xff]
  %v3116 = vld [vmem:[%s11 + $0xf8] sm:$0xff]
  %v3117 = vld [vmem:[%s11 + $0x100] sm:$0xff]
  %v3118 = vld [vmem:[%s11 + $0x108] sm:$0xff]
  %v3119 = vld [vmem:[%s11 + $0x110] sm:$0xff]
  %v3120 = vld [vmem:[%s11 + $0x118] sm:$0xff]
  %v3121 = vld [vmem:[%s11 + $0x120] sm:$0xff]
  %v3122 = vld [vmem:[%s11 + $0x128] sm:$0xff]
  %v3123 = vld [vmem:[%s11 + $0x130] sm:$0xff]
  %v3124 = vld [vmem:[%s11 + $0x138] sm:$0xff]
  %v3125 = vld [vmem:[%s11 + $0x140] sm:$0xff]
  %v3126 = vld [vmem:[%s11 + $0x148] sm:$0xff]
  %v3127 = vld [vmem:[%s11 + $0x150] sm:$0xff]
  %v3128 = vld [vmem:[%s11 + $0x158] sm:$0xff]
  %v3129 = vld [vmem:[%s11 + $0x160] sm:$0xff]
  %v3130 = vld [vmem:[%s11 + $0x168] sm:$0xff]
  %v3131 = vld [vmem:[%s11 + $0x170] sm:$0xff]
  %v3132 = vld [vmem:[%s11 + $0x178] sm:$0xff]
  %v3133 = vld [vmem:[%s11 + $0x180] sm:$0xff]
  %v3134 = vld [vmem:[%s11 + $0x188] sm:$0xff]
  %v3135 = vld [vmem:[%s11 + $0x190] sm:$0xff]
  %v3136 = vld [vmem:[%s11 + $0x198] sm:$0xff]
  %v3137 = vld [vmem:[%s11 + $0x1a0] sm:$0xff]
  %v3138 = vld [vmem:[%s11 + $0x1a8] sm:$0xff]
  %v3139 = vld [vmem:[%s11 + $0x1b0] sm:$0xff]
  %v3140 = vld [vmem:[%s11 + $0x1b8] sm:$0xff]
  %v3141 = vld [vmem:[%s11 + $0x1c0] sm:$0xff]
  %v3142 = vld [vmem:[%s11 + $0x1c8] sm:$0xff]
  %v3143 = vld [vmem:[%s11 + $0x1d0] sm:$0xff]
  %v3144 = vld [vmem:[%s11 + $0x1d8] sm:$0xff]
  %v3145 = vld [vmem:[%s11 + $0x1e0] sm:$0xff]
  %v3146 = vld [vmem:[%s11 + $0x1e8] sm:$0xff]
  %v3147 = vld [vmem:[%s11 + $0x1f0] sm:$0xff]
  %v3148 = vld [vmem:[%s11 + $0x1f8] sm:$0xff]
  %v3149 = vld [vmem:[%s11 + $0x200] sm:$0xff]
  %v3150 = vld [vmem:[%s11 + $0x208] sm:$0xff]
  %v3151 = vld [vmem:[%s11 + $0x210] sm:$0xff]
  %v3152 = vld [vmem:[%s11 + $0x218] sm:$0xff]
  %v3153 = vld [vmem:[%s11 + $0x220] sm:$0xff]
  %v3154 = vld [vmem:[%s11 + $0x228] sm:$0xff]
  %v3155 = vld [vmem:[%s11 + $0x230] sm:$0xff]
  %v3156 = vld [vmem:[%s11 + $0x238] sm:$0xff]
  %v3157 = vld [vmem:[%s11 + $0x240] sm:$0xff]
  %v3158 = vld [vmem:[%s11 + $0x248] sm:$0xff]
  %v3159 = vld [vmem:[%s11 + $0x250] sm:$0xff]
  %v3160 = vld [vmem:[%s11 + $0x258] sm:$0xff]
  %v3161 = vld [vmem:[%s11 + $0x260] sm:$0xff]
  %v3162 = vld [vmem:[%s11 + $0x268] sm:$0xff]
  %v3163 = vld [vmem:[%s11 + $0x270] sm:$0xff]
  %v3164 = vld [vmem:[%s11 + $0x278] sm:$0xff]
  %v3165 = vld [vmem:[%s11 + $0x280] sm:$0xff]
  %v3166 = vld [vmem:[%s11 + $0x288] sm:$0xff]
  %v3167 = vld [vmem:[%s11 + $0x290] sm:$0xff]
  %v3168 = vld [vmem:[%s11 + $0x298] sm:$0xff]
  %v3169 = vld [vmem:[%s11 + $0x2a0] sm:$0xff]
  %v3170 = vld [vmem:[%s11 + $0x2a8] sm:$0xff]
  %v3171 = vld [vmem:[%s11 + $0x2b0] sm:$0xff]
  %v3172 = vld [vmem:[%s11 + $0x2b8] sm:$0xff]
  %v3173 = vld [vmem:[%s11 + $0x2c0] sm:$0xff]
  %v3174 = vld [vmem:[%s11 + $0x2c8] sm:$0xff]
  %v3175 = vld [vmem:[%s11 + $0x2d0] sm:$0xff]
  %v3176 = vld [vmem:[%s11 + $0x2d8] sm:$0xff]
  %v3177 = vld [vmem:[%s11 + $0x2e0] sm:$0xff]
  %v3178 = vld [vmem:[%s11 + $0x2e8] sm:$0xff]
  %v3179 = vld [vmem:[%s11 + $0x2f0] sm:$0xff]
  %v3180 = vld [vmem:[%s11 + $0x2f8] sm:$0xff]
  %v3181 = vld [vmem:[%s11 + $0x300] sm:$0xff]
  %v3182 = vld [vmem:[%s11 + $0x308] sm:$0xff]
  %v3183 = vld [vmem:[%s11 + $0x310] sm:$0xff]
  %v3184 = vld [vmem:[%s11 + $0x318] sm:$0xff]
  %v3185 = vld [vmem:[%s11 + $0x320] sm:$0xff]
  %v3186 = vld [vmem:[%s11 + $0x328] sm:$0xff]
  %v3187 = vld [vmem:[%s11 + $0x330] sm:$0xff]
  %v3188 = vld [vmem:[%s11 + $0x338] sm:$0xff]
  %v3189 = vld [vmem:[%s11 + $0x340] sm:$0xff]
  %v3190 = vld [vmem:[%s11 + $0x348] sm:$0xff]
  %v3191 = vld [vmem:[%s11 + $0x350] sm:$0xff]
  %v3192 = vld [vmem:[%s11 + $0x358] sm:$0xff]
  %v3193 = vld [vmem:[%s11 + $0x360] sm:$0xff]
  %v3194 = vld [vmem:[%s11 + $0x368] sm:$0xff]
  %v3195 = vld [vmem:[%s11 + $0x370] sm:$0xff]
  %v3196 = vld [vmem:[%s11 + $0x378] sm:$0xff]
  %v3197 = vld [vmem:[%s11 + $0x380] sm:$0xff]
  %v3198 = vld [vmem:[%s11 + $0x388] sm:$0xff]
  %v3199 = vld [vmem:[%s11 + $0x390] sm:$0xff]
  %v3200 = vld [vmem:[%s11 + $0x398] sm:$0xff]
  %v3201 = vld [vmem:[%s11 + $0x3a0] sm:$0xff]
  %v3202 = vld [vmem:[%s11 + $0x3a8] sm:$0xff]
  %v3203 = vld [vmem:[%s11 + $0x3b0] sm:$0xff]
  %v3204 = vld [vmem:[%s11 + $0x3b8] sm:$0xff]
  %v3205 = vld [vmem:[%s11 + $0x3c0] sm:$0xff]
  %v3206 = vld [vmem:[%s11 + $0x3c8] sm:$0xff]
  %v3207 = vld [vmem:[%s11 + $0x3d0] sm:$0xff]
  %v3208 = vld [vmem:[%s11 + $0x3d8] sm:$0xff]
  %v3209 = vld [vmem:[%s11 + $0x3e0] sm:$0xff]
  %v3210 = vld [vmem:[%s11 + $0x3e8] sm:$0xff]
  %v3211 = vld [vmem:[%s11 + $0x3f0] sm:$0xff]
  %v3212 = vld [vmem:[%s11 + $0x3f8] sm:$0xff]
  %v3213 = vld [vmem:[%s11 + $0x400] sm:$0xff]
  %v3214 = vld [vmem:[%s11 + $0x408] sm:$0xff]
  %v3215 = vld [vmem:[%s11 + $0x410] sm:$0xff]
  %v3216 = vld [vmem:[%s11 + $0x418] sm:$0xff]
  %v3217 = vld [vmem:[%s11 + $0x420] sm:$0xff]
  %v3218 = vld [vmem:[%s11 + $0x428] sm:$0xff]
  %v3219 = vld [vmem:[%s11 + $0x430] sm:$0xff]
  %v3220 = vld [vmem:[%s11 + $0x438] sm:$0xff]
  %v3221 = vld [vmem:[%s11 + $0x440] sm:$0xff]
  %v3222 = vld [vmem:[%s11 + $0x448] sm:$0xff]
  %v3223 = vld [vmem:[%s11 + $0x450] sm:$0xff]
  %v3224 = vld [vmem:[%s11 + $0x458] sm:$0xff]
  %v3225 = vld [vmem:[%s11 + $0x460] sm:$0xff]
  %v3226 = vld [vmem:[%s11 + $0x468] sm:$0xff]
  %v3227 = vld [vmem:[%s11 + $0x470] sm:$0xff]
  %v3228 = vld [vmem:[%s11 + $0x478] sm:$0xff]
  %v3229 = vld [vmem:[%s11 + $0x480] sm:$0xff]
  %v3230 = vld [vmem:[%s11 + $0x488] sm:$0xff]
  %v3231 = vld [vmem:[%s11 + $0x490] sm:$0xff]
  %v3232 = vld [vmem:[%s11 + $0x498] sm:$0xff]
  %v3233 = vld [vmem:[%s11 + $0x4a0] sm:$0xff]
  %v3234 = vld [vmem:[%s11 + $0x4a8] sm:$0xff]
  %v3235 = vld [vmem:[%s11 + $0x4b0] sm:$0xff]
  %v3236 = vld [vmem:[%s11 + $0x4b8] sm:$0xff]
  %v3237 = vld [vmem:[%s11 + $0x4c0] sm:$0xff]
  %v3238 = vld [vmem:[%s11 + $0x4c8] sm:$0xff]
  %v3239 = vld [vmem:[%s11 + $0x4d0] sm:$0xff]
  %v3240 = vld [vmem:[%s11 + $0x4d8] sm:$0xff]
  %v3241 = vld [vmem:[%s11 + $0x4e0] sm:$0xff]
  %v3242 = vld [vmem:[%s11 + $0x4e8] sm:$0xff]
  %v3243 = vld [vmem:[%s11 + $0x4f0] sm:$0xff]
  %v3244 = vld [vmem:[%s11 + $0x4f8] sm:$0xff]
  %v3245 = vld [vmem:[%s11 + $0x500] sm:$0xff]
  %v3246 = vld [vmem:[%s11 + $0x508] sm:$0xff]
  %v3247 = vld [vmem:[%s11 + $0x510] sm:$0xff]
  %v3248 = vld [vmem:[%s11 + $0x518] sm:$0xff]
  %v3249 = vld [vmem:[%s11 + $0x520] sm:$0xff]
  %v3250 = vld [vmem:[%s11 + $0x528] sm:$0xff]
  %v3251 = vld [vmem:[%s11 + $0x530] sm:$0xff]
  %v3252 = vld [vmem:[%s11 + $0x538] sm:$0xff]
  %v3253 = vld [vmem:[%s11 + $0x540] sm:$0xff]
  %v3254 = vld [vmem:[%s11 + $0x548] sm:$0xff]
  %v3255 = vld [vmem:[%s11 + $0x550] sm:$0xff]
  %v3256 = vld [vmem:[%s11 + $0x558] sm:$0xff]
  %v3257 = vld [vmem:[%s11 + $0x560] sm:$0xff]
  %v3258 = vld [vmem:[%s11 + $0x568] sm:$0xff]
  %v3259 = vld [vmem:[%s11 + $0x570] sm:$0xff]
  %v3260 = vld [vmem:[%s11 + $0x578] sm:$0xff]
  %v3261 = vld [vmem:[%s11 + $0x580] sm:$0xff]
  %v3262 = vld [vmem:[%s11 + $0x588] sm:$0xff]
  %v3263 = vld [vmem:[%s11 + $0x590] sm:$0xff]
  %v3264 = vld [vmem:[%s11 + $0x598] sm:$0xff]
  %v3265 = vld [vmem:[%s11 + $0x5a0] sm:$0xff]
  %v3266 = vld [vmem:[%s11 + $0x5a8] sm:$0xff]
  %v3267 = vld [vmem:[%s11 + $0x5b0] sm:$0xff]
  %v3268 = vld [vmem:[%s11 + $0x5b8] sm:$0xff]
  %v3269 = vld [vmem:[%s11 + $0x5c0] sm:$0xff]
  %v3270 = vld [vmem:[%s11 + $0x5c8] sm:$0xff]
  %v3271 = vld [vmem:[%s11 + $0x5d0] sm:$0xff]
  %v3272 = vld [vmem:[%s11 + $0x5d8] sm:$0xff]
  %v3273 = vld [vmem:[%s11 + $0x5e0] sm:$0xff]
  %v3274 = vld [vmem:[%s11 + $0x5e8] sm:$0xff]
  %v3275 = vld [vmem:[%s11 + $0x5f0] sm:$0xff]
  %v3276 = vld [vmem:[%s11 + $0x5f8] sm:$0xff]
  %v3277 = vld [vmem:[%s11 + $0x600] sm:$0xff]
  %v3278 = vld [vmem:[%s11 + $0x608] sm:$0xff]
  %v3279 = vld [vmem:[%s11 + $0x610] sm:$0xff]
  %v3280 = vld [vmem:[%s11 + $0x618] sm:$0xff]
  %v3281 = vld [vmem:[%s11 + $0x620] sm:$0xff]
  %v3282 = vld [vmem:[%s11 + $0x628] sm:$0xff]
  %v3283 = vld [vmem:[%s11 + $0x630] sm:$0xff]
  %v3284 = vld [vmem:[%s11 + $0x638] sm:$0xff]
  %v3285 = vld [vmem:[%s11 + $0x640] sm:$0xff]
  %v3286 = vld [vmem:[%s11 + $0x648] sm:$0xff]
  %v3287 = vld [vmem:[%s11 + $0x650] sm:$0xff]
  %v3288 = vld [vmem:[%s11 + $0x658] sm:$0xff]
  %v3289 = vld [vmem:[%s11 + $0x660] sm:$0xff]
  %v3290 = vld [vmem:[%s11 + $0x668] sm:$0xff]
  %v3291 = vld [vmem:[%s11 + $0x670] sm:$0xff]
  %v3292 = vld [vmem:[%s11 + $0x678] sm:$0xff]
  %v3293 = vld [vmem:[%s11 + $0x680] sm:$0xff]
  %v3294 = vld [vmem:[%s11 + $0x688] sm:$0xff]
  %v3295 = vld [vmem:[%s11 + $0x690] sm:$0xff]
  %v3296 = vld [vmem:[%s11 + $0x698] sm:$0xff]
  %v3297 = vld [vmem:[%s11 + $0x6a0] sm:$0xff]
  %v3298 = vld [vmem:[%s11 + $0x6a8] sm:$0xff]
  %v3299 = vld [vmem:[%s11 + $0x6b0] sm:$0xff]
  %v3300 = vld [vmem:[%s11 + $0x6b8] sm:$0xff]
  %v3301 = vld [vmem:[%s11 + $0x6c0] sm:$0xff]
  %v3302 = vld [vmem:[%s11 + $0x6c8] sm:$0xff]
  %v3303 = vld [vmem:[%s11 + $0x6d0] sm:$0xff]
  %v3304 = vld [vmem:[%s11 + $0x6d8] sm:$0xff]
  %v3305 = vld [vmem:[%s11 + $0x6e0] sm:$0xff]
  %v3306 = vld [vmem:[%s11 + $0x6e8] sm:$0xff]
  %v3307 = vld [vmem:[%s11 + $0x6f0] sm:$0xff]
  %v3308 = vld [vmem:[%s11 + $0x6f8] sm:$0xff]
  %v3309 = vld [vmem:[%s11 + $0x700] sm:$0xff]
  %v3310 = vld [vmem:[%s11 + $0x708] sm:$0xff]
  %v3311 = vld [vmem:[%s11 + $0x710] sm:$0xff]
  %v3312 = vld [vmem:[%s11 + $0x718] sm:$0xff]
  %v3313 = vld [vmem:[%s11 + $0x720] sm:$0xff]
  %v3314 = vld [vmem:[%s11 + $0x728] sm:$0xff]
  %v3315 = vld [vmem:[%s11 + $0x730] sm:$0xff]
  %v3316 = vld [vmem:[%s11 + $0x738] sm:$0xff]
  %v3317 = vld [vmem:[%s11 + $0x740] sm:$0xff]
  %v3318 = vld [vmem:[%s11 + $0x748] sm:$0xff]
  %v3319 = vld [vmem:[%s11 + $0x750] sm:$0xff]
  %v3320 = vld [vmem:[%s11 + $0x758] sm:$0xff]
  %v3321 = vld [vmem:[%s11 + $0x760] sm:$0xff]
  %v3322 = vld [vmem:[%s11 + $0x768] sm:$0xff]
  %v3323 = vld [vmem:[%s11 + $0x770] sm:$0xff]
  %v3324 = vld [vmem:[%s11 + $0x778] sm:$0xff]
  %v3325 = vld [vmem:[%s11 + $0x780] sm:$0xff]
  %v3326 = vld [vmem:[%s11 + $0x788] sm:$0xff]
  %v3327 = vld [vmem:[%s11 + $0x790] sm:$0xff]
  %v3328 = vld [vmem:[%s11 + $0x798] sm:$0xff]
  %v3329 = vld [vmem:[%s11 + $0x7a0] sm:$0xff]
  %v3330 = vld [vmem:[%s11 + $0x7a8] sm:$0xff]
  %v3331 = vld [vmem:[%s11 + $0x7b0] sm:$0xff]
  %v3332 = vld [vmem:[%s11 + $0x7b8] sm:$0xff]
  %v3333 = vld [vmem:[%s11 + $0x7c0] sm:$0xff]
  %v3334 = vld [vmem:[%s11 + $0x7c8] sm:$0xff]
  %v3335 = vld [vmem:[%s11 + $0x7d0] sm:$0xff]
  %v3336 = vld [vmem:[%s11 + $0x7d8] sm:$0xff]
  %v3337 = vld [vmem:[%s11 + $0x7e0] sm:$0xff]
  %v3338 = vld [vmem:[%s11 + $0x7e8] sm:$0xff]
  %v3339 = vld [vmem:[%s11 + $0x7f0] sm:$0xff]
  %v3340 = vld [vmem:[%s11 + $0x7f8] sm:$0xff]
  %v3341 = vld [vmem:[%s19] sm:$0xff]
  %v3342 = vpack.c.bf16 %v3341, %v3341
  %v3343 = vld [vmem:[%s12] sm:$0xff]
  %v3344 = vld [vmem:[%s12 + $0x8] sm:$0xff]
  %v3345 = vld [vmem:[%s12 + $0x10] sm:$0xff]
  %v3346 = vld [vmem:[%s12 + $0x18] sm:$0xff]
  %v3351 = vunpack.c.l.b16 %v3343
  %v3352 = vunpack.c.h.b16 %v3343
  %v3353 = vunpack.c.l.b16 %v3344
  %v3354 = vunpack.c.h.b16 %v3344
  %v3355 = vunpack.c.l.b16 %v3345
  %v3356 = vunpack.c.h.b16 %v3345
  %v3357 = vunpack.c.l.b16 %v3346
  %v3358 = vunpack.c.h.b16 %v3346
  %v3359 = vpack.c.b16 %v3351, %v3351
  %v3360 = vpack.c.b16 %v3352, %v3352
  %v3361 = vpack.c.b16 %v3353, %v3353
  %v3362 = vpack.c.b16 %v3354, %v3354
  %v3363 = vpack.c.b16 %v3355, %v3355
  %v3364 = vpack.c.b16 %v3356, %v3356
  %v3365 = vpack.c.b16 %v3357, %v3357
  %v3366 = vpack.c.b16 %v3358, %v3358
  %vm3367 = vcmask 64512
  %v3369 = vsel %vm3367, %v3342, 0
  %v3372 = vsel %vm2096, %v3359, 0
  %v3375 = vsel %vm2096, %v3360, 0
  %v3378 = vsel %vm2096, %v3361, 0
  %v3381 = vsel %vm2096, %v3362, 0
  %v3384 = vsel %vm2096, %v3363, 0
  %v3387 = vsel %vm2096, %v3364, 0
  %v3390 = vsel %vm2096, %v3365, 0
  %v3393 = vsel %vm2096, %v3366, 0
  %3395 = vmatprep.subr.bf16.mxu0 0
  %3396 = vmatpush1.bf16.msra.mxu0 0
  %3397 = vmatprep.subr.bf16.mxu0 0
  %3398 = vmatpush1.bf16.msra.mxu0 0
  %3399 = vmatprep.subr.bf16.mxu0 0
  %3400 = vmatpush1.bf16.msra.mxu0 0
  %3401 = vmatprep.subr.bf16.mxu0 0
  %3402 = vmatpush1.bf16.msra.mxu0 0
  %3403 = vmatprep.subr.bf16.mxu0 0
  %3404 = vmatpush1.bf16.msra.mxu0 0
  %3405 = vmatprep.subr.bf16.mxu0 0
  %3406 = vmatpush1.bf16.msra.mxu0 0
  %3407 = vmatprep.subr.bf16.mxu0 0
  %3408 = vmatpush1.bf16.msra.mxu0 0
  %3409 = vmatprep.subr.bf16.mxu0 %v3375
  %3410 = vmatpush1.bf16.msra.mxu0 %v3372
  %3411 = vmatprep.subr.bf16.mxu0 0
  %3412 = vmatpush2.bf16.msra.mxu0 0
  %3413 = vmatprep.subr.bf16.mxu0 0
  %3414 = vmatpush2.bf16.msra.mxu0 0
  %3415 = vmatprep.subr.bf16.mxu0 0
  %3416 = vmatpush2.bf16.msra.mxu0 0
  %3417 = vmatprep.subr.bf16.mxu0 0
  %3418 = vmatpush2.bf16.msra.mxu0 0
  %3419 = vmatprep.subr.bf16.mxu0 0
  %3420 = vmatpush2.bf16.msra.mxu0 0
  %3421 = vmatprep.subr.bf16.mxu0 0
  %3422 = vmatpush2.bf16.msra.mxu0 0
  %3423 = vmatprep.subr.bf16.mxu0 0
  %3424 = vmatpush2.bf16.msra.mxu0 0
  %3425 = vmatprep.subr.bf16.mxu0 0
  %3426 = vmatpush2.bf16.msra.mxu0 0
  %3427 = vmatprep.mubr.bf16.mxu0 0
  %3428 = vmatmul.mubr.bf16.gmra.mxu0 %v3369
  %v3429 = vpop.f32.mrf.mxu0
  %v3430 = vadd.f32 0.0, %v3429
  %v3431 = vpop.f32.mrf.mxu0
  %v3432 = vadd.f32 0.0, %v3431
  %v3433 = vpop.f32.mrf.mxu0
  %v3434 = vpop.f32.mrf.mxu0
  %3435 = vdwg.mxu0
  %3436 = vmatprep.subr.bf16.mxu0 0
  %3437 = vmatpush1.bf16.msra.mxu0 0
  %3438 = vmatprep.subr.bf16.mxu0 0
  %3439 = vmatpush1.bf16.msra.mxu0 0
  %3440 = vmatprep.subr.bf16.mxu0 0
  %3441 = vmatpush1.bf16.msra.mxu0 0
  %3442 = vmatprep.subr.bf16.mxu0 0
  %3443 = vmatpush1.bf16.msra.mxu0 0
  %3444 = vmatprep.subr.bf16.mxu0 0
  %3445 = vmatpush1.bf16.msra.mxu0 0
  %3446 = vmatprep.subr.bf16.mxu0 0
  %3447 = vmatpush1.bf16.msra.mxu0 0
  %3448 = vmatprep.subr.bf16.mxu0 0
  %3449 = vmatpush1.bf16.msra.mxu0 0
  %3450 = vmatprep.subr.bf16.mxu0 %v3381
  %3451 = vmatpush1.bf16.msra.mxu0 %v3378
  %3452 = vmatprep.subr.bf16.mxu0 0
  %3453 = vmatpush2.bf16.msra.mxu0 0
  %3454 = vmatprep.subr.bf16.mxu0 0
  %3455 = vmatpush2.bf16.msra.mxu0 0
  %3456 = vmatprep.subr.bf16.mxu0 0
  %3457 = vmatpush2.bf16.msra.mxu0 0
  %3458 = vmatprep.subr.bf16.mxu0 0
  %3459 = vmatpush2.bf16.msra.mxu0 0
  %3460 = vmatprep.subr.bf16.mxu0 0
  %3461 = vmatpush2.bf16.msra.mxu0 0
  %3462 = vmatprep.subr.bf16.mxu0 0
  %3463 = vmatpush2.bf16.msra.mxu0 0
  %3464 = vmatprep.subr.bf16.mxu0 0
  %3465 = vmatpush2.bf16.msra.mxu0 0
  %3466 = vmatprep.subr.bf16.mxu0 0
  %3467 = vmatpush2.bf16.msra.mxu0 0
  %3468 = vmatprep.mubr.bf16.mxu0 0
  %3469 = vmatmul.mubr.bf16.gmra.mxu0 %v3369
  %v3470 = vpop.f32.mrf.mxu0
  %v3471 = vadd.f32 0.0, %v3470
  %v3472 = vpop.f32.mrf.mxu0
  %v3473 = vadd.f32 0.0, %v3472
  %v3474 = vpop.f32.mrf.mxu0
  %v3475 = vpop.f32.mrf.mxu0
  %3476 = vdwg.mxu0
  %3477 = vmatprep.subr.bf16.mxu0 0
  %3478 = vmatpush1.bf16.msra.mxu0 0
  %3479 = vmatprep.subr.bf16.mxu0 0
  %3480 = vmatpush1.bf16.msra.mxu0 0
  %3481 = vmatprep.subr.bf16.mxu0 0
  %3482 = vmatpush1.bf16.msra.mxu0 0
  %3483 = vmatprep.subr.bf16.mxu0 0
  %3484 = vmatpush1.bf16.msra.mxu0 0
  %3485 = vmatprep.subr.bf16.mxu0 0
  %3486 = vmatpush1.bf16.msra.mxu0 0
  %3487 = vmatprep.subr.bf16.mxu0 0
  %3488 = vmatpush1.bf16.msra.mxu0 0
  %3489 = vmatprep.subr.bf16.mxu0 0
  %3490 = vmatpush1.bf16.msra.mxu0 0
  %3491 = vmatprep.subr.bf16.mxu0 %v3387
  %3492 = vmatpush1.bf16.msra.mxu0 %v3384
  %3493 = vmatprep.subr.bf16.mxu0 0
  %3494 = vmatpush2.bf16.msra.mxu0 0
  %3495 = vmatprep.subr.bf16.mxu0 0
  %3496 = vmatpush2.bf16.msra.mxu0 0
  %3497 = vmatprep.subr.bf16.mxu0 0
  %3498 = vmatpush2.bf16.msra.mxu0 0
  %3499 = vmatprep.subr.bf16.mxu0 0
  %3500 = vmatpush2.bf16.msra.mxu0 0
  %3501 = vmatprep.subr.bf16.mxu0 0
  %3502 = vmatpush2.bf16.msra.mxu0 0
  %3503 = vmatprep.subr.bf16.mxu0 0
  %3504 = vmatpush2.bf16.msra.mxu0 0
  %3505 = vmatprep.subr.bf16.mxu0 0
  %3506 = vmatpush2.bf16.msra.mxu0 0
  %3507 = vmatprep.subr.bf16.mxu0 0
  %3508 = vmatpush2.bf16.msra.mxu0 0
  %3509 = vmatprep.mubr.bf16.mxu0 0
  %3510 = vmatmul.mubr.bf16.gmra.mxu0 %v3369
  %v3511 = vpop.f32.mrf.mxu0
  %v3512 = vadd.f32 0.0, %v3511
  %v3513 = vpop.f32.mrf.mxu0
  %v3514 = vadd.f32 0.0, %v3513
  %v3515 = vpop.f32.mrf.mxu0
  %v3516 = vpop.f32.mrf.mxu0
  %3517 = vdwg.mxu0
  %3518 = vmatprep.subr.bf16.mxu0 0
  %3519 = vmatpush1.bf16.msra.mxu0 0
  %3520 = vmatprep.subr.bf16.mxu0 0
  %3521 = vmatpush1.bf16.msra.mxu0 0
  %3522 = vmatprep.subr.bf16.mxu0 0
  %3523 = vmatpush1.bf16.msra.mxu0 0
  %3524 = vmatprep.subr.bf16.mxu0 0
  %3525 = vmatpush1.bf16.msra.mxu0 0
  %3526 = vmatprep.subr.bf16.mxu0 0
  %3527 = vmatpush1.bf16.msra.mxu0 0
  %3528 = vmatprep.subr.bf16.mxu0 0
  %3529 = vmatpush1.bf16.msra.mxu0 0
  %3530 = vmatprep.subr.bf16.mxu0 0
  %3531 = vmatpush1.bf16.msra.mxu0 0
  %3532 = vmatprep.subr.bf16.mxu0 %v3393
  %3533 = vmatpush1.bf16.msra.mxu0 %v3390
  %3534 = vmatprep.subr.bf16.mxu0 0
  %3535 = vmatpush2.bf16.msra.mxu0 0
  %3536 = vmatprep.subr.bf16.mxu0 0
  %3537 = vmatpush2.bf16.msra.mxu0 0
  %3538 = vmatprep.subr.bf16.mxu0 0
  %3539 = vmatpush2.bf16.msra.mxu0 0
  %3540 = vmatprep.subr.bf16.mxu0 0
  %3541 = vmatpush2.bf16.msra.mxu0 0
  %3542 = vmatprep.subr.bf16.mxu0 0
  %3543 = vmatpush2.bf16.msra.mxu0 0
  %3544 = vmatprep.subr.bf16.mxu0 0
  %3545 = vmatpush2.bf16.msra.mxu0 0
  %3546 = vmatprep.subr.bf16.mxu0 0
  %3547 = vmatpush2.bf16.msra.mxu0 0
  %3548 = vmatprep.subr.bf16.mxu0 0
  %3549 = vmatpush2.bf16.msra.mxu0 0
  %3550 = vmatprep.mubr.bf16.mxu0 0
  %3551 = vmatmul.mubr.bf16.gmra.mxu0 %v3369
  %v3552 = vpop.f32.mrf.mxu0
  %v3553 = vadd.f32 0.0, %v3552
  %v3554 = vpop.f32.mrf.mxu0
  %v3555 = vadd.f32 0.0, %v3554
  %v3556 = vpop.f32.mrf.mxu0
  %v3557 = vpop.f32.mrf.mxu0
  %3558 = vdwg.mxu0
  %v3815 = vunpack.c.l.b16 %v3085
  %v3816 = vunpack.c.h.b16 %v3085
  %v3817 = vunpack.c.l.b16 %v3086
  %v3818 = vunpack.c.h.b16 %v3086
  %v3819 = vunpack.c.l.b16 %v3087
  %v3820 = vunpack.c.h.b16 %v3087
  %v3821 = vunpack.c.l.b16 %v3088
  %v3822 = vunpack.c.h.b16 %v3088
  %v3823 = vunpack.c.l.b16 %v3089
  %v3824 = vunpack.c.h.b16 %v3089
  %v3825 = vunpack.c.l.b16 %v3090
  %v3826 = vunpack.c.h.b16 %v3090
  %v3827 = vunpack.c.l.b16 %v3091
  %v3828 = vunpack.c.h.b16 %v3091
  %v3829 = vunpack.c.l.b16 %v3092
  %v3830 = vunpack.c.h.b16 %v3092
  %v3831 = vunpack.c.l.b16 %v3093
  %v3832 = vunpack.c.h.b16 %v3093
  %v3833 = vunpack.c.l.b16 %v3094
  %v3834 = vunpack.c.h.b16 %v3094
  %v3835 = vunpack.c.l.b16 %v3095
  %v3836 = vunpack.c.h.b16 %v3095
  %v3837 = vunpack.c.l.b16 %v3096
  %v3838 = vunpack.c.h.b16 %v3096
  %v3839 = vunpack.c.l.b16 %v3097
  %v3840 = vunpack.c.h.b16 %v3097
  %v3841 = vunpack.c.l.b16 %v3098
  %v3842 = vunpack.c.h.b16 %v3098
  %v3843 = vunpack.c.l.b16 %v3099
  %v3844 = vunpack.c.h.b16 %v3099
  %v3845 = vunpack.c.l.b16 %v3100
  %v3846 = vunpack.c.h.b16 %v3100
  %v3847 = vunpack.c.l.b16 %v3101
  %v3848 = vunpack.c.h.b16 %v3101
  %v3849 = vunpack.c.l.b16 %v3102
  %v3850 = vunpack.c.h.b16 %v3102
  %v3851 = vunpack.c.l.b16 %v3103
  %v3852 = vunpack.c.h.b16 %v3103
  %v3853 = vunpack.c.l.b16 %v3104
  %v3854 = vunpack.c.h.b16 %v3104
  %v3855 = vunpack.c.l.b16 %v3105
  %v3856 = vunpack.c.h.b16 %v3105
  %v3857 = vunpack.c.l.b16 %v3106
  %v3858 = vunpack.c.h.b16 %v3106
  %v3859 = vunpack.c.l.b16 %v3107
  %v3860 = vunpack.c.h.b16 %v3107
  %v3861 = vunpack.c.l.b16 %v3108
  %v3862 = vunpack.c.h.b16 %v3108
  %v3863 = vunpack.c.l.b16 %v3109
  %v3864 = vunpack.c.h.b16 %v3109
  %v3865 = vunpack.c.l.b16 %v3110
  %v3866 = vunpack.c.h.b16 %v3110
  %v3867 = vunpack.c.l.b16 %v3111
  %v3868 = vunpack.c.h.b16 %v3111
  %v3869 = vunpack.c.l.b16 %v3112
  %v3870 = vunpack.c.h.b16 %v3112
  %v3871 = vunpack.c.l.b16 %v3113
  %v3872 = vunpack.c.h.b16 %v3113
  %v3873 = vunpack.c.l.b16 %v3114
  %v3874 = vunpack.c.h.b16 %v3114
  %v3875 = vunpack.c.l.b16 %v3115
  %v3876 = vunpack.c.h.b16 %v3115
  %v3877 = vunpack.c.l.b16 %v3116
  %v3878 = vunpack.c.h.b16 %v3116
  %v3879 = vunpack.c.l.b16 %v3117
  %v3880 = vunpack.c.h.b16 %v3117
  %v3881 = vunpack.c.l.b16 %v3118
  %v3882 = vunpack.c.h.b16 %v3118
  %v3883 = vunpack.c.l.b16 %v3119
  %v3884 = vunpack.c.h.b16 %v3119
  %v3885 = vunpack.c.l.b16 %v3120
  %v3886 = vunpack.c.h.b16 %v3120
  %v3887 = vunpack.c.l.b16 %v3121
  %v3888 = vunpack.c.h.b16 %v3121
  %v3889 = vunpack.c.l.b16 %v3122
  %v3890 = vunpack.c.h.b16 %v3122
  %v3891 = vunpack.c.l.b16 %v3123
  %v3892 = vunpack.c.h.b16 %v3123
  %v3893 = vunpack.c.l.b16 %v3124
  %v3894 = vunpack.c.h.b16 %v3124
  %v3895 = vunpack.c.l.b16 %v3125
  %v3896 = vunpack.c.h.b16 %v3125
  %v3897 = vunpack.c.l.b16 %v3126
  %v3898 = vunpack.c.h.b16 %v3126
  %v3899 = vunpack.c.l.b16 %v3127
  %v3900 = vunpack.c.h.b16 %v3127
  %v3901 = vunpack.c.l.b16 %v3128
  %v3902 = vunpack.c.h.b16 %v3128
  %v3903 = vunpack.c.l.b16 %v3129
  %v3904 = vunpack.c.h.b16 %v3129
  %v3905 = vunpack.c.l.b16 %v3130
  %v3906 = vunpack.c.h.b16 %v3130
  %v3907 = vunpack.c.l.b16 %v3131
  %v3908 = vunpack.c.h.b16 %v3131
  %v3909 = vunpack.c.l.b16 %v3132
  %v3910 = vunpack.c.h.b16 %v3132
  %v3911 = vunpack.c.l.b16 %v3133
  %v3912 = vunpack.c.h.b16 %v3133
  %v3913 = vunpack.c.l.b16 %v3134
  %v3914 = vunpack.c.h.b16 %v3134
  %v3915 = vunpack.c.l.b16 %v3135
  %v3916 = vunpack.c.h.b16 %v3135
  %v3917 = vunpack.c.l.b16 %v3136
  %v3918 = vunpack.c.h.b16 %v3136
  %v3919 = vunpack.c.l.b16 %v3137
  %v3920 = vunpack.c.h.b16 %v3137
  %v3921 = vunpack.c.l.b16 %v3138
  %v3922 = vunpack.c.h.b16 %v3138
  %v3923 = vunpack.c.l.b16 %v3139
  %v3924 = vunpack.c.h.b16 %v3139
  %v3925 = vunpack.c.l.b16 %v3140
  %v3926 = vunpack.c.h.b16 %v3140
  %v3927 = vunpack.c.l.b16 %v3141
  %v3928 = vunpack.c.h.b16 %v3141
  %v3929 = vunpack.c.l.b16 %v3142
  %v3930 = vunpack.c.h.b16 %v3142
  %v3931 = vunpack.c.l.b16 %v3143
  %v3932 = vunpack.c.h.b16 %v3143
  %v3933 = vunpack.c.l.b16 %v3144
  %v3934 = vunpack.c.h.b16 %v3144
  %v3935 = vunpack.c.l.b16 %v3145
  %v3936 = vunpack.c.h.b16 %v3145
  %v3937 = vunpack.c.l.b16 %v3146
  %v3938 = vunpack.c.h.b16 %v3146
  %v3939 = vunpack.c.l.b16 %v3147
  %v3940 = vunpack.c.h.b16 %v3147
  %v3941 = vunpack.c.l.b16 %v3148
  %v3942 = vunpack.c.h.b16 %v3148
  %v3943 = vunpack.c.l.b16 %v3149
  %v3944 = vunpack.c.h.b16 %v3149
  %v3945 = vunpack.c.l.b16 %v3150
  %v3946 = vunpack.c.h.b16 %v3150
  %v3947 = vunpack.c.l.b16 %v3151
  %v3948 = vunpack.c.h.b16 %v3151
  %v3949 = vunpack.c.l.b16 %v3152
  %v3950 = vunpack.c.h.b16 %v3152
  %v3951 = vunpack.c.l.b16 %v3153
  %v3952 = vunpack.c.h.b16 %v3153
  %v3953 = vunpack.c.l.b16 %v3154
  %v3954 = vunpack.c.h.b16 %v3154
  %v3955 = vunpack.c.l.b16 %v3155
  %v3956 = vunpack.c.h.b16 %v3155
  %v3957 = vunpack.c.l.b16 %v3156
  %v3958 = vunpack.c.h.b16 %v3156
  %v3959 = vunpack.c.l.b16 %v3157
  %v3960 = vunpack.c.h.b16 %v3157
  %v3961 = vunpack.c.l.b16 %v3158
  %v3962 = vunpack.c.h.b16 %v3158
  %v3963 = vunpack.c.l.b16 %v3159
  %v3964 = vunpack.c.h.b16 %v3159
  %v3965 = vunpack.c.l.b16 %v3160
  %v3966 = vunpack.c.h.b16 %v3160
  %v3967 = vunpack.c.l.b16 %v3161
  %v3968 = vunpack.c.h.b16 %v3161
  %v3969 = vunpack.c.l.b16 %v3162
  %v3970 = vunpack.c.h.b16 %v3162
  %v3971 = vunpack.c.l.b16 %v3163
  %v3972 = vunpack.c.h.b16 %v3163
  %v3973 = vunpack.c.l.b16 %v3164
  %v3974 = vunpack.c.h.b16 %v3164
  %v3975 = vunpack.c.l.b16 %v3165
  %v3976 = vunpack.c.h.b16 %v3165
  %v3977 = vunpack.c.l.b16 %v3166
  %v3978 = vunpack.c.h.b16 %v3166
  %v3979 = vunpack.c.l.b16 %v3167
  %v3980 = vunpack.c.h.b16 %v3167
  %v3981 = vunpack.c.l.b16 %v3168
  %v3982 = vunpack.c.h.b16 %v3168
  %v3983 = vunpack.c.l.b16 %v3169
  %v3984 = vunpack.c.h.b16 %v3169
  %v3985 = vunpack.c.l.b16 %v3170
  %v3986 = vunpack.c.h.b16 %v3170
  %v3987 = vunpack.c.l.b16 %v3171
  %v3988 = vunpack.c.h.b16 %v3171
  %v3989 = vunpack.c.l.b16 %v3172
  %v3990 = vunpack.c.h.b16 %v3172
  %v3991 = vunpack.c.l.b16 %v3173
  %v3992 = vunpack.c.h.b16 %v3173
  %v3993 = vunpack.c.l.b16 %v3174
  %v3994 = vunpack.c.h.b16 %v3174
  %v3995 = vunpack.c.l.b16 %v3175
  %v3996 = vunpack.c.h.b16 %v3175
  %v3997 = vunpack.c.l.b16 %v3176
  %v3998 = vunpack.c.h.b16 %v3176
  %v3999 = vunpack.c.l.b16 %v3177
  %v4000 = vunpack.c.h.b16 %v3177
  %v4001 = vunpack.c.l.b16 %v3178
  %v4002 = vunpack.c.h.b16 %v3178
  %v4003 = vunpack.c.l.b16 %v3179
  %v4004 = vunpack.c.h.b16 %v3179
  %v4005 = vunpack.c.l.b16 %v3180
  %v4006 = vunpack.c.h.b16 %v3180
  %v4007 = vunpack.c.l.b16 %v3181
  %v4008 = vunpack.c.h.b16 %v3181
  %v4009 = vunpack.c.l.b16 %v3182
  %v4010 = vunpack.c.h.b16 %v3182
  %v4011 = vunpack.c.l.b16 %v3183
  %v4012 = vunpack.c.h.b16 %v3183
  %v4013 = vunpack.c.l.b16 %v3184
  %v4014 = vunpack.c.h.b16 %v3184
  %v4015 = vunpack.c.l.b16 %v3185
  %v4016 = vunpack.c.h.b16 %v3185
  %v4017 = vunpack.c.l.b16 %v3186
  %v4018 = vunpack.c.h.b16 %v3186
  %v4019 = vunpack.c.l.b16 %v3187
  %v4020 = vunpack.c.h.b16 %v3187
  %v4021 = vunpack.c.l.b16 %v3188
  %v4022 = vunpack.c.h.b16 %v3188
  %v4023 = vunpack.c.l.b16 %v3189
  %v4024 = vunpack.c.h.b16 %v3189
  %v4025 = vunpack.c.l.b16 %v3190
  %v4026 = vunpack.c.h.b16 %v3190
  %v4027 = vunpack.c.l.b16 %v3191
  %v4028 = vunpack.c.h.b16 %v3191
  %v4029 = vunpack.c.l.b16 %v3192
  %v4030 = vunpack.c.h.b16 %v3192
  %v4031 = vunpack.c.l.b16 %v3193
  %v4032 = vunpack.c.h.b16 %v3193
  %v4033 = vunpack.c.l.b16 %v3194
  %v4034 = vunpack.c.h.b16 %v3194
  %v4035 = vunpack.c.l.b16 %v3195
  %v4036 = vunpack.c.h.b16 %v3195
  %v4037 = vunpack.c.l.b16 %v3196
  %v4038 = vunpack.c.h.b16 %v3196
  %v4039 = vunpack.c.l.b16 %v3197
  %v4040 = vunpack.c.h.b16 %v3197
  %v4041 = vunpack.c.l.b16 %v3198
  %v4042 = vunpack.c.h.b16 %v3198
  %v4043 = vunpack.c.l.b16 %v3199
  %v4044 = vunpack.c.h.b16 %v3199
  %v4045 = vunpack.c.l.b16 %v3200
  %v4046 = vunpack.c.h.b16 %v3200
  %v4047 = vunpack.c.l.b16 %v3201
  %v4048 = vunpack.c.h.b16 %v3201
  %v4049 = vunpack.c.l.b16 %v3202
  %v4050 = vunpack.c.h.b16 %v3202
  %v4051 = vunpack.c.l.b16 %v3203
  %v4052 = vunpack.c.h.b16 %v3203
  %v4053 = vunpack.c.l.b16 %v3204
  %v4054 = vunpack.c.h.b16 %v3204
  %v4055 = vunpack.c.l.b16 %v3205
  %v4056 = vunpack.c.h.b16 %v3205
  %v4057 = vunpack.c.l.b16 %v3206
  %v4058 = vunpack.c.h.b16 %v3206
  %v4059 = vunpack.c.l.b16 %v3207
  %v4060 = vunpack.c.h.b16 %v3207
  %v4061 = vunpack.c.l.b16 %v3208
  %v4062 = vunpack.c.h.b16 %v3208
  %v4063 = vunpack.c.l.b16 %v3209
  %v4064 = vunpack.c.h.b16 %v3209
  %v4065 = vunpack.c.l.b16 %v3210
  %v4066 = vunpack.c.h.b16 %v3210
  %v4067 = vunpack.c.l.b16 %v3211
  %v4068 = vunpack.c.h.b16 %v3211
  %v4069 = vunpack.c.l.b16 %v3212
  %v4070 = vunpack.c.h.b16 %v3212
  %v4071 = vunpack.c.l.b16 %v3213
  %v4072 = vunpack.c.h.b16 %v3213
  %v4073 = vunpack.c.l.b16 %v3214
  %v4074 = vunpack.c.h.b16 %v3214
  %v4075 = vunpack.c.l.b16 %v3215
  %v4076 = vunpack.c.h.b16 %v3215
  %v4077 = vunpack.c.l.b16 %v3216
  %v4078 = vunpack.c.h.b16 %v3216
  %v4079 = vunpack.c.l.b16 %v3217
  %v4080 = vunpack.c.h.b16 %v3217
  %v4081 = vunpack.c.l.b16 %v3218
  %v4082 = vunpack.c.h.b16 %v3218
  %v4083 = vunpack.c.l.b16 %v3219
  %v4084 = vunpack.c.h.b16 %v3219
  %v4085 = vunpack.c.l.b16 %v3220
  %v4086 = vunpack.c.h.b16 %v3220
  %v4087 = vunpack.c.l.b16 %v3221
  %v4088 = vunpack.c.h.b16 %v3221
  %v4089 = vunpack.c.l.b16 %v3222
  %v4090 = vunpack.c.h.b16 %v3222
  %v4091 = vunpack.c.l.b16 %v3223
  %v4092 = vunpack.c.h.b16 %v3223
  %v4093 = vunpack.c.l.b16 %v3224
  %v4094 = vunpack.c.h.b16 %v3224
  %v4095 = vunpack.c.l.b16 %v3225
  %v4096 = vunpack.c.h.b16 %v3225
  %v4097 = vunpack.c.l.b16 %v3226
  %v4098 = vunpack.c.h.b16 %v3226
  %v4099 = vunpack.c.l.b16 %v3227
  %v4100 = vunpack.c.h.b16 %v3227
  %v4101 = vunpack.c.l.b16 %v3228
  %v4102 = vunpack.c.h.b16 %v3228
  %v4103 = vunpack.c.l.b16 %v3229
  %v4104 = vunpack.c.h.b16 %v3229
  %v4105 = vunpack.c.l.b16 %v3230
  %v4106 = vunpack.c.h.b16 %v3230
  %v4107 = vunpack.c.l.b16 %v3231
  %v4108 = vunpack.c.h.b16 %v3231
  %v4109 = vunpack.c.l.b16 %v3232
  %v4110 = vunpack.c.h.b16 %v3232
  %v4111 = vunpack.c.l.b16 %v3233
  %v4112 = vunpack.c.h.b16 %v3233
  %v4113 = vunpack.c.l.b16 %v3234
  %v4114 = vunpack.c.h.b16 %v3234
  %v4115 = vunpack.c.l.b16 %v3235
  %v4116 = vunpack.c.h.b16 %v3235
  %v4117 = vunpack.c.l.b16 %v3236
  %v4118 = vunpack.c.h.b16 %v3236
  %v4119 = vunpack.c.l.b16 %v3237
  %v4120 = vunpack.c.h.b16 %v3237
  %v4121 = vunpack.c.l.b16 %v3238
  %v4122 = vunpack.c.h.b16 %v3238
  %v4123 = vunpack.c.l.b16 %v3239
  %v4124 = vunpack.c.h.b16 %v3239
  %v4125 = vunpack.c.l.b16 %v3240
  %v4126 = vunpack.c.h.b16 %v3240
  %v4127 = vunpack.c.l.b16 %v3241
  %v4128 = vunpack.c.h.b16 %v3241
  %v4129 = vunpack.c.l.b16 %v3242
  %v4130 = vunpack.c.h.b16 %v3242
  %v4131 = vunpack.c.l.b16 %v3243
  %v4132 = vunpack.c.h.b16 %v3243
  %v4133 = vunpack.c.l.b16 %v3244
  %v4134 = vunpack.c.h.b16 %v3244
  %v4135 = vunpack.c.l.b16 %v3245
  %v4136 = vunpack.c.h.b16 %v3245
  %v4137 = vunpack.c.l.b16 %v3246
  %v4138 = vunpack.c.h.b16 %v3246
  %v4139 = vunpack.c.l.b16 %v3247
  %v4140 = vunpack.c.h.b16 %v3247
  %v4141 = vunpack.c.l.b16 %v3248
  %v4142 = vunpack.c.h.b16 %v3248
  %v4143 = vunpack.c.l.b16 %v3249
  %v4144 = vunpack.c.h.b16 %v3249
  %v4145 = vunpack.c.l.b16 %v3250
  %v4146 = vunpack.c.h.b16 %v3250
  %v4147 = vunpack.c.l.b16 %v3251
  %v4148 = vunpack.c.h.b16 %v3251
  %v4149 = vunpack.c.l.b16 %v3252
  %v4150 = vunpack.c.h.b16 %v3252
  %v4151 = vunpack.c.l.b16 %v3253
  %v4152 = vunpack.c.h.b16 %v3253
  %v4153 = vunpack.c.l.b16 %v3254
  %v4154 = vunpack.c.h.b16 %v3254
  %v4155 = vunpack.c.l.b16 %v3255
  %v4156 = vunpack.c.h.b16 %v3255
  %v4157 = vunpack.c.l.b16 %v3256
  %v4158 = vunpack.c.h.b16 %v3256
  %v4159 = vunpack.c.l.b16 %v3257
  %v4160 = vunpack.c.h.b16 %v3257
  %v4161 = vunpack.c.l.b16 %v3258
  %v4162 = vunpack.c.h.b16 %v3258
  %v4163 = vunpack.c.l.b16 %v3259
  %v4164 = vunpack.c.h.b16 %v3259
  %v4165 = vunpack.c.l.b16 %v3260
  %v4166 = vunpack.c.h.b16 %v3260
  %v4167 = vunpack.c.l.b16 %v3261
  %v4168 = vunpack.c.h.b16 %v3261
  %v4169 = vunpack.c.l.b16 %v3262
  %v4170 = vunpack.c.h.b16 %v3262
  %v4171 = vunpack.c.l.b16 %v3263
  %v4172 = vunpack.c.h.b16 %v3263
  %v4173 = vunpack.c.l.b16 %v3264
  %v4174 = vunpack.c.h.b16 %v3264
  %v4175 = vunpack.c.l.b16 %v3265
  %v4176 = vunpack.c.h.b16 %v3265
  %v4177 = vunpack.c.l.b16 %v3266
  %v4178 = vunpack.c.h.b16 %v3266
  %v4179 = vunpack.c.l.b16 %v3267
  %v4180 = vunpack.c.h.b16 %v3267
  %v4181 = vunpack.c.l.b16 %v3268
  %v4182 = vunpack.c.h.b16 %v3268
  %v4183 = vunpack.c.l.b16 %v3269
  %v4184 = vunpack.c.h.b16 %v3269
  %v4185 = vunpack.c.l.b16 %v3270
  %v4186 = vunpack.c.h.b16 %v3270
  %v4187 = vunpack.c.l.b16 %v3271
  %v4188 = vunpack.c.h.b16 %v3271
  %v4189 = vunpack.c.l.b16 %v3272
  %v4190 = vunpack.c.h.b16 %v3272
  %v4191 = vunpack.c.l.b16 %v3273
  %v4192 = vunpack.c.h.b16 %v3273
  %v4193 = vunpack.c.l.b16 %v3274
  %v4194 = vunpack.c.h.b16 %v3274
  %v4195 = vunpack.c.l.b16 %v3275
  %v4196 = vunpack.c.h.b16 %v3275
  %v4197 = vunpack.c.l.b16 %v3276
  %v4198 = vunpack.c.h.b16 %v3276
  %v4199 = vunpack.c.l.b16 %v3277
  %v4200 = vunpack.c.h.b16 %v3277
  %v4201 = vunpack.c.l.b16 %v3278
  %v4202 = vunpack.c.h.b16 %v3278
  %v4203 = vunpack.c.l.b16 %v3279
  %v4204 = vunpack.c.h.b16 %v3279
  %v4205 = vunpack.c.l.b16 %v3280
  %v4206 = vunpack.c.h.b16 %v3280
  %v4207 = vunpack.c.l.b16 %v3281
  %v4208 = vunpack.c.h.b16 %v3281
  %v4209 = vunpack.c.l.b16 %v3282
  %v4210 = vunpack.c.h.b16 %v3282
  %v4211 = vunpack.c.l.b16 %v3283
  %v4212 = vunpack.c.h.b16 %v3283
  %v4213 = vunpack.c.l.b16 %v3284
  %v4214 = vunpack.c.h.b16 %v3284
  %v4215 = vunpack.c.l.b16 %v3285
  %v4216 = vunpack.c.h.b16 %v3285
  %v4217 = vunpack.c.l.b16 %v3286
  %v4218 = vunpack.c.h.b16 %v3286
  %v4219 = vunpack.c.l.b16 %v3287
  %v4220 = vunpack.c.h.b16 %v3287
  %v4221 = vunpack.c.l.b16 %v3288
  %v4222 = vunpack.c.h.b16 %v3288
  %v4223 = vunpack.c.l.b16 %v3289
  %v4224 = vunpack.c.h.b16 %v3289
  %v4225 = vunpack.c.l.b16 %v3290
  %v4226 = vunpack.c.h.b16 %v3290
  %v4227 = vunpack.c.l.b16 %v3291
  %v4228 = vunpack.c.h.b16 %v3291
  %v4229 = vunpack.c.l.b16 %v3292
  %v4230 = vunpack.c.h.b16 %v3292
  %v4231 = vunpack.c.l.b16 %v3293
  %v4232 = vunpack.c.h.b16 %v3293
  %v4233 = vunpack.c.l.b16 %v3294
  %v4234 = vunpack.c.h.b16 %v3294
  %v4235 = vunpack.c.l.b16 %v3295
  %v4236 = vunpack.c.h.b16 %v3295
  %v4237 = vunpack.c.l.b16 %v3296
  %v4238 = vunpack.c.h.b16 %v3296
  %v4239 = vunpack.c.l.b16 %v3297
  %v4240 = vunpack.c.h.b16 %v3297
  %v4241 = vunpack.c.l.b16 %v3298
  %v4242 = vunpack.c.h.b16 %v3298
  %v4243 = vunpack.c.l.b16 %v3299
  %v4244 = vunpack.c.h.b16 %v3299
  %v4245 = vunpack.c.l.b16 %v3300
  %v4246 = vunpack.c.h.b16 %v3300
  %v4247 = vunpack.c.l.b16 %v3301
  %v4248 = vunpack.c.h.b16 %v3301
  %v4249 = vunpack.c.l.b16 %v3302
  %v4250 = vunpack.c.h.b16 %v3302
  %v4251 = vunpack.c.l.b16 %v3303
  %v4252 = vunpack.c.h.b16 %v3303
  %v4253 = vunpack.c.l.b16 %v3304
  %v4254 = vunpack.c.h.b16 %v3304
  %v4255 = vunpack.c.l.b16 %v3305
  %v4256 = vunpack.c.h.b16 %v3305
  %v4257 = vunpack.c.l.b16 %v3306
  %v4258 = vunpack.c.h.b16 %v3306
  %v4259 = vunpack.c.l.b16 %v3307
  %v4260 = vunpack.c.h.b16 %v3307
  %v4261 = vunpack.c.l.b16 %v3308
  %v4262 = vunpack.c.h.b16 %v3308
  %v4263 = vunpack.c.l.b16 %v3309
  %v4264 = vunpack.c.h.b16 %v3309
  %v4265 = vunpack.c.l.b16 %v3310
  %v4266 = vunpack.c.h.b16 %v3310
  %v4267 = vunpack.c.l.b16 %v3311
  %v4268 = vunpack.c.h.b16 %v3311
  %v4269 = vunpack.c.l.b16 %v3312
  %v4270 = vunpack.c.h.b16 %v3312
  %v4271 = vunpack.c.l.b16 %v3313
  %v4272 = vunpack.c.h.b16 %v3313
  %v4273 = vunpack.c.l.b16 %v3314
  %v4274 = vunpack.c.h.b16 %v3314
  %v4275 = vunpack.c.l.b16 %v3315
  %v4276 = vunpack.c.h.b16 %v3315
  %v4277 = vunpack.c.l.b16 %v3316
  %v4278 = vunpack.c.h.b16 %v3316
  %v4279 = vunpack.c.l.b16 %v3317
  %v4280 = vunpack.c.h.b16 %v3317
  %v4281 = vunpack.c.l.b16 %v3318
  %v4282 = vunpack.c.h.b16 %v3318
  %v4283 = vunpack.c.l.b16 %v3319
  %v4284 = vunpack.c.h.b16 %v3319
  %v4285 = vunpack.c.l.b16 %v3320
  %v4286 = vunpack.c.h.b16 %v3320
  %v4287 = vunpack.c.l.b16 %v3321
  %v4288 = vunpack.c.h.b16 %v3321
  %v4289 = vunpack.c.l.b16 %v3322
  %v4290 = vunpack.c.h.b16 %v3322
  %v4291 = vunpack.c.l.b16 %v3323
  %v4292 = vunpack.c.h.b16 %v3323
  %v4293 = vunpack.c.l.b16 %v3324
  %v4294 = vunpack.c.h.b16 %v3324
  %v4295 = vunpack.c.l.b16 %v3325
  %v4296 = vunpack.c.h.b16 %v3325
  %v4297 = vunpack.c.l.b16 %v3326
  %v4298 = vunpack.c.h.b16 %v3326
  %v4299 = vunpack.c.l.b16 %v3327
  %v4300 = vunpack.c.h.b16 %v3327
  %v4301 = vunpack.c.l.b16 %v3328
  %v4302 = vunpack.c.h.b16 %v3328
  %v4303 = vunpack.c.l.b16 %v3329
  %v4304 = vunpack.c.h.b16 %v3329
  %v4305 = vunpack.c.l.b16 %v3330
  %v4306 = vunpack.c.h.b16 %v3330
  %v4307 = vunpack.c.l.b16 %v3331
  %v4308 = vunpack.c.h.b16 %v3331
  %v4309 = vunpack.c.l.b16 %v3332
  %v4310 = vunpack.c.h.b16 %v3332
  %v4311 = vunpack.c.l.b16 %v3333
  %v4312 = vunpack.c.h.b16 %v3333
  %v4313 = vunpack.c.l.b16 %v3334
  %v4314 = vunpack.c.h.b16 %v3334
  %v4315 = vunpack.c.l.b16 %v3335
  %v4316 = vunpack.c.h.b16 %v3335
  %v4317 = vunpack.c.l.b16 %v3336
  %v4318 = vunpack.c.h.b16 %v3336
  %v4319 = vunpack.c.l.b16 %v3337
  %v4320 = vunpack.c.h.b16 %v3337
  %v4321 = vunpack.c.l.b16 %v3338
  %v4322 = vunpack.c.h.b16 %v3338
  %v4323 = vunpack.c.l.b16 %v3339
  %v4324 = vunpack.c.h.b16 %v3339
  %v4325 = vunpack.c.l.b16 %v3340
  %v4326 = vunpack.c.h.b16 %v3340
  %v4327 = vpack.c.b16 %v3823, %v3815
  %v4328 = vpack.c.b16 %v3824, %v3816
  %v4329 = vpack.c.b16 %v3825, %v3817
  %v4330 = vpack.c.b16 %v3826, %v3818
  %v4331 = vpack.c.b16 %v3827, %v3819
  %v4332 = vpack.c.b16 %v3828, %v3820
  %v4333 = vpack.c.b16 %v3829, %v3821
  %v4334 = vpack.c.b16 %v3830, %v3822
  %v4335 = vpack.c.b16 %v3839, %v3831
  %v4336 = vpack.c.b16 %v3840, %v3832
  %v4337 = vpack.c.b16 %v3841, %v3833
  %v4338 = vpack.c.b16 %v3842, %v3834
  %v4339 = vpack.c.b16 %v3843, %v3835
  %v4340 = vpack.c.b16 %v3844, %v3836
  %v4341 = vpack.c.b16 %v3845, %v3837
  %v4342 = vpack.c.b16 %v3846, %v3838
  %v4343 = vpack.c.b16 %v3855, %v3847
  %v4344 = vpack.c.b16 %v3856, %v3848
  %v4345 = vpack.c.b16 %v3857, %v3849
  %v4346 = vpack.c.b16 %v3858, %v3850
  %v4347 = vpack.c.b16 %v3859, %v3851
  %v4348 = vpack.c.b16 %v3860, %v3852
  %v4349 = vpack.c.b16 %v3861, %v3853
  %v4350 = vpack.c.b16 %v3862, %v3854
  %v4351 = vpack.c.b16 %v3871, %v3863
  %v4352 = vpack.c.b16 %v3872, %v3864
  %v4353 = vpack.c.b16 %v3873, %v3865
  %v4354 = vpack.c.b16 %v3874, %v3866
  %v4355 = vpack.c.b16 %v3875, %v3867
  %v4356 = vpack.c.b16 %v3876, %v3868
  %v4357 = vpack.c.b16 %v3877, %v3869
  %v4358 = vpack.c.b16 %v3878, %v3870
  %v4359 = vpack.c.b16 %v3887, %v3879
  %v4360 = vpack.c.b16 %v3888, %v3880
  %v4361 = vpack.c.b16 %v3889, %v3881
  %v4362 = vpack.c.b16 %v3890, %v3882
  %v4363 = vpack.c.b16 %v3891, %v3883
  %v4364 = vpack.c.b16 %v3892, %v3884
  %v4365 = vpack.c.b16 %v3893, %v3885
  %v4366 = vpack.c.b16 %v3894, %v3886
  %v4367 = vpack.c.b16 %v3903, %v3895
  %v4368 = vpack.c.b16 %v3904, %v3896
  %v4369 = vpack.c.b16 %v3905, %v3897
  %v4370 = vpack.c.b16 %v3906, %v3898
  %v4371 = vpack.c.b16 %v3907, %v3899
  %v4372 = vpack.c.b16 %v3908, %v3900
  %v4373 = vpack.c.b16 %v3909, %v3901
  %v4374 = vpack.c.b16 %v3910, %v3902
  %v4375 = vpack.c.b16 %v3919, %v3911
  %v4376 = vpack.c.b16 %v3920, %v3912
  %v4377 = vpack.c.b16 %v3921, %v3913
  %v4378 = vpack.c.b16 %v3922, %v3914
  %v4379 = vpack.c.b16 %v3923, %v3915
  %v4380 = vpack.c.b16 %v3924, %v3916
  %v4381 = vpack.c.b16 %v3925, %v3917
  %v4382 = vpack.c.b16 %v3926, %v3918
  %v4383 = vpack.c.b16 %v3935, %v3927
  %v4384 = vpack.c.b16 %v3936, %v3928
  %v4385 = vpack.c.b16 %v3937, %v3929
  %v4386 = vpack.c.b16 %v3938, %v3930
  %v4387 = vpack.c.b16 %v3939, %v3931
  %v4388 = vpack.c.b16 %v3940, %v3932
  %v4389 = vpack.c.b16 %v3941, %v3933
  %v4390 = vpack.c.b16 %v3942, %v3934
  %v4391 = vpack.c.b16 %v3951, %v3943
  %v4392 = vpack.c.b16 %v3952, %v3944
  %v4393 = vpack.c.b16 %v3953, %v3945
  %v4394 = vpack.c.b16 %v3954, %v3946
  %v4395 = vpack.c.b16 %v3955, %v3947
  %v4396 = vpack.c.b16 %v3956, %v3948
  %v4397 = vpack.c.b16 %v3957, %v3949
  %v4398 = vpack.c.b16 %v3958, %v3950
  %v4399 = vpack.c.b16 %v3967, %v3959
  %v4400 = vpack.c.b16 %v3968, %v3960
  %v4401 = vpack.c.b16 %v3969, %v3961
  %v4402 = vpack.c.b16 %v3970, %v3962
  %v4403 = vpack.c.b16 %v3971, %v3963
  %v4404 = vpack.c.b16 %v3972, %v3964
  %v4405 = vpack.c.b16 %v3973, %v3965
  %v4406 = vpack.c.b16 %v3974, %v3966
  %v4407 = vpack.c.b16 %v3983, %v3975
  %v4408 = vpack.c.b16 %v3984, %v3976
  %v4409 = vpack.c.b16 %v3985, %v3977
  %v4410 = vpack.c.b16 %v3986, %v3978
  %v4411 = vpack.c.b16 %v3987, %v3979
  %v4412 = vpack.c.b16 %v3988, %v3980
  %v4413 = vpack.c.b16 %v3989, %v3981
  %v4414 = vpack.c.b16 %v3990, %v3982
  %v4415 = vpack.c.b16 %v3999, %v3991
  %v4416 = vpack.c.b16 %v4000, %v3992
  %v4417 = vpack.c.b16 %v4001, %v3993
  %v4418 = vpack.c.b16 %v4002, %v3994
  %v4419 = vpack.c.b16 %v4003, %v3995
  %v4420 = vpack.c.b16 %v4004, %v3996
  %v4421 = vpack.c.b16 %v4005, %v3997
  %v4422 = vpack.c.b16 %v4006, %v3998
  %v4423 = vpack.c.b16 %v4015, %v4007
  %v4424 = vpack.c.b16 %v4016, %v4008
  %v4425 = vpack.c.b16 %v4017, %v4009
  %v4426 = vpack.c.b16 %v4018, %v4010
  %v4427 = vpack.c.b16 %v4019, %v4011
  %v4428 = vpack.c.b16 %v4020, %v4012
  %v4429 = vpack.c.b16 %v4021, %v4013
  %v4430 = vpack.c.b16 %v4022, %v4014
  %v4431 = vpack.c.b16 %v4031, %v4023
  %v4432 = vpack.c.b16 %v4032, %v4024
  %v4433 = vpack.c.b16 %v4033, %v4025
  %v4434 = vpack.c.b16 %v4034, %v4026
  %v4435 = vpack.c.b16 %v4035, %v4027
  %v4436 = vpack.c.b16 %v4036, %v4028
  %v4437 = vpack.c.b16 %v4037, %v4029
  %v4438 = vpack.c.b16 %v4038, %v4030
  %v4439 = vpack.c.b16 %v4047, %v4039
  %v4440 = vpack.c.b16 %v4048, %v4040
  %v4441 = vpack.c.b16 %v4049, %v4041
  %v4442 = vpack.c.b16 %v4050, %v4042
  %v4443 = vpack.c.b16 %v4051, %v4043
  %v4444 = vpack.c.b16 %v4052, %v4044
  %v4445 = vpack.c.b16 %v4053, %v4045
  %v4446 = vpack.c.b16 %v4054, %v4046
  %v4447 = vpack.c.b16 %v4063, %v4055
  %v4448 = vpack.c.b16 %v4064, %v4056
  %v4449 = vpack.c.b16 %v4065, %v4057
  %v4450 = vpack.c.b16 %v4066, %v4058
  %v4451 = vpack.c.b16 %v4067, %v4059
  %v4452 = vpack.c.b16 %v4068, %v4060
  %v4453 = vpack.c.b16 %v4069, %v4061
  %v4454 = vpack.c.b16 %v4070, %v4062
  %v4455 = vpack.c.b16 %v4079, %v4071
  %v4456 = vpack.c.b16 %v4080, %v4072
  %v4457 = vpack.c.b16 %v4081, %v4073
  %v4458 = vpack.c.b16 %v4082, %v4074
  %v4459 = vpack.c.b16 %v4083, %v4075
  %v4460 = vpack.c.b16 %v4084, %v4076
  %v4461 = vpack.c.b16 %v4085, %v4077
  %v4462 = vpack.c.b16 %v4086, %v4078
  %v4463 = vpack.c.b16 %v4095, %v4087
  %v4464 = vpack.c.b16 %v4096, %v4088
  %v4465 = vpack.c.b16 %v4097, %v4089
  %v4466 = vpack.c.b16 %v4098, %v4090
  %v4467 = vpack.c.b16 %v4099, %v4091
  %v4468 = vpack.c.b16 %v4100, %v4092
  %v4469 = vpack.c.b16 %v4101, %v4093
  %v4470 = vpack.c.b16 %v4102, %v4094
  %v4471 = vpack.c.b16 %v4111, %v4103
  %v4472 = vpack.c.b16 %v4112, %v4104
  %v4473 = vpack.c.b16 %v4113, %v4105
  %v4474 = vpack.c.b16 %v4114, %v4106
  %v4475 = vpack.c.b16 %v4115, %v4107
  %v4476 = vpack.c.b16 %v4116, %v4108
  %v4477 = vpack.c.b16 %v4117, %v4109
  %v4478 = vpack.c.b16 %v4118, %v4110
  %v4479 = vpack.c.b16 %v4127, %v4119
  %v4480 = vpack.c.b16 %v4128, %v4120
  %v4481 = vpack.c.b16 %v4129, %v4121
  %v4482 = vpack.c.b16 %v4130, %v4122
  %v4483 = vpack.c.b16 %v4131, %v4123
  %v4484 = vpack.c.b16 %v4132, %v4124
  %v4485 = vpack.c.b16 %v4133, %v4125
  %v4486 = vpack.c.b16 %v4134, %v4126
  %v4487 = vpack.c.b16 %v4143, %v4135
  %v4488 = vpack.c.b16 %v4144, %v4136
  %v4489 = vpack.c.b16 %v4145, %v4137
  %v4490 = vpack.c.b16 %v4146, %v4138
  %v4491 = vpack.c.b16 %v4147, %v4139
  %v4492 = vpack.c.b16 %v4148, %v4140
  %v4493 = vpack.c.b16 %v4149, %v4141
  %v4494 = vpack.c.b16 %v4150, %v4142
  %v4495 = vpack.c.b16 %v4159, %v4151
  %v4496 = vpack.c.b16 %v4160, %v4152
  %v4497 = vpack.c.b16 %v4161, %v4153
  %v4498 = vpack.c.b16 %v4162, %v4154
  %v4499 = vpack.c.b16 %v4163, %v4155
  %v4500 = vpack.c.b16 %v4164, %v4156
  %v4501 = vpack.c.b16 %v4165, %v4157
  %v4502 = vpack.c.b16 %v4166, %v4158
  %v4503 = vpack.c.b16 %v4175, %v4167
  %v4504 = vpack.c.b16 %v4176, %v4168
  %v4505 = vpack.c.b16 %v4177, %v4169
  %v4506 = vpack.c.b16 %v4178, %v4170
  %v4507 = vpack.c.b16 %v4179, %v4171
  %v4508 = vpack.c.b16 %v4180, %v4172
  %v4509 = vpack.c.b16 %v4181, %v4173
  %v4510 = vpack.c.b16 %v4182, %v4174
  %v4511 = vpack.c.b16 %v4191, %v4183
  %v4512 = vpack.c.b16 %v4192, %v4184
  %v4513 = vpack.c.b16 %v4193, %v4185
  %v4514 = vpack.c.b16 %v4194, %v4186
  %v4515 = vpack.c.b16 %v4195, %v4187
  %v4516 = vpack.c.b16 %v4196, %v4188
  %v4517 = vpack.c.b16 %v4197, %v4189
  %v4518 = vpack.c.b16 %v4198, %v4190
  %v4519 = vpack.c.b16 %v4207, %v4199
  %v4520 = vpack.c.b16 %v4208, %v4200
  %v4521 = vpack.c.b16 %v4209, %v4201
  %v4522 = vpack.c.b16 %v4210, %v4202
  %v4523 = vpack.c.b16 %v4211, %v4203
  %v4524 = vpack.c.b16 %v4212, %v4204
  %v4525 = vpack.c.b16 %v4213, %v4205
  %v4526 = vpack.c.b16 %v4214, %v4206
  %v4527 = vpack.c.b16 %v4223, %v4215
  %v4528 = vpack.c.b16 %v4224, %v4216
  %v4529 = vpack.c.b16 %v4225, %v4217
  %v4530 = vpack.c.b16 %v4226, %v4218
  %v4531 = vpack.c.b16 %v4227, %v4219
  %v4532 = vpack.c.b16 %v4228, %v4220
  %v4533 = vpack.c.b16 %v4229, %v4221
  %v4534 = vpack.c.b16 %v4230, %v4222
  %v4535 = vpack.c.b16 %v4239, %v4231
  %v4536 = vpack.c.b16 %v4240, %v4232
  %v4537 = vpack.c.b16 %v4241, %v4233
  %v4538 = vpack.c.b16 %v4242, %v4234
  %v4539 = vpack.c.b16 %v4243, %v4235
  %v4540 = vpack.c.b16 %v4244, %v4236
  %v4541 = vpack.c.b16 %v4245, %v4237
  %v4542 = vpack.c.b16 %v4246, %v4238
  %v4543 = vpack.c.b16 %v4255, %v4247
  %v4544 = vpack.c.b16 %v4256, %v4248
  %v4545 = vpack.c.b16 %v4257, %v4249
  %v4546 = vpack.c.b16 %v4258, %v4250
  %v4547 = vpack.c.b16 %v4259, %v4251
  %v4548 = vpack.c.b16 %v4260, %v4252
  %v4549 = vpack.c.b16 %v4261, %v4253
  %v4550 = vpack.c.b16 %v4262, %v4254
  %v4551 = vpack.c.b16 %v4271, %v4263
  %v4552 = vpack.c.b16 %v4272, %v4264
  %v4553 = vpack.c.b16 %v4273, %v4265
  %v4554 = vpack.c.b16 %v4274, %v4266
  %v4555 = vpack.c.b16 %v4275, %v4267
  %v4556 = vpack.c.b16 %v4276, %v4268
  %v4557 = vpack.c.b16 %v4277, %v4269
  %v4558 = vpack.c.b16 %v4278, %v4270
  %v4559 = vpack.c.b16 %v4287, %v4279
  %v4560 = vpack.c.b16 %v4288, %v4280
  %v4561 = vpack.c.b16 %v4289, %v4281
  %v4562 = vpack.c.b16 %v4290, %v4282
  %v4563 = vpack.c.b16 %v4291, %v4283
  %v4564 = vpack.c.b16 %v4292, %v4284
  %v4565 = vpack.c.b16 %v4293, %v4285
  %v4566 = vpack.c.b16 %v4294, %v4286
  %v4567 = vpack.c.b16 %v4303, %v4295
  %v4568 = vpack.c.b16 %v4304, %v4296
  %v4569 = vpack.c.b16 %v4305, %v4297
  %v4570 = vpack.c.b16 %v4306, %v4298
  %v4571 = vpack.c.b16 %v4307, %v4299
  %v4572 = vpack.c.b16 %v4308, %v4300
  %v4573 = vpack.c.b16 %v4309, %v4301
  %v4574 = vpack.c.b16 %v4310, %v4302
  %v4575 = vpack.c.b16 %v4319, %v4311
  %v4576 = vpack.c.b16 %v4320, %v4312
  %v4577 = vpack.c.b16 %v4321, %v4313
  %v4578 = vpack.c.b16 %v4322, %v4314
  %v4579 = vpack.c.b16 %v4323, %v4315
  %v4580 = vpack.c.b16 %v4324, %v4316
  %v4581 = vpack.c.b16 %v4325, %v4317
  %v4582 = vpack.c.b16 %v4326, %v4318
  %4839 = vmatprep.subr.bf16.mxu0 %v4384
  %4840 = vmatpush1.bf16.msra.mxu0 %v4383
  %4841 = vmatprep.subr.bf16.mxu0 %v4376
  %4842 = vmatpush1.bf16.msra.mxu0 %v4375
  %4843 = vmatprep.subr.bf16.mxu0 %v4368
  %4844 = vmatpush1.bf16.msra.mxu0 %v4367
  %4845 = vmatprep.subr.bf16.mxu0 %v4360
  %4846 = vmatpush1.bf16.msra.mxu0 %v4359
  %4847 = vmatprep.subr.bf16.mxu0 %v4352
  %4848 = vmatpush1.bf16.msra.mxu0 %v4351
  %4849 = vmatprep.subr.bf16.mxu0 %v4344
  %4850 = vmatpush1.bf16.msra.mxu0 %v4343
  %4851 = vmatprep.subr.bf16.mxu0 %v4336
  %4852 = vmatpush1.bf16.msra.mxu0 %v4335
  %4853 = vmatprep.subr.bf16.mxu0 %v4328
  %4854 = vmatpush1.bf16.msra.mxu0 %v4327
  %4855 = vmatprep.subr.bf16.mxu0 %v4448
  %4856 = vmatpush2.bf16.msra.mxu0 %v4447
  %4857 = vmatprep.subr.bf16.mxu0 %v4440
  %4858 = vmatpush2.bf16.msra.mxu0 %v4439
  %4859 = vmatprep.subr.bf16.mxu0 %v4432
  %4860 = vmatpush2.bf16.msra.mxu0 %v4431
  %4861 = vmatprep.subr.bf16.mxu0 %v4424
  %4862 = vmatpush2.bf16.msra.mxu0 %v4423
  %4863 = vmatprep.subr.bf16.mxu0 %v4416
  %4864 = vmatpush2.bf16.msra.mxu0 %v4415
  %4865 = vmatprep.subr.bf16.mxu0 %v4408
  %4866 = vmatpush2.bf16.msra.mxu0 %v4407
  %4867 = vmatprep.subr.bf16.mxu0 %v4400
  %4868 = vmatpush2.bf16.msra.mxu0 %v4399
  %4869 = vmatprep.subr.bf16.mxu0 %v4392
  %4870 = vmatpush2.bf16.msra.mxu0 %v4391
  %4871 = vmatprep.mubr.bf16.mxu0 %v3082
  %4872 = vmatmul.mubr.bf16.gmra.mxu0 %v3081
  %v4873 = vpop.f32.mrf.mxu0
  %v4874 = vadd.f32 %v3430, %v4873
  %v4875 = vpop.f32.mrf.mxu0
  %v4876 = vadd.f32 %v3432, %v4875
  %v4877 = vpop.f32.mrf.mxu0
  %v4878 = vpop.f32.mrf.mxu0
  %4879 = vdwg.mxu0
  %4880 = vmatprep.subr.bf16.mxu0 %v4512
  %4881 = vmatpush1.bf16.msra.mxu0 %v4511
  %4882 = vmatprep.subr.bf16.mxu0 %v4504
  %4883 = vmatpush1.bf16.msra.mxu0 %v4503
  %4884 = vmatprep.subr.bf16.mxu0 %v4496
  %4885 = vmatpush1.bf16.msra.mxu0 %v4495
  %4886 = vmatprep.subr.bf16.mxu0 %v4488
  %4887 = vmatpush1.bf16.msra.mxu0 %v4487
  %4888 = vmatprep.subr.bf16.mxu0 %v4480
  %4889 = vmatpush1.bf16.msra.mxu0 %v4479
  %4890 = vmatprep.subr.bf16.mxu0 %v4472
  %4891 = vmatpush1.bf16.msra.mxu0 %v4471
  %4892 = vmatprep.subr.bf16.mxu0 %v4464
  %4893 = vmatpush1.bf16.msra.mxu0 %v4463
  %4894 = vmatprep.subr.bf16.mxu0 %v4456
  %4895 = vmatpush1.bf16.msra.mxu0 %v4455
  %4896 = vmatprep.subr.bf16.mxu0 %v4576
  %4897 = vmatpush2.bf16.msra.mxu0 %v4575
  %4898 = vmatprep.subr.bf16.mxu0 %v4568
  %4899 = vmatpush2.bf16.msra.mxu0 %v4567
  %4900 = vmatprep.subr.bf16.mxu0 %v4560
  %4901 = vmatpush2.bf16.msra.mxu0 %v4559
  %4902 = vmatprep.subr.bf16.mxu0 %v4552
  %4903 = vmatpush2.bf16.msra.mxu0 %v4551
  %4904 = vmatprep.subr.bf16.mxu0 %v4544
  %4905 = vmatpush2.bf16.msra.mxu0 %v4543
  %4906 = vmatprep.subr.bf16.mxu0 %v4536
  %4907 = vmatpush2.bf16.msra.mxu0 %v4535
  %4908 = vmatprep.subr.bf16.mxu0 %v4528
  %4909 = vmatpush2.bf16.msra.mxu0 %v4527
  %4910 = vmatprep.subr.bf16.mxu0 %v4520
  %4911 = vmatpush2.bf16.msra.mxu0 %v4519
  %4912 = vmatprep.mubr.bf16.mxu0 %v3084
  %4913 = vmatmul.mubr.bf16.gmra.mxu0 %v3083
  %v4914 = vpop.f32.mrf.mxu0
  %v4915 = vadd.f32 %v4874, %v4914
  %v4916 = vpop.f32.mrf.mxu0
  %v4917 = vadd.f32 %v4876, %v4916
  %v4918 = vpop.f32.mrf.mxu0
  %v4919 = vpop.f32.mrf.mxu0
  %4920 = vdwg.mxu0
  %4921 = vmatprep.subr.bf16.mxu0 %v4386
  %4922 = vmatpush1.bf16.msra.mxu0 %v4385
  %4923 = vmatprep.subr.bf16.mxu0 %v4378
  %4924 = vmatpush1.bf16.msra.mxu0 %v4377
  %4925 = vmatprep.subr.bf16.mxu0 %v4370
  %4926 = vmatpush1.bf16.msra.mxu0 %v4369
  %4927 = vmatprep.subr.bf16.mxu0 %v4362
  %4928 = vmatpush1.bf16.msra.mxu0 %v4361
  %4929 = vmatprep.subr.bf16.mxu0 %v4354
  %4930 = vmatpush1.bf16.msra.mxu0 %v4353
  %4931 = vmatprep.subr.bf16.mxu0 %v4346
  %4932 = vmatpush1.bf16.msra.mxu0 %v4345
  %4933 = vmatprep.subr.bf16.mxu0 %v4338
  %4934 = vmatpush1.bf16.msra.mxu0 %v4337
  %4935 = vmatprep.subr.bf16.mxu0 %v4330
  %4936 = vmatpush1.bf16.msra.mxu0 %v4329
  %4937 = vmatprep.subr.bf16.mxu0 %v4450
  %4938 = vmatpush2.bf16.msra.mxu0 %v4449
  %4939 = vmatprep.subr.bf16.mxu0 %v4442
  %4940 = vmatpush2.bf16.msra.mxu0 %v4441
  %4941 = vmatprep.subr.bf16.mxu0 %v4434
  %4942 = vmatpush2.bf16.msra.mxu0 %v4433
  %4943 = vmatprep.subr.bf16.mxu0 %v4426
  %4944 = vmatpush2.bf16.msra.mxu0 %v4425
  %4945 = vmatprep.subr.bf16.mxu0 %v4418
  %4946 = vmatpush2.bf16.msra.mxu0 %v4417
  %4947 = vmatprep.subr.bf16.mxu0 %v4410
  %4948 = vmatpush2.bf16.msra.mxu0 %v4409
  %4949 = vmatprep.subr.bf16.mxu0 %v4402
  %4950 = vmatpush2.bf16.msra.mxu0 %v4401
  %4951 = vmatprep.subr.bf16.mxu0 %v4394
  %4952 = vmatpush2.bf16.msra.mxu0 %v4393
  %4953 = vmatprep.mubr.bf16.mxu0 %v3082
  %4954 = vmatmul.mubr.bf16.gmra.mxu0 %v3081
  %v4955 = vpop.f32.mrf.mxu0
  %v4956 = vadd.f32 %v3471, %v4955
  %v4957 = vpop.f32.mrf.mxu0
  %v4958 = vadd.f32 %v3473, %v4957
  %v4959 = vpop.f32.mrf.mxu0
  %v4960 = vpop.f32.mrf.mxu0
  %4961 = vdwg.mxu0
  %4962 = vmatprep.subr.bf16.mxu0 %v4514
  %4963 = vmatpush1.bf16.msra.mxu0 %v4513
  %4964 = vmatprep.subr.bf16.mxu0 %v4506
  %4965 = vmatpush1.bf16.msra.mxu0 %v4505
  %4966 = vmatprep.subr.bf16.mxu0 %v4498
  %4967 = vmatpush1.bf16.msra.mxu0 %v4497
  %4968 = vmatprep.subr.bf16.mxu0 %v4490
  %4969 = vmatpush1.bf16.msra.mxu0 %v4489
  %4970 = vmatprep.subr.bf16.mxu0 %v4482
  %4971 = vmatpush1.bf16.msra.mxu0 %v4481
  %4972 = vmatprep.subr.bf16.mxu0 %v4474
  %4973 = vmatpush1.bf16.msra.mxu0 %v4473
  %4974 = vmatprep.subr.bf16.mxu0 %v4466
  %4975 = vmatpush1.bf16.msra.mxu0 %v4465
  %4976 = vmatprep.subr.bf16.mxu0 %v4458
  %4977 = vmatpush1.bf16.msra.mxu0 %v4457
  %4978 = vmatprep.subr.bf16.mxu0 %v4578
  %4979 = vmatpush2.bf16.msra.mxu0 %v4577
  %4980 = vmatprep.subr.bf16.mxu0 %v4570
  %4981 = vmatpush2.bf16.msra.mxu0 %v4569
  %4982 = vmatprep.subr.bf16.mxu0 %v4562
  %4983 = vmatpush2.bf16.msra.mxu0 %v4561
  %4984 = vmatprep.subr.bf16.mxu0 %v4554
  %4985 = vmatpush2.bf16.msra.mxu0 %v4553
  %4986 = vmatprep.subr.bf16.mxu0 %v4546
  %4987 = vmatpush2.bf16.msra.mxu0 %v4545
  %4988 = vmatprep.subr.bf16.mxu0 %v4538
  %4989 = vmatpush2.bf16.msra.mxu0 %v4537
  %4990 = vmatprep.subr.bf16.mxu0 %v4530
  %4991 = vmatpush2.bf16.msra.mxu0 %v4529
  %4992 = vmatprep.subr.bf16.mxu0 %v4522
  %4993 = vmatpush2.bf16.msra.mxu0 %v4521
  %4994 = vmatprep.mubr.bf16.mxu0 %v3084
  %4995 = vmatmul.mubr.bf16.gmra.mxu0 %v3083
  %v4996 = vpop.f32.mrf.mxu0
  %v4997 = vadd.f32 %v4956, %v4996
  %v4998 = vpop.f32.mrf.mxu0
  %v4999 = vadd.f32 %v4958, %v4998
  %v5000 = vpop.f32.mrf.mxu0
  %v5001 = vpop.f32.mrf.mxu0
  %5002 = vdwg.mxu0
  %5003 = vmatprep.subr.bf16.mxu0 %v4388
  %5004 = vmatpush1.bf16.msra.mxu0 %v4387
  %5005 = vmatprep.subr.bf16.mxu0 %v4380
  %5006 = vmatpush1.bf16.msra.mxu0 %v4379
  %5007 = vmatprep.subr.bf16.mxu0 %v4372
  %5008 = vmatpush1.bf16.msra.mxu0 %v4371
  %5009 = vmatprep.subr.bf16.mxu0 %v4364
  %5010 = vmatpush1.bf16.msra.mxu0 %v4363
  %5011 = vmatprep.subr.bf16.mxu0 %v4356
  %5012 = vmatpush1.bf16.msra.mxu0 %v4355
  %5013 = vmatprep.subr.bf16.mxu0 %v4348
  %5014 = vmatpush1.bf16.msra.mxu0 %v4347
  %5015 = vmatprep.subr.bf16.mxu0 %v4340
  %5016 = vmatpush1.bf16.msra.mxu0 %v4339
  %5017 = vmatprep.subr.bf16.mxu0 %v4332
  %5018 = vmatpush1.bf16.msra.mxu0 %v4331
  %5019 = vmatprep.subr.bf16.mxu0 %v4452
  %5020 = vmatpush2.bf16.msra.mxu0 %v4451
  %5021 = vmatprep.subr.bf16.mxu0 %v4444
  %5022 = vmatpush2.bf16.msra.mxu0 %v4443
  %5023 = vmatprep.subr.bf16.mxu0 %v4436
  %5024 = vmatpush2.bf16.msra.mxu0 %v4435
  %5025 = vmatprep.subr.bf16.mxu0 %v4428
  %5026 = vmatpush2.bf16.msra.mxu0 %v4427
  %5027 = vmatprep.subr.bf16.mxu0 %v4420
  %5028 = vmatpush2.bf16.msra.mxu0 %v4419
  %5029 = vmatprep.subr.bf16.mxu0 %v4412
  %5030 = vmatpush2.bf16.msra.mxu0 %v4411
  %5031 = vmatprep.subr.bf16.mxu0 %v4404
  %5032 = vmatpush2.bf16.msra.mxu0 %v4403
  %5033 = vmatprep.subr.bf16.mxu0 %v4396
  %5034 = vmatpush2.bf16.msra.mxu0 %v4395
  %5035 = vmatprep.mubr.bf16.mxu0 %v3082
  %5036 = vmatmul.mubr.bf16.gmra.mxu0 %v3081
  %v5037 = vpop.f32.mrf.mxu0
  %v5038 = vadd.f32 %v3512, %v5037
  %v5039 = vpop.f32.mrf.mxu0
  %v5040 = vadd.f32 %v3514, %v5039
  %v5041 = vpop.f32.mrf.mxu0
  %v5042 = vpop.f32.mrf.mxu0
  %5043 = vdwg.mxu0
  %5044 = vmatprep.subr.bf16.mxu0 %v4516
  %5045 = vmatpush1.bf16.msra.mxu0 %v4515
  %5046 = vmatprep.subr.bf16.mxu0 %v4508
  %5047 = vmatpush1.bf16.msra.mxu0 %v4507
  %5048 = vmatprep.subr.bf16.mxu0 %v4500
  %5049 = vmatpush1.bf16.msra.mxu0 %v4499
  %5050 = vmatprep.subr.bf16.mxu0 %v4492
  %5051 = vmatpush1.bf16.msra.mxu0 %v4491
  %5052 = vmatprep.subr.bf16.mxu0 %v4484
  %5053 = vmatpush1.bf16.msra.mxu0 %v4483
  %5054 = vmatprep.subr.bf16.mxu0 %v4476
  %5055 = vmatpush1.bf16.msra.mxu0 %v4475
  %5056 = vmatprep.subr.bf16.mxu0 %v4468
  %5057 = vmatpush1.bf16.msra.mxu0 %v4467
  %5058 = vmatprep.subr.bf16.mxu0 %v4460
  %5059 = vmatpush1.bf16.msra.mxu0 %v4459
  %5060 = vmatprep.subr.bf16.mxu0 %v4580
  %5061 = vmatpush2.bf16.msra.mxu0 %v4579
  %5062 = vmatprep.subr.bf16.mxu0 %v4572
  %5063 = vmatpush2.bf16.msra.mxu0 %v4571
  %5064 = vmatprep.subr.bf16.mxu0 %v4564
  %5065 = vmatpush2.bf16.msra.mxu0 %v4563
  %5066 = vmatprep.subr.bf16.mxu0 %v4556
  %5067 = vmatpush2.bf16.msra.mxu0 %v4555
  %5068 = vmatprep.subr.bf16.mxu0 %v4548
  %5069 = vmatpush2.bf16.msra.mxu0 %v4547
  %5070 = vmatprep.subr.bf16.mxu0 %v4540
  %5071 = vmatpush2.bf16.msra.mxu0 %v4539
  %5072 = vmatprep.subr.bf16.mxu0 %v4532
  %5073 = vmatpush2.bf16.msra.mxu0 %v4531
  %5074 = vmatprep.subr.bf16.mxu0 %v4524
  %5075 = vmatpush2.bf16.msra.mxu0 %v4523
  %5076 = vmatprep.mubr.bf16.mxu0 %v3084
  %5077 = vmatmul.mubr.bf16.gmra.mxu0 %v3083
  %v5078 = vpop.f32.mrf.mxu0
  %v5079 = vadd.f32 %v5038, %v5078
  %v5080 = vpop.f32.mrf.mxu0
  %v5081 = vadd.f32 %v5040, %v5080
  %v5082 = vpop.f32.mrf.mxu0
  %v5083 = vpop.f32.mrf.mxu0
  %5084 = vdwg.mxu0
  %5085 = vmatprep.subr.bf16.mxu0 %v4390
  %5086 = vmatpush1.bf16.msra.mxu0 %v4389
  %5087 = vmatprep.subr.bf16.mxu0 %v4382
  %5088 = vmatpush1.bf16.msra.mxu0 %v4381
  %5089 = vmatprep.subr.bf16.mxu0 %v4374
  %5090 = vmatpush1.bf16.msra.mxu0 %v4373
  %5091 = vmatprep.subr.bf16.mxu0 %v4366
  %5092 = vmatpush1.bf16.msra.mxu0 %v4365
  %5093 = vmatprep.subr.bf16.mxu0 %v4358
  %5094 = vmatpush1.bf16.msra.mxu0 %v4357
  %5095 = vmatprep.subr.bf16.mxu0 %v4350
  %5096 = vmatpush1.bf16.msra.mxu0 %v4349
  %5097 = vmatprep.subr.bf16.mxu0 %v4342
  %5098 = vmatpush1.bf16.msra.mxu0 %v4341
  %5099 = vmatprep.subr.bf16.mxu0 %v4334
  %5100 = vmatpush1.bf16.msra.mxu0 %v4333
  %5101 = vmatprep.subr.bf16.mxu0 %v4454
  %5102 = vmatpush2.bf16.msra.mxu0 %v4453
  %5103 = vmatprep.subr.bf16.mxu0 %v4446
  %5104 = vmatpush2.bf16.msra.mxu0 %v4445
  %5105 = vmatprep.subr.bf16.mxu0 %v4438
  %5106 = vmatpush2.bf16.msra.mxu0 %v4437
  %5107 = vmatprep.subr.bf16.mxu0 %v4430
  %5108 = vmatpush2.bf16.msra.mxu0 %v4429
  %5109 = vmatprep.subr.bf16.mxu0 %v4422
  %5110 = vmatpush2.bf16.msra.mxu0 %v4421
  %5111 = vmatprep.subr.bf16.mxu0 %v4414
  %5112 = vmatpush2.bf16.msra.mxu0 %v4413
  %5113 = vmatprep.subr.bf16.mxu0 %v4406
  %5114 = vmatpush2.bf16.msra.mxu0 %v4405
  %5115 = vmatprep.subr.bf16.mxu0 %v4398
  %5116 = vmatpush2.bf16.msra.mxu0 %v4397
  %5117 = vmatprep.mubr.bf16.mxu0 %v3082
  %5118 = vmatmul.mubr.bf16.gmra.mxu0 %v3081
  %v5119 = vpop.f32.mrf.mxu0
  %v5120 = vadd.f32 %v3553, %v5119
  %v5121 = vpop.f32.mrf.mxu0
  %v5122 = vadd.f32 %v3555, %v5121
  %v5123 = vpop.f32.mrf.mxu0
  %v5124 = vpop.f32.mrf.mxu0
  %5125 = vdwg.mxu0
  %5126 = vmatprep.subr.bf16.mxu0 %v4518
  %5127 = vmatpush1.bf16.msra.mxu0 %v4517
  %5128 = vmatprep.subr.bf16.mxu0 %v4510
  %5129 = vmatpush1.bf16.msra.mxu0 %v4509
  %5130 = vmatprep.subr.bf16.mxu0 %v4502
  %5131 = vmatpush1.bf16.msra.mxu0 %v4501
  %5132 = vmatprep.subr.bf16.mxu0 %v4494
  %5133 = vmatpush1.bf16.msra.mxu0 %v4493
  %5134 = vmatprep.subr.bf16.mxu0 %v4486
  %5135 = vmatpush1.bf16.msra.mxu0 %v4485
  %5136 = vmatprep.subr.bf16.mxu0 %v4478
  %5137 = vmatpush1.bf16.msra.mxu0 %v4477
  %5138 = vmatprep.subr.bf16.mxu0 %v4470
  %5139 = vmatpush1.bf16.msra.mxu0 %v4469
  %5140 = vmatprep.subr.bf16.mxu0 %v4462
  %5141 = vmatpush1.bf16.msra.mxu0 %v4461
  %5142 = vmatprep.subr.bf16.mxu0 %v4582
  %5143 = vmatpush2.bf16.msra.mxu0 %v4581
  %5144 = vmatprep.subr.bf16.mxu0 %v4574
  %5145 = vmatpush2.bf16.msra.mxu0 %v4573
  %5146 = vmatprep.subr.bf16.mxu0 %v4566
  %5147 = vmatpush2.bf16.msra.mxu0 %v4565
  %5148 = vmatprep.subr.bf16.mxu0 %v4558
  %5149 = vmatpush2.bf16.msra.mxu0 %v4557
  %5150 = vmatprep.subr.bf16.mxu0 %v4550
  %5151 = vmatpush2.bf16.msra.mxu0 %v4549
  %5152 = vmatprep.subr.bf16.mxu0 %v4542
  %5153 = vmatpush2.bf16.msra.mxu0 %v4541
  %5154 = vmatprep.subr.bf16.mxu0 %v4534
  %5155 = vmatpush2.bf16.msra.mxu0 %v4533
  %5156 = vmatprep.subr.bf16.mxu0 %v4526
  %5157 = vmatpush2.bf16.msra.mxu0 %v4525
  %5158 = vmatprep.mubr.bf16.mxu0 %v3084
  %5159 = vmatmul.mubr.bf16.gmra.mxu0 %v3083
  %v5160 = vpop.f32.mrf.mxu0
  %v5161 = vadd.f32 %v5120, %v5160
  %v5162 = vpop.f32.mrf.mxu0
  %v5163 = vadd.f32 %v5122, %v5162
  %v5164 = vpop.f32.mrf.mxu0
  %v5165 = vpop.f32.mrf.mxu0
  %5166 = vdwg.mxu0
  %v5167 = vld [vmem:[%s17] sm:$0xff]
  %v5168 = vld [vmem:[%s17 + $0x8] sm:$0xff]
  %v5169 = vpack.c.bf16 %v5167, %v5167
  %v5170 = vpack.c.bf16 %v5168, %v5168
  %v5171 = vld [vmem:[%s13] sm:$0xff]
  %v5172 = vld [vmem:[%s13 + $0x8] sm:$0xff]
  %v5173 = vld [vmem:[%s13 + $0x10] sm:$0xff]
  %v5174 = vld [vmem:[%s13 + $0x18] sm:$0xff]
  %v5175 = vld [vmem:[%s13 + $0x20] sm:$0xff]
  %v5176 = vld [vmem:[%s13 + $0x28] sm:$0xff]
  %v5177 = vld [vmem:[%s13 + $0x30] sm:$0xff]
  %v5178 = vld [vmem:[%s13 + $0x38] sm:$0xff]
  %v5179 = vld [vmem:[%s13 + $0x40] sm:$0xff]
  %v5180 = vld [vmem:[%s13 + $0x48] sm:$0xff]
  %v5181 = vld [vmem:[%s13 + $0x50] sm:$0xff]
  %v5182 = vld [vmem:[%s13 + $0x58] sm:$0xff]
  %v5183 = vld [vmem:[%s13 + $0x60] sm:$0xff]
  %v5184 = vld [vmem:[%s13 + $0x68] sm:$0xff]
  %v5185 = vld [vmem:[%s13 + $0x70] sm:$0xff]
  %v5186 = vld [vmem:[%s13 + $0x78] sm:$0xff]
  %v5187 = vld [vmem:[%s13 + $0x80] sm:$0xff]
  %v5188 = vld [vmem:[%s13 + $0x88] sm:$0xff]
  %v5189 = vld [vmem:[%s13 + $0x90] sm:$0xff]
  %v5190 = vld [vmem:[%s13 + $0x98] sm:$0xff]
  %v5191 = vld [vmem:[%s13 + $0xa0] sm:$0xff]
  %v5192 = vld [vmem:[%s13 + $0xa8] sm:$0xff]
  %v5193 = vld [vmem:[%s13 + $0xb0] sm:$0xff]
  %v5194 = vld [vmem:[%s13 + $0xb8] sm:$0xff]
  %v5195 = vld [vmem:[%s13 + $0xc0] sm:$0xff]
  %v5196 = vld [vmem:[%s13 + $0xc8] sm:$0xff]
  %v5197 = vld [vmem:[%s13 + $0xd0] sm:$0xff]
  %v5198 = vld [vmem:[%s13 + $0xd8] sm:$0xff]
  %v5199 = vld [vmem:[%s13 + $0xe0] sm:$0xff]
  %v5200 = vld [vmem:[%s13 + $0xe8] sm:$0xff]
  %v5201 = vld [vmem:[%s13 + $0xf0] sm:$0xff]
  %v5202 = vld [vmem:[%s13 + $0xf8] sm:$0xff]
  %v5203 = vld [vmem:[%s13 + $0x100] sm:$0xff]
  %v5204 = vld [vmem:[%s13 + $0x108] sm:$0xff]
  %v5205 = vld [vmem:[%s13 + $0x110] sm:$0xff]
  %v5206 = vld [vmem:[%s13 + $0x118] sm:$0xff]
  %v5207 = vld [vmem:[%s13 + $0x120] sm:$0xff]
  %v5208 = vld [vmem:[%s13 + $0x128] sm:$0xff]
  %v5209 = vld [vmem:[%s13 + $0x130] sm:$0xff]
  %v5210 = vld [vmem:[%s13 + $0x138] sm:$0xff]
  %v5211 = vld [vmem:[%s13 + $0x140] sm:$0xff]
  %v5212 = vld [vmem:[%s13 + $0x148] sm:$0xff]
  %v5213 = vld [vmem:[%s13 + $0x150] sm:$0xff]
  %v5214 = vld [vmem:[%s13 + $0x158] sm:$0xff]
  %v5215 = vld [vmem:[%s13 + $0x160] sm:$0xff]
  %v5216 = vld [vmem:[%s13 + $0x168] sm:$0xff]
  %v5217 = vld [vmem:[%s13 + $0x170] sm:$0xff]
  %v5218 = vld [vmem:[%s13 + $0x178] sm:$0xff]
  %v5219 = vld [vmem:[%s13 + $0x180] sm:$0xff]
  %v5220 = vld [vmem:[%s13 + $0x188] sm:$0xff]
  %v5221 = vld [vmem:[%s13 + $0x190] sm:$0xff]
  %v5222 = vld [vmem:[%s13 + $0x198] sm:$0xff]
  %v5223 = vld [vmem:[%s13 + $0x1a0] sm:$0xff]
  %v5224 = vld [vmem:[%s13 + $0x1a8] sm:$0xff]
  %v5225 = vld [vmem:[%s13 + $0x1b0] sm:$0xff]
  %v5226 = vld [vmem:[%s13 + $0x1b8] sm:$0xff]
  %v5227 = vld [vmem:[%s13 + $0x1c0] sm:$0xff]
  %v5228 = vld [vmem:[%s13 + $0x1c8] sm:$0xff]
  %v5229 = vld [vmem:[%s13 + $0x1d0] sm:$0xff]
  %v5230 = vld [vmem:[%s13 + $0x1d8] sm:$0xff]
  %v5231 = vld [vmem:[%s13 + $0x1e0] sm:$0xff]
  %v5232 = vld [vmem:[%s13 + $0x1e8] sm:$0xff]
  %v5233 = vld [vmem:[%s13 + $0x1f0] sm:$0xff]
  %v5234 = vld [vmem:[%s13 + $0x1f8] sm:$0xff]
  %v5235 = vld [vmem:[%s13 + $0x200] sm:$0xff]
  %v5236 = vld [vmem:[%s13 + $0x208] sm:$0xff]
  %v5237 = vld [vmem:[%s13 + $0x210] sm:$0xff]
  %v5238 = vld [vmem:[%s13 + $0x218] sm:$0xff]
  %v5239 = vld [vmem:[%s13 + $0x220] sm:$0xff]
  %v5240 = vld [vmem:[%s13 + $0x228] sm:$0xff]
  %v5241 = vld [vmem:[%s13 + $0x230] sm:$0xff]
  %v5242 = vld [vmem:[%s13 + $0x238] sm:$0xff]
  %v5243 = vld [vmem:[%s13 + $0x240] sm:$0xff]
  %v5244 = vld [vmem:[%s13 + $0x248] sm:$0xff]
  %v5245 = vld [vmem:[%s13 + $0x250] sm:$0xff]
  %v5246 = vld [vmem:[%s13 + $0x258] sm:$0xff]
  %v5247 = vld [vmem:[%s13 + $0x260] sm:$0xff]
  %v5248 = vld [vmem:[%s13 + $0x268] sm:$0xff]
  %v5249 = vld [vmem:[%s13 + $0x270] sm:$0xff]
  %v5250 = vld [vmem:[%s13 + $0x278] sm:$0xff]
  %v5251 = vld [vmem:[%s13 + $0x280] sm:$0xff]
  %v5252 = vld [vmem:[%s13 + $0x288] sm:$0xff]
  %v5253 = vld [vmem:[%s13 + $0x290] sm:$0xff]
  %v5254 = vld [vmem:[%s13 + $0x298] sm:$0xff]
  %v5255 = vld [vmem:[%s13 + $0x2a0] sm:$0xff]
  %v5256 = vld [vmem:[%s13 + $0x2a8] sm:$0xff]
  %v5257 = vld [vmem:[%s13 + $0x2b0] sm:$0xff]
  %v5258 = vld [vmem:[%s13 + $0x2b8] sm:$0xff]
  %v5259 = vld [vmem:[%s13 + $0x2c0] sm:$0xff]
  %v5260 = vld [vmem:[%s13 + $0x2c8] sm:$0xff]
  %v5261 = vld [vmem:[%s13 + $0x2d0] sm:$0xff]
  %v5262 = vld [vmem:[%s13 + $0x2d8] sm:$0xff]
  %v5263 = vld [vmem:[%s13 + $0x2e0] sm:$0xff]
  %v5264 = vld [vmem:[%s13 + $0x2e8] sm:$0xff]
  %v5265 = vld [vmem:[%s13 + $0x2f0] sm:$0xff]
  %v5266 = vld [vmem:[%s13 + $0x2f8] sm:$0xff]
  %v5267 = vld [vmem:[%s13 + $0x300] sm:$0xff]
  %v5268 = vld [vmem:[%s13 + $0x308] sm:$0xff]
  %v5269 = vld [vmem:[%s13 + $0x310] sm:$0xff]
  %v5270 = vld [vmem:[%s13 + $0x318] sm:$0xff]
  %v5271 = vld [vmem:[%s13 + $0x320] sm:$0xff]
  %v5272 = vld [vmem:[%s13 + $0x328] sm:$0xff]
  %v5273 = vld [vmem:[%s13 + $0x330] sm:$0xff]
  %v5274 = vld [vmem:[%s13 + $0x338] sm:$0xff]
  %v5275 = vld [vmem:[%s13 + $0x340] sm:$0xff]
  %v5276 = vld [vmem:[%s13 + $0x348] sm:$0xff]
  %v5277 = vld [vmem:[%s13 + $0x350] sm:$0xff]
  %v5278 = vld [vmem:[%s13 + $0x358] sm:$0xff]
  %v5279 = vld [vmem:[%s13 + $0x360] sm:$0xff]
  %v5280 = vld [vmem:[%s13 + $0x368] sm:$0xff]
  %v5281 = vld [vmem:[%s13 + $0x370] sm:$0xff]
  %v5282 = vld [vmem:[%s13 + $0x378] sm:$0xff]
  %v5283 = vld [vmem:[%s13 + $0x380] sm:$0xff]
  %v5284 = vld [vmem:[%s13 + $0x388] sm:$0xff]
  %v5285 = vld [vmem:[%s13 + $0x390] sm:$0xff]
  %v5286 = vld [vmem:[%s13 + $0x398] sm:$0xff]
  %v5287 = vld [vmem:[%s13 + $0x3a0] sm:$0xff]
  %v5288 = vld [vmem:[%s13 + $0x3a8] sm:$0xff]
  %v5289 = vld [vmem:[%s13 + $0x3b0] sm:$0xff]
  %v5290 = vld [vmem:[%s13 + $0x3b8] sm:$0xff]
  %v5291 = vld [vmem:[%s13 + $0x3c0] sm:$0xff]
  %v5292 = vld [vmem:[%s13 + $0x3c8] sm:$0xff]
  %v5293 = vld [vmem:[%s13 + $0x3d0] sm:$0xff]
  %v5294 = vld [vmem:[%s13 + $0x3d8] sm:$0xff]
  %v5295 = vld [vmem:[%s13 + $0x3e0] sm:$0xff]
  %v5296 = vld [vmem:[%s13 + $0x3e8] sm:$0xff]
  %v5297 = vld [vmem:[%s13 + $0x3f0] sm:$0xff]
  %v5298 = vld [vmem:[%s13 + $0x3f8] sm:$0xff]
  %v5427 = vunpack.c.l.b16 %v5171
  %v5428 = vunpack.c.h.b16 %v5171
  %v5429 = vunpack.c.l.b16 %v5172
  %v5430 = vunpack.c.h.b16 %v5172
  %v5431 = vunpack.c.l.b16 %v5173
  %v5432 = vunpack.c.h.b16 %v5173
  %v5433 = vunpack.c.l.b16 %v5174
  %v5434 = vunpack.c.h.b16 %v5174
  %v5435 = vunpack.c.l.b16 %v5175
  %v5436 = vunpack.c.h.b16 %v5175
  %v5437 = vunpack.c.l.b16 %v5176
  %v5438 = vunpack.c.h.b16 %v5176
  %v5439 = vunpack.c.l.b16 %v5177
  %v5440 = vunpack.c.h.b16 %v5177
  %v5441 = vunpack.c.l.b16 %v5178
  %v5442 = vunpack.c.h.b16 %v5178
  %v5443 = vunpack.c.l.b16 %v5179
  %v5444 = vunpack.c.h.b16 %v5179
  %v5445 = vunpack.c.l.b16 %v5180
  %v5446 = vunpack.c.h.b16 %v5180
  %v5447 = vunpack.c.l.b16 %v5181
  %v5448 = vunpack.c.h.b16 %v5181
  %v5449 = vunpack.c.l.b16 %v5182
  %v5450 = vunpack.c.h.b16 %v5182
  %v5451 = vunpack.c.l.b16 %v5183
  %v5452 = vunpack.c.h.b16 %v5183
  %v5453 = vunpack.c.l.b16 %v5184
  %v5454 = vunpack.c.h.b16 %v5184
  %v5455 = vunpack.c.l.b16 %v5185
  %v5456 = vunpack.c.h.b16 %v5185
  %v5457 = vunpack.c.l.b16 %v5186
  %v5458 = vunpack.c.h.b16 %v5186
  %v5459 = vunpack.c.l.b16 %v5187
  %v5460 = vunpack.c.h.b16 %v5187
  %v5461 = vunpack.c.l.b16 %v5188
  %v5462 = vunpack.c.h.b16 %v5188
  %v5463 = vunpack.c.l.b16 %v5189
  %v5464 = vunpack.c.h.b16 %v5189
  %v5465 = vunpack.c.l.b16 %v5190
  %v5466 = vunpack.c.h.b16 %v5190
  %v5467 = vunpack.c.l.b16 %v5191
  %v5468 = vunpack.c.h.b16 %v5191
  %v5469 = vunpack.c.l.b16 %v5192
  %v5470 = vunpack.c.h.b16 %v5192
  %v5471 = vunpack.c.l.b16 %v5193
  %v5472 = vunpack.c.h.b16 %v5193
  %v5473 = vunpack.c.l.b16 %v5194
  %v5474 = vunpack.c.h.b16 %v5194
  %v5475 = vunpack.c.l.b16 %v5195
  %v5476 = vunpack.c.h.b16 %v5195
  %v5477 = vunpack.c.l.b16 %v5196
  %v5478 = vunpack.c.h.b16 %v5196
  %v5479 = vunpack.c.l.b16 %v5197
  %v5480 = vunpack.c.h.b16 %v5197
  %v5481 = vunpack.c.l.b16 %v5198
  %v5482 = vunpack.c.h.b16 %v5198
  %v5483 = vunpack.c.l.b16 %v5199
  %v5484 = vunpack.c.h.b16 %v5199
  %v5485 = vunpack.c.l.b16 %v5200
  %v5486 = vunpack.c.h.b16 %v5200
  %v5487 = vunpack.c.l.b16 %v5201
  %v5488 = vunpack.c.h.b16 %v5201
  %v5489 = vunpack.c.l.b16 %v5202
  %v5490 = vunpack.c.h.b16 %v5202
  %v5491 = vunpack.c.l.b16 %v5203
  %v5492 = vunpack.c.h.b16 %v5203
  %v5493 = vunpack.c.l.b16 %v5204
  %v5494 = vunpack.c.h.b16 %v5204
  %v5495 = vunpack.c.l.b16 %v5205
  %v5496 = vunpack.c.h.b16 %v5205
  %v5497 = vunpack.c.l.b16 %v5206
  %v5498 = vunpack.c.h.b16 %v5206
  %v5499 = vunpack.c.l.b16 %v5207
  %v5500 = vunpack.c.h.b16 %v5207
  %v5501 = vunpack.c.l.b16 %v5208
  %v5502 = vunpack.c.h.b16 %v5208
  %v5503 = vunpack.c.l.b16 %v5209
  %v5504 = vunpack.c.h.b16 %v5209
  %v5505 = vunpack.c.l.b16 %v5210
  %v5506 = vunpack.c.h.b16 %v5210
  %v5507 = vunpack.c.l.b16 %v5211
  %v5508 = vunpack.c.h.b16 %v5211
  %v5509 = vunpack.c.l.b16 %v5212
  %v5510 = vunpack.c.h.b16 %v5212
  %v5511 = vunpack.c.l.b16 %v5213
  %v5512 = vunpack.c.h.b16 %v5213
  %v5513 = vunpack.c.l.b16 %v5214
  %v5514 = vunpack.c.h.b16 %v5214
  %v5515 = vunpack.c.l.b16 %v5215
  %v5516 = vunpack.c.h.b16 %v5215
  %v5517 = vunpack.c.l.b16 %v5216
  %v5518 = vunpack.c.h.b16 %v5216
  %v5519 = vunpack.c.l.b16 %v5217
  %v5520 = vunpack.c.h.b16 %v5217
  %v5521 = vunpack.c.l.b16 %v5218
  %v5522 = vunpack.c.h.b16 %v5218
  %v5523 = vunpack.c.l.b16 %v5219
  %v5524 = vunpack.c.h.b16 %v5219
  %v5525 = vunpack.c.l.b16 %v5220
  %v5526 = vunpack.c.h.b16 %v5220
  %v5527 = vunpack.c.l.b16 %v5221
  %v5528 = vunpack.c.h.b16 %v5221
  %v5529 = vunpack.c.l.b16 %v5222
  %v5530 = vunpack.c.h.b16 %v5222
  %v5531 = vunpack.c.l.b16 %v5223
  %v5532 = vunpack.c.h.b16 %v5223
  %v5533 = vunpack.c.l.b16 %v5224
  %v5534 = vunpack.c.h.b16 %v5224
  %v5535 = vunpack.c.l.b16 %v5225
  %v5536 = vunpack.c.h.b16 %v5225
  %v5537 = vunpack.c.l.b16 %v5226
  %v5538 = vunpack.c.h.b16 %v5226
  %v5539 = vunpack.c.l.b16 %v5227
  %v5540 = vunpack.c.h.b16 %v5227
  %v5541 = vunpack.c.l.b16 %v5228
  %v5542 = vunpack.c.h.b16 %v5228
  %v5543 = vunpack.c.l.b16 %v5229
  %v5544 = vunpack.c.h.b16 %v5229
  %v5545 = vunpack.c.l.b16 %v5230
  %v5546 = vunpack.c.h.b16 %v5230
  %v5547 = vunpack.c.l.b16 %v5231
  %v5548 = vunpack.c.h.b16 %v5231
  %v5549 = vunpack.c.l.b16 %v5232
  %v5550 = vunpack.c.h.b16 %v5232
  %v5551 = vunpack.c.l.b16 %v5233
  %v5552 = vunpack.c.h.b16 %v5233
  %v5553 = vunpack.c.l.b16 %v5234
  %v5554 = vunpack.c.h.b16 %v5234
  %v5555 = vunpack.c.l.b16 %v5235
  %v5556 = vunpack.c.h.b16 %v5235
  %v5557 = vunpack.c.l.b16 %v5236
  %v5558 = vunpack.c.h.b16 %v5236
  %v5559 = vunpack.c.l.b16 %v5237
  %v5560 = vunpack.c.h.b16 %v5237
  %v5561 = vunpack.c.l.b16 %v5238
  %v5562 = vunpack.c.h.b16 %v5238
  %v5563 = vunpack.c.l.b16 %v5239
  %v5564 = vunpack.c.h.b16 %v5239
  %v5565 = vunpack.c.l.b16 %v5240
  %v5566 = vunpack.c.h.b16 %v5240
  %v5567 = vunpack.c.l.b16 %v5241
  %v5568 = vunpack.c.h.b16 %v5241
  %v5569 = vunpack.c.l.b16 %v5242
  %v5570 = vunpack.c.h.b16 %v5242
  %v5571 = vunpack.c.l.b16 %v5243
  %v5572 = vunpack.c.h.b16 %v5243
  %v5573 = vunpack.c.l.b16 %v5244
  %v5574 = vunpack.c.h.b16 %v5244
  %v5575 = vunpack.c.l.b16 %v5245
  %v5576 = vunpack.c.h.b16 %v5245
  %v5577 = vunpack.c.l.b16 %v5246
  %v5578 = vunpack.c.h.b16 %v5246
  %v5579 = vunpack.c.l.b16 %v5247
  %v5580 = vunpack.c.h.b16 %v5247
  %v5581 = vunpack.c.l.b16 %v5248
  %v5582 = vunpack.c.h.b16 %v5248
  %v5583 = vunpack.c.l.b16 %v5249
  %v5584 = vunpack.c.h.b16 %v5249
  %v5585 = vunpack.c.l.b16 %v5250
  %v5586 = vunpack.c.h.b16 %v5250
  %v5587 = vunpack.c.l.b16 %v5251
  %v5588 = vunpack.c.h.b16 %v5251
  %v5589 = vunpack.c.l.b16 %v5252
  %v5590 = vunpack.c.h.b16 %v5252
  %v5591 = vunpack.c.l.b16 %v5253
  %v5592 = vunpack.c.h.b16 %v5253
  %v5593 = vunpack.c.l.b16 %v5254
  %v5594 = vunpack.c.h.b16 %v5254
  %v5595 = vunpack.c.l.b16 %v5255
  %v5596 = vunpack.c.h.b16 %v5255
  %v5597 = vunpack.c.l.b16 %v5256
  %v5598 = vunpack.c.h.b16 %v5256
  %v5599 = vunpack.c.l.b16 %v5257
  %v5600 = vunpack.c.h.b16 %v5257
  %v5601 = vunpack.c.l.b16 %v5258
  %v5602 = vunpack.c.h.b16 %v5258
  %v5603 = vunpack.c.l.b16 %v5259
  %v5604 = vunpack.c.h.b16 %v5259
  %v5605 = vunpack.c.l.b16 %v5260
  %v5606 = vunpack.c.h.b16 %v5260
  %v5607 = vunpack.c.l.b16 %v5261
  %v5608 = vunpack.c.h.b16 %v5261
  %v5609 = vunpack.c.l.b16 %v5262
  %v5610 = vunpack.c.h.b16 %v5262
  %v5611 = vunpack.c.l.b16 %v5263
  %v5612 = vunpack.c.h.b16 %v5263
  %v5613 = vunpack.c.l.b16 %v5264
  %v5614 = vunpack.c.h.b16 %v5264
  %v5615 = vunpack.c.l.b16 %v5265
  %v5616 = vunpack.c.h.b16 %v5265
  %v5617 = vunpack.c.l.b16 %v5266
  %v5618 = vunpack.c.h.b16 %v5266
  %v5619 = vunpack.c.l.b16 %v5267
  %v5620 = vunpack.c.h.b16 %v5267
  %v5621 = vunpack.c.l.b16 %v5268
  %v5622 = vunpack.c.h.b16 %v5268
  %v5623 = vunpack.c.l.b16 %v5269
  %v5624 = vunpack.c.h.b16 %v5269
  %v5625 = vunpack.c.l.b16 %v5270
  %v5626 = vunpack.c.h.b16 %v5270
  %v5627 = vunpack.c.l.b16 %v5271
  %v5628 = vunpack.c.h.b16 %v5271
  %v5629 = vunpack.c.l.b16 %v5272
  %v5630 = vunpack.c.h.b16 %v5272
  %v5631 = vunpack.c.l.b16 %v5273
  %v5632 = vunpack.c.h.b16 %v5273
  %v5633 = vunpack.c.l.b16 %v5274
  %v5634 = vunpack.c.h.b16 %v5274
  %v5635 = vunpack.c.l.b16 %v5275
  %v5636 = vunpack.c.h.b16 %v5275
  %v5637 = vunpack.c.l.b16 %v5276
  %v5638 = vunpack.c.h.b16 %v5276
  %v5639 = vunpack.c.l.b16 %v5277
  %v5640 = vunpack.c.h.b16 %v5277
  %v5641 = vunpack.c.l.b16 %v5278
  %v5642 = vunpack.c.h.b16 %v5278
  %v5643 = vunpack.c.l.b16 %v5279
  %v5644 = vunpack.c.h.b16 %v5279
  %v5645 = vunpack.c.l.b16 %v5280
  %v5646 = vunpack.c.h.b16 %v5280
  %v5647 = vunpack.c.l.b16 %v5281
  %v5648 = vunpack.c.h.b16 %v5281
  %v5649 = vunpack.c.l.b16 %v5282
  %v5650 = vunpack.c.h.b16 %v5282
  %v5651 = vunpack.c.l.b16 %v5283
  %v5652 = vunpack.c.h.b16 %v5283
  %v5653 = vunpack.c.l.b16 %v5284
  %v5654 = vunpack.c.h.b16 %v5284
  %v5655 = vunpack.c.l.b16 %v5285
  %v5656 = vunpack.c.h.b16 %v5285
  %v5657 = vunpack.c.l.b16 %v5286
  %v5658 = vunpack.c.h.b16 %v5286
  %v5659 = vunpack.c.l.b16 %v5287
  %v5660 = vunpack.c.h.b16 %v5287
  %v5661 = vunpack.c.l.b16 %v5288
  %v5662 = vunpack.c.h.b16 %v5288
  %v5663 = vunpack.c.l.b16 %v5289
  %v5664 = vunpack.c.h.b16 %v5289
  %v5665 = vunpack.c.l.b16 %v5290
  %v5666 = vunpack.c.h.b16 %v5290
  %v5667 = vunpack.c.l.b16 %v5291
  %v5668 = vunpack.c.h.b16 %v5291
  %v5669 = vunpack.c.l.b16 %v5292
  %v5670 = vunpack.c.h.b16 %v5292
  %v5671 = vunpack.c.l.b16 %v5293
  %v5672 = vunpack.c.h.b16 %v5293
  %v5673 = vunpack.c.l.b16 %v5294
  %v5674 = vunpack.c.h.b16 %v5294
  %v5675 = vunpack.c.l.b16 %v5295
  %v5676 = vunpack.c.h.b16 %v5295
  %v5677 = vunpack.c.l.b16 %v5296
  %v5678 = vunpack.c.h.b16 %v5296
  %v5679 = vunpack.c.l.b16 %v5297
  %v5680 = vunpack.c.h.b16 %v5297
  %v5681 = vunpack.c.l.b16 %v5298
  %v5682 = vunpack.c.h.b16 %v5298
  %v5683 = vpack.c.b16 %v5435, %v5427
  %v5684 = vpack.c.b16 %v5436, %v5428
  %v5685 = vpack.c.b16 %v5437, %v5429
  %v5686 = vpack.c.b16 %v5438, %v5430
  %v5687 = vpack.c.b16 %v5439, %v5431
  %v5688 = vpack.c.b16 %v5440, %v5432
  %v5689 = vpack.c.b16 %v5441, %v5433
  %v5690 = vpack.c.b16 %v5442, %v5434
  %v5691 = vpack.c.b16 %v5451, %v5443
  %v5692 = vpack.c.b16 %v5452, %v5444
  %v5693 = vpack.c.b16 %v5453, %v5445
  %v5694 = vpack.c.b16 %v5454, %v5446
  %v5695 = vpack.c.b16 %v5455, %v5447
  %v5696 = vpack.c.b16 %v5456, %v5448
  %v5697 = vpack.c.b16 %v5457, %v5449
  %v5698 = vpack.c.b16 %v5458, %v5450
  %v5699 = vpack.c.b16 %v5467, %v5459
  %v5700 = vpack.c.b16 %v5468, %v5460
  %v5701 = vpack.c.b16 %v5469, %v5461
  %v5702 = vpack.c.b16 %v5470, %v5462
  %v5703 = vpack.c.b16 %v5471, %v5463
  %v5704 = vpack.c.b16 %v5472, %v5464
  %v5705 = vpack.c.b16 %v5473, %v5465
  %v5706 = vpack.c.b16 %v5474, %v5466
  %v5707 = vpack.c.b16 %v5483, %v5475
  %v5708 = vpack.c.b16 %v5484, %v5476
  %v5709 = vpack.c.b16 %v5485, %v5477
  %v5710 = vpack.c.b16 %v5486, %v5478
  %v5711 = vpack.c.b16 %v5487, %v5479
  %v5712 = vpack.c.b16 %v5488, %v5480
  %v5713 = vpack.c.b16 %v5489, %v5481
  %v5714 = vpack.c.b16 %v5490, %v5482
  %v5715 = vpack.c.b16 %v5499, %v5491
  %v5716 = vpack.c.b16 %v5500, %v5492
  %v5717 = vpack.c.b16 %v5501, %v5493
  %v5718 = vpack.c.b16 %v5502, %v5494
  %v5719 = vpack.c.b16 %v5503, %v5495
  %v5720 = vpack.c.b16 %v5504, %v5496
  %v5721 = vpack.c.b16 %v5505, %v5497
  %v5722 = vpack.c.b16 %v5506, %v5498
  %v5723 = vpack.c.b16 %v5515, %v5507
  %v5724 = vpack.c.b16 %v5516, %v5508
  %v5725 = vpack.c.b16 %v5517, %v5509
  %v5726 = vpack.c.b16 %v5518, %v5510
  %v5727 = vpack.c.b16 %v5519, %v5511
  %v5728 = vpack.c.b16 %v5520, %v5512
  %v5729 = vpack.c.b16 %v5521, %v5513
  %v5730 = vpack.c.b16 %v5522, %v5514
  %v5731 = vpack.c.b16 %v5531, %v5523
  %v5732 = vpack.c.b16 %v5532, %v5524
  %v5733 = vpack.c.b16 %v5533, %v5525
  %v5734 = vpack.c.b16 %v5534, %v5526
  %v5735 = vpack.c.b16 %v5535, %v5527
  %v5736 = vpack.c.b16 %v5536, %v5528
  %v5737 = vpack.c.b16 %v5537, %v5529
  %v5738 = vpack.c.b16 %v5538, %v5530
  %v5739 = vpack.c.b16 %v5547, %v5539
  %v5740 = vpack.c.b16 %v5548, %v5540
  %v5741 = vpack.c.b16 %v5549, %v5541
  %v5742 = vpack.c.b16 %v5550, %v5542
  %v5743 = vpack.c.b16 %v5551, %v5543
  %v5744 = vpack.c.b16 %v5552, %v5544
  %v5745 = vpack.c.b16 %v5553, %v5545
  %v5746 = vpack.c.b16 %v5554, %v5546
  %v5747 = vpack.c.b16 %v5563, %v5555
  %v5748 = vpack.c.b16 %v5564, %v5556
  %v5749 = vpack.c.b16 %v5565, %v5557
  %v5750 = vpack.c.b16 %v5566, %v5558
  %v5751 = vpack.c.b16 %v5567, %v5559
  %v5752 = vpack.c.b16 %v5568, %v5560
  %v5753 = vpack.c.b16 %v5569, %v5561
  %v5754 = vpack.c.b16 %v5570, %v5562
  %v5755 = vpack.c.b16 %v5579, %v5571
  %v5756 = vpack.c.b16 %v5580, %v5572
  %v5757 = vpack.c.b16 %v5581, %v5573
  %v5758 = vpack.c.b16 %v5582, %v5574
  %v5759 = vpack.c.b16 %v5583, %v5575
  %v5760 = vpack.c.b16 %v5584, %v5576
  %v5761 = vpack.c.b16 %v5585, %v5577
  %v5762 = vpack.c.b16 %v5586, %v5578
  %v5763 = vpack.c.b16 %v5595, %v5587
  %v5764 = vpack.c.b16 %v5596, %v5588
  %v5765 = vpack.c.b16 %v5597, %v5589
  %v5766 = vpack.c.b16 %v5598, %v5590
  %v5767 = vpack.c.b16 %v5599, %v5591
  %v5768 = vpack.c.b16 %v5600, %v5592
  %v5769 = vpack.c.b16 %v5601, %v5593
  %v5770 = vpack.c.b16 %v5602, %v5594
  %v5771 = vpack.c.b16 %v5611, %v5603
  %v5772 = vpack.c.b16 %v5612, %v5604
  %v5773 = vpack.c.b16 %v5613, %v5605
  %v5774 = vpack.c.b16 %v5614, %v5606
  %v5775 = vpack.c.b16 %v5615, %v5607
  %v5776 = vpack.c.b16 %v5616, %v5608
  %v5777 = vpack.c.b16 %v5617, %v5609
  %v5778 = vpack.c.b16 %v5618, %v5610
  %v5779 = vpack.c.b16 %v5627, %v5619
  %v5780 = vpack.c.b16 %v5628, %v5620
  %v5781 = vpack.c.b16 %v5629, %v5621
  %v5782 = vpack.c.b16 %v5630, %v5622
  %v5783 = vpack.c.b16 %v5631, %v5623
  %v5784 = vpack.c.b16 %v5632, %v5624
  %v5785 = vpack.c.b16 %v5633, %v5625
  %v5786 = vpack.c.b16 %v5634, %v5626
  %v5787 = vpack.c.b16 %v5643, %v5635
  %v5788 = vpack.c.b16 %v5644, %v5636
  %v5789 = vpack.c.b16 %v5645, %v5637
  %v5790 = vpack.c.b16 %v5646, %v5638
  %v5791 = vpack.c.b16 %v5647, %v5639
  %v5792 = vpack.c.b16 %v5648, %v5640
  %v5793 = vpack.c.b16 %v5649, %v5641
  %v5794 = vpack.c.b16 %v5650, %v5642
  %v5795 = vpack.c.b16 %v5659, %v5651
  %v5796 = vpack.c.b16 %v5660, %v5652
  %v5797 = vpack.c.b16 %v5661, %v5653
  %v5798 = vpack.c.b16 %v5662, %v5654
  %v5799 = vpack.c.b16 %v5663, %v5655
  %v5800 = vpack.c.b16 %v5664, %v5656
  %v5801 = vpack.c.b16 %v5665, %v5657
  %v5802 = vpack.c.b16 %v5666, %v5658
  %v5803 = vpack.c.b16 %v5675, %v5667
  %v5804 = vpack.c.b16 %v5676, %v5668
  %v5805 = vpack.c.b16 %v5677, %v5669
  %v5806 = vpack.c.b16 %v5678, %v5670
  %v5807 = vpack.c.b16 %v5679, %v5671
  %v5808 = vpack.c.b16 %v5680, %v5672
  %v5809 = vpack.c.b16 %v5681, %v5673
  %v5810 = vpack.c.b16 %v5682, %v5674
  %5939 = vmatprep.subr.bf16.mxu0 %v5740
  %5940 = vmatpush1.bf16.msra.mxu0 %v5739
  %5941 = vmatprep.subr.bf16.mxu0 %v5732
  %5942 = vmatpush1.bf16.msra.mxu0 %v5731
  %5943 = vmatprep.subr.bf16.mxu0 %v5724
  %5944 = vmatpush1.bf16.msra.mxu0 %v5723
  %5945 = vmatprep.subr.bf16.mxu0 %v5716
  %5946 = vmatpush1.bf16.msra.mxu0 %v5715
  %5947 = vmatprep.subr.bf16.mxu0 %v5708
  %5948 = vmatpush1.bf16.msra.mxu0 %v5707
  %5949 = vmatprep.subr.bf16.mxu0 %v5700
  %5950 = vmatpush1.bf16.msra.mxu0 %v5699
  %5951 = vmatprep.subr.bf16.mxu0 %v5692
  %5952 = vmatpush1.bf16.msra.mxu0 %v5691
  %5953 = vmatprep.subr.bf16.mxu0 %v5684
  %5954 = vmatpush1.bf16.msra.mxu0 %v5683
  %5955 = vmatprep.subr.bf16.mxu0 %v5804
  %5956 = vmatpush2.bf16.msra.mxu0 %v5803
  %5957 = vmatprep.subr.bf16.mxu0 %v5796
  %5958 = vmatpush2.bf16.msra.mxu0 %v5795
  %5959 = vmatprep.subr.bf16.mxu0 %v5788
  %5960 = vmatpush2.bf16.msra.mxu0 %v5787
  %5961 = vmatprep.subr.bf16.mxu0 %v5780
  %5962 = vmatpush2.bf16.msra.mxu0 %v5779
  %5963 = vmatprep.subr.bf16.mxu0 %v5772
  %5964 = vmatpush2.bf16.msra.mxu0 %v5771
  %5965 = vmatprep.subr.bf16.mxu0 %v5764
  %5966 = vmatpush2.bf16.msra.mxu0 %v5763
  %5967 = vmatprep.subr.bf16.mxu0 %v5756
  %5968 = vmatpush2.bf16.msra.mxu0 %v5755
  %5969 = vmatprep.subr.bf16.mxu0 %v5748
  %5970 = vmatpush2.bf16.msra.mxu0 %v5747
  %5971 = vmatprep.mubr.bf16.mxu0 %v5170
  %5972 = vmatmul.mubr.bf16.gmra.mxu0 %v5169
  %v5973 = vpop.f32.mrf.mxu0
  %v5974 = vadd.f32 0.0, %v5973
  %v5975 = vpop.f32.mrf.mxu0
  %v5976 = vadd.f32 0.0, %v5975
  %v5977 = vpop.f32.mrf.mxu0
  %v5978 = vpop.f32.mrf.mxu0
  %5979 = vdwg.mxu0
  %5980 = vmatprep.subr.bf16.mxu0 %v5742
  %5981 = vmatpush1.bf16.msra.mxu0 %v5741
  %5982 = vmatprep.subr.bf16.mxu0 %v5734
  %5983 = vmatpush1.bf16.msra.mxu0 %v5733
  %5984 = vmatprep.subr.bf16.mxu0 %v5726
  %5985 = vmatpush1.bf16.msra.mxu0 %v5725
  %5986 = vmatprep.subr.bf16.mxu0 %v5718
  %5987 = vmatpush1.bf16.msra.mxu0 %v5717
  %5988 = vmatprep.subr.bf16.mxu0 %v5710
  %5989 = vmatpush1.bf16.msra.mxu0 %v5709
  %5990 = vmatprep.subr.bf16.mxu0 %v5702
  %5991 = vmatpush1.bf16.msra.mxu0 %v5701
  %5992 = vmatprep.subr.bf16.mxu0 %v5694
  %5993 = vmatpush1.bf16.msra.mxu0 %v5693
  %5994 = vmatprep.subr.bf16.mxu0 %v5686
  %5995 = vmatpush1.bf16.msra.mxu0 %v5685
  %5996 = vmatprep.subr.bf16.mxu0 %v5806
  %5997 = vmatpush2.bf16.msra.mxu0 %v5805
  %5998 = vmatprep.subr.bf16.mxu0 %v5798
  %5999 = vmatpush2.bf16.msra.mxu0 %v5797
  %6000 = vmatprep.subr.bf16.mxu0 %v5790
  %6001 = vmatpush2.bf16.msra.mxu0 %v5789
  %6002 = vmatprep.subr.bf16.mxu0 %v5782
  %6003 = vmatpush2.bf16.msra.mxu0 %v5781
  %6004 = vmatprep.subr.bf16.mxu0 %v5774
  %6005 = vmatpush2.bf16.msra.mxu0 %v5773
  %6006 = vmatprep.subr.bf16.mxu0 %v5766
  %6007 = vmatpush2.bf16.msra.mxu0 %v5765
  %6008 = vmatprep.subr.bf16.mxu0 %v5758
  %6009 = vmatpush2.bf16.msra.mxu0 %v5757
  %6010 = vmatprep.subr.bf16.mxu0 %v5750
  %6011 = vmatpush2.bf16.msra.mxu0 %v5749
  %6012 = vmatprep.mubr.bf16.mxu0 %v5170
  %6013 = vmatmul.mubr.bf16.gmra.mxu0 %v5169
  %v6014 = vpop.f32.mrf.mxu0
  %v6015 = vadd.f32 0.0, %v6014
  %v6016 = vpop.f32.mrf.mxu0
  %v6017 = vadd.f32 0.0, %v6016
  %v6018 = vpop.f32.mrf.mxu0
  %v6019 = vpop.f32.mrf.mxu0
  %6020 = vdwg.mxu0
  %6021 = vmatprep.subr.bf16.mxu0 %v5744
  %6022 = vmatpush1.bf16.msra.mxu0 %v5743
  %6023 = vmatprep.subr.bf16.mxu0 %v5736
  %6024 = vmatpush1.bf16.msra.mxu0 %v5735
  %6025 = vmatprep.subr.bf16.mxu0 %v5728
  %6026 = vmatpush1.bf16.msra.mxu0 %v5727
  %6027 = vmatprep.subr.bf16.mxu0 %v5720
  %6028 = vmatpush1.bf16.msra.mxu0 %v5719
  %6029 = vmatprep.subr.bf16.mxu0 %v5712
  %6030 = vmatpush1.bf16.msra.mxu0 %v5711
  %6031 = vmatprep.subr.bf16.mxu0 %v5704
  %6032 = vmatpush1.bf16.msra.mxu0 %v5703
  %6033 = vmatprep.subr.bf16.mxu0 %v5696
  %6034 = vmatpush1.bf16.msra.mxu0 %v5695
  %6035 = vmatprep.subr.bf16.mxu0 %v5688
  %6036 = vmatpush1.bf16.msra.mxu0 %v5687
  %6037 = vmatprep.subr.bf16.mxu0 %v5808
  %6038 = vmatpush2.bf16.msra.mxu0 %v5807
  %6039 = vmatprep.subr.bf16.mxu0 %v5800
  %6040 = vmatpush2.bf16.msra.mxu0 %v5799
  %6041 = vmatprep.subr.bf16.mxu0 %v5792
  %6042 = vmatpush2.bf16.msra.mxu0 %v5791
  %6043 = vmatprep.subr.bf16.mxu0 %v5784
  %6044 = vmatpush2.bf16.msra.mxu0 %v5783
  %6045 = vmatprep.subr.bf16.mxu0 %v5776
  %6046 = vmatpush2.bf16.msra.mxu0 %v5775
  %6047 = vmatprep.subr.bf16.mxu0 %v5768
  %6048 = vmatpush2.bf16.msra.mxu0 %v5767
  %6049 = vmatprep.subr.bf16.mxu0 %v5760
  %6050 = vmatpush2.bf16.msra.mxu0 %v5759
  %6051 = vmatprep.subr.bf16.mxu0 %v5752
  %6052 = vmatpush2.bf16.msra.mxu0 %v5751
  %6053 = vmatprep.mubr.bf16.mxu0 %v5170
  %6054 = vmatmul.mubr.bf16.gmra.mxu0 %v5169
  %v6055 = vpop.f32.mrf.mxu0
  %v6056 = vadd.f32 0.0, %v6055
  %v6057 = vpop.f32.mrf.mxu0
  %v6058 = vadd.f32 0.0, %v6057
  %v6059 = vpop.f32.mrf.mxu0
  %v6060 = vpop.f32.mrf.mxu0
  %6061 = vdwg.mxu0
  %6062 = vmatprep.subr.bf16.mxu0 %v5746
  %6063 = vmatpush1.bf16.msra.mxu0 %v5745
  %6064 = vmatprep.subr.bf16.mxu0 %v5738
  %6065 = vmatpush1.bf16.msra.mxu0 %v5737
  %6066 = vmatprep.subr.bf16.mxu0 %v5730
  %6067 = vmatpush1.bf16.msra.mxu0 %v5729
  %6068 = vmatprep.subr.bf16.mxu0 %v5722
  %6069 = vmatpush1.bf16.msra.mxu0 %v5721
  %6070 = vmatprep.subr.bf16.mxu0 %v5714
  %6071 = vmatpush1.bf16.msra.mxu0 %v5713
  %6072 = vmatprep.subr.bf16.mxu0 %v5706
  %6073 = vmatpush1.bf16.msra.mxu0 %v5705
  %6074 = vmatprep.subr.bf16.mxu0 %v5698
  %6075 = vmatpush1.bf16.msra.mxu0 %v5697
  %6076 = vmatprep.subr.bf16.mxu0 %v5690
  %6077 = vmatpush1.bf16.msra.mxu0 %v5689
  %6078 = vmatprep.subr.bf16.mxu0 %v5810
  %6079 = vmatpush2.bf16.msra.mxu0 %v5809
  %6080 = vmatprep.subr.bf16.mxu0 %v5802
  %6081 = vmatpush2.bf16.msra.mxu0 %v5801
  %6082 = vmatprep.subr.bf16.mxu0 %v5794
  %6083 = vmatpush2.bf16.msra.mxu0 %v5793
  %6084 = vmatprep.subr.bf16.mxu0 %v5786
  %6085 = vmatpush2.bf16.msra.mxu0 %v5785
  %6086 = vmatprep.subr.bf16.mxu0 %v5778
  %6087 = vmatpush2.bf16.msra.mxu0 %v5777
  %6088 = vmatprep.subr.bf16.mxu0 %v5770
  %6089 = vmatpush2.bf16.msra.mxu0 %v5769
  %6090 = vmatprep.subr.bf16.mxu0 %v5762
  %6091 = vmatpush2.bf16.msra.mxu0 %v5761
  %6092 = vmatprep.subr.bf16.mxu0 %v5754
  %6093 = vmatpush2.bf16.msra.mxu0 %v5753
  %6094 = vmatprep.mubr.bf16.mxu0 %v5170
  %6095 = vmatmul.mubr.bf16.gmra.mxu0 %v5169
  %v6096 = vpop.f32.mrf.mxu0
  %v6097 = vadd.f32 0.0, %v6096
  %v6098 = vpop.f32.mrf.mxu0
  %v6099 = vadd.f32 0.0, %v6098
  %v6100 = vpop.f32.mrf.mxu0
  %v6101 = vpop.f32.mrf.mxu0
  %6102 = vdwg.mxu0
  %v6103 = vadd.f32 %v4915, %v5974
  %v6104 = vadd.f32 %v4917, %v5976
  %v6105 = vadd.f32 %v4997, %v6015
  %v6106 = vadd.f32 %v4999, %v6017
  %v6107 = vadd.f32 %v5079, %v6056
  %v6108 = vadd.f32 %v5081, %v6058
  %v6109 = vadd.f32 %v5161, %v6097
  %v6110 = vadd.f32 %v5163, %v6099
  %v6111 = vld [vmem:[%s14] sm:$0xff]
  %v6113 = vlaneseq
  %v6114 = vshrl.u32 %v6113, 7
  %v6115 = vsub.s32 0, %v6114
  %v6116 = vrot.slane %v6111, %v6115
  %v6117 = vlaneseq
  %v6118 = vshrl.u32 %v6117, 7
  %v6119 = vsub.s32 1, %v6118
  %v6120 = vrot.slane %v6111, %v6119
  %v6121 = vlaneseq
  %v6122 = vshrl.u32 %v6121, 7
  %v6123 = vsub.s32 2, %v6122
  %v6124 = vrot.slane %v6111, %v6123
  %v6125 = vlaneseq
  %v6126 = vshrl.u32 %v6125, 7
  %v6127 = vsub.s32 3, %v6126
  %v6128 = vrot.slane %v6111, %v6127
  %v6129 = vlaneseq
  %v6130 = vshrl.u32 %v6129, 7
  %v6131 = vsub.s32 4, %v6130
  %v6132 = vrot.slane %v6111, %v6131
  %v6133 = vlaneseq
  %v6134 = vshrl.u32 %v6133, 7
  %v6135 = vsub.s32 5, %v6134
  %v6136 = vrot.slane %v6111, %v6135
  %v6137 = vlaneseq
  %v6138 = vshrl.u32 %v6137, 7
  %v6139 = vsub.s32 6, %v6138
  %v6140 = vrot.slane %v6111, %v6139
  %v6141 = vlaneseq
  %v6142 = vshrl.u32 %v6141, 7
  %v6143 = vsub.s32 7, %v6142
  %v6144 = vrot.slane %v6111, %v6143
  %v6153 = vadd.f32 %v6103, %v6116
  %v6154 = vadd.f32 %v6104, %v6120
  %v6155 = vadd.f32 %v6105, %v6124
  %v6156 = vadd.f32 %v6106, %v6128
  %v6157 = vadd.f32 %v6107, %v6132
  %v6158 = vadd.f32 %v6108, %v6136
  %v6159 = vadd.f32 %v6109, %v6140
  %v6160 = vadd.f32 %v6110, %v6144
  %v6161 = vxor.u32 %v6153, 2147483648
  %v6162 = vxor.u32 %v6154, 2147483648
  %v6163 = vmul.f32 %v6161, 1.442695
  %v6164 = vpow.pop %v6163
  %v6165 = vmul.f32 %v6162, 1.442695
  %v6166 = vpow.pop %v6165
  %v6167 = vadd.f32 %v6164, 1.0
  %v6168 = vadd.f32 %v6166, 1.0
  %v6169 = vrcp.pop %v6167
  %v6170 = vmul.f32 1.0, %v6169
  %v6171 = vrcp.pop %v6168
  %v6172 = vmul.f32 1.0, %v6171
  %v6173 = vxor.u32 %v6155, 2147483648
  %v6174 = vxor.u32 %v6156, 2147483648
  %v6175 = vmul.f32 %v6173, 1.442695
  %v6176 = vpow.pop %v6175
  %v6177 = vmul.f32 %v6174, 1.442695
  %v6178 = vpow.pop %v6177
  %v6179 = vadd.f32 %v6176, 1.0
  %v6180 = vadd.f32 %v6178, 1.0
  %v6181 = vrcp.pop %v6179
  %v6182 = vmul.f32 1.0, %v6181
  %v6183 = vrcp.pop %v6180
  %v6184 = vmul.f32 1.0, %v6183
  %v6185 = vtanh.pop %v6157
  %v6186 = vtanh.pop %v6158
  %v6187 = vxor.u32 %v6159, 2147483648
  %v6188 = vxor.u32 %v6160, 2147483648
  %v6189 = vmul.f32 %v6187, 1.442695
  %v6190 = vpow.pop %v6189
  %v6191 = vmul.f32 %v6188, 1.442695
  %v6192 = vpow.pop %v6191
  %v6193 = vadd.f32 %v6190, 1.0
  %v6194 = vadd.f32 %v6192, 1.0
  %v6195 = vrcp.pop %v6193
  %v6196 = vmul.f32 1.0, %v6195
  %v6197 = vrcp.pop %v6194
  %v6198 = vmul.f32 1.0, %v6197
  %v6199 = vld [vmem:[%s18] sm:$0xff]
  %v6200 = vld [vmem:[%s18 + $0x8] sm:$0xff]
  %v6201 = vmul.f32 %v6182, %v6199
  %v6202 = vmul.f32 %v6184, %v6200
  %v6203 = vmul.f32 %v6170, %v6185
  %v6204 = vmul.f32 %v6172, %v6186
  %v6205 = vadd.f32 %v6201, %v6203
  %v6206 = vadd.f32 %v6202, %v6204
  %v6207 = vtanh.pop %v6205
  %v6208 = vtanh.pop %v6206
  %v6209 = vmul.f32 %v6196, %v6207
  %v6210 = vmul.f32 %v6198, %v6208
  %6211 = vst [vmem:[%s22] sm:$0xff] %v6205
  %6212 = vst [vmem:[%s22 + $0x8] sm:$0xff] %v6206
  %6213 = vst [vmem:[%s21] sm:$0xff] %v6209
  %6214 = vst [vmem:[%s21 + $0x8] sm:$0xff] %v6210
  %v6215 = vpack.c.bf16 %v6209, %v6209
  %v6216 = vpack.c.bf16 %v6210, %v6210
  %v6217 = vld [vmem:[%s15] sm:$0xf]
  %v6218 = vld [vmem:[%s15 + $0x4] sm:$0xf]
  %v6219 = vld [vmem:[%s15 + $0x8] sm:$0xf]
  %v6220 = vld [vmem:[%s15 + $0xc] sm:$0xf]
  %v6221 = vld [vmem:[%s15 + $0x10] sm:$0xf]
  %v6222 = vld [vmem:[%s15 + $0x14] sm:$0xf]
  %v6223 = vld [vmem:[%s15 + $0x18] sm:$0xf]
  %v6224 = vld [vmem:[%s15 + $0x1c] sm:$0xf]
  %v6225 = vld [vmem:[%s15 + $0x20] sm:$0xf]
  %v6226 = vld [vmem:[%s15 + $0x24] sm:$0xf]
  %v6227 = vld [vmem:[%s15 + $0x28] sm:$0xf]
  %v6228 = vld [vmem:[%s15 + $0x2c] sm:$0xf]
  %v6229 = vld [vmem:[%s15 + $0x30] sm:$0xf]
  %v6230 = vld [vmem:[%s15 + $0x34] sm:$0xf]
  %v6231 = vld [vmem:[%s15 + $0x38] sm:$0xf]
  %v6232 = vld [vmem:[%s15 + $0x3c] sm:$0xf]
  %v6233 = vld [vmem:[%s15 + $0x40] sm:$0xf]
  %v6234 = vld [vmem:[%s15 + $0x44] sm:$0xf]
  %v6235 = vld [vmem:[%s15 + $0x48] sm:$0xf]
  %v6236 = vld [vmem:[%s15 + $0x4c] sm:$0xf]
  %v6237 = vld [vmem:[%s15 + $0x50] sm:$0xf]
  %v6238 = vld [vmem:[%s15 + $0x54] sm:$0xf]
  %v6239 = vld [vmem:[%s15 + $0x58] sm:$0xf]
  %v6240 = vld [vmem:[%s15 + $0x5c] sm:$0xf]
  %v6241 = vld [vmem:[%s15 + $0x60] sm:$0xf]
  %v6242 = vld [vmem:[%s15 + $0x64] sm:$0xf]
  %v6243 = vld [vmem:[%s15 + $0x68] sm:$0xf]
  %v6244 = vld [vmem:[%s15 + $0x6c] sm:$0xf]
  %v6245 = vld [vmem:[%s15 + $0x70] sm:$0xf]
  %v6246 = vld [vmem:[%s15 + $0x74] sm:$0xf]
  %v6247 = vld [vmem:[%s15 + $0x78] sm:$0xf]
  %v6248 = vld [vmem:[%s15 + $0x7c] sm:$0xf]
  %v6249 = vld [vmem:[%s16] sm:$0x1]
  %v6251 = vlaneseq
  %v6252 = vshrl.u32 %v6251, 7
  %v6253 = vsub.s32 0, %v6252
  %v6254 = vrot.slane %v6249, %v6253
  %v6288 = vunpack.c.l.b16 %v6217
  %v6289 = vunpack.c.l.b16 %v6218
  %v6290 = vunpack.c.l.b16 %v6219
  %v6291 = vunpack.c.l.b16 %v6220
  %v6292 = vunpack.c.l.b16 %v6221
  %v6293 = vunpack.c.l.b16 %v6222
  %v6294 = vunpack.c.l.b16 %v6223
  %v6295 = vunpack.c.l.b16 %v6224
  %v6296 = vunpack.c.l.b16 %v6225
  %v6297 = vunpack.c.l.b16 %v6226
  %v6298 = vunpack.c.l.b16 %v6227
  %v6299 = vunpack.c.l.b16 %v6228
  %v6300 = vunpack.c.l.b16 %v6229
  %v6301 = vunpack.c.l.b16 %v6230
  %v6302 = vunpack.c.l.b16 %v6231
  %v6303 = vunpack.c.l.b16 %v6232
  %v6304 = vunpack.c.l.b16 %v6233
  %v6305 = vunpack.c.l.b16 %v6234
  %v6306 = vunpack.c.l.b16 %v6235
  %v6307 = vunpack.c.l.b16 %v6236
  %v6308 = vunpack.c.l.b16 %v6237
  %v6309 = vunpack.c.l.b16 %v6238
  %v6310 = vunpack.c.l.b16 %v6239
  %v6311 = vunpack.c.l.b16 %v6240
  %v6312 = vunpack.c.l.b16 %v6241
  %v6313 = vunpack.c.l.b16 %v6242
  %v6314 = vunpack.c.l.b16 %v6243
  %v6315 = vunpack.c.l.b16 %v6244
  %v6316 = vunpack.c.l.b16 %v6245
  %v6317 = vunpack.c.l.b16 %v6246
  %v6318 = vunpack.c.l.b16 %v6247
  %v6319 = vunpack.c.l.b16 %v6248
  %v6320 = vpack.c.b16 %v6289, %v6288
  %v6321 = vpack.c.b16 %v6291, %v6290
  %v6322 = vpack.c.b16 %v6293, %v6292
  %v6323 = vpack.c.b16 %v6295, %v6294
  %v6324 = vpack.c.b16 %v6297, %v6296
  %v6325 = vpack.c.b16 %v6299, %v6298
  %v6326 = vpack.c.b16 %v6301, %v6300
  %v6327 = vpack.c.b16 %v6303, %v6302
  %v6328 = vpack.c.b16 %v6305, %v6304
  %v6329 = vpack.c.b16 %v6307, %v6306
  %v6330 = vpack.c.b16 %v6309, %v6308
  %v6331 = vpack.c.b16 %v6311, %v6310
  %v6332 = vpack.c.b16 %v6313, %v6312
  %v6333 = vpack.c.b16 %v6315, %v6314
  %v6334 = vpack.c.b16 %v6317, %v6316
  %v6335 = vpack.c.b16 %v6319, %v6318
  %6352 = vmatprep.subr.bf16.mxu0 0
  %6353 = vmatpush1.bf16.msra.mxu0 %v6327
  %6354 = vmatprep.subr.bf16.mxu0 0
  %6355 = vmatpush1.bf16.msra.mxu0 %v6326
  %6356 = vmatprep.subr.bf16.mxu0 0
  %6357 = vmatpush1.bf16.msra.mxu0 %v6325
  %6358 = vmatprep.subr.bf16.mxu0 0
  %6359 = vmatpush1.bf16.msra.mxu0 %v6324
  %6360 = vmatprep.subr.bf16.mxu0 0
  %6361 = vmatpush1.bf16.msra.mxu0 %v6323
  %6362 = vmatprep.subr.bf16.mxu0 0
  %6363 = vmatpush1.bf16.msra.mxu0 %v6322
  %6364 = vmatprep.subr.bf16.mxu0 0
  %6365 = vmatpush1.bf16.msra.mxu0 %v6321
  %6366 = vmatprep.subr.bf16.mxu0 0
  %6367 = vmatpush1.bf16.msra.mxu0 %v6320
  %6368 = vmatprep.subr.bf16.mxu0 0
  %6369 = vmatpush2.bf16.msra.mxu0 %v6335
  %6370 = vmatprep.subr.bf16.mxu0 0
  %6371 = vmatpush2.bf16.msra.mxu0 %v6334
  %6372 = vmatprep.subr.bf16.mxu0 0
  %6373 = vmatpush2.bf16.msra.mxu0 %v6333
  %6374 = vmatprep.subr.bf16.mxu0 0
  %6375 = vmatpush2.bf16.msra.mxu0 %v6332
  %6376 = vmatprep.subr.bf16.mxu0 0
  %6377 = vmatpush2.bf16.msra.mxu0 %v6331
  %6378 = vmatprep.subr.bf16.mxu0 0
  %6379 = vmatpush2.bf16.msra.mxu0 %v6330
  %6380 = vmatprep.subr.bf16.mxu0 0
  %6381 = vmatpush2.bf16.msra.mxu0 %v6329
  %6382 = vmatprep.subr.bf16.mxu0 0
  %6383 = vmatpush2.bf16.msra.mxu0 %v6328
  %6384 = vmatprep.mubr.bf16.mxu0 %v6216
  %6385 = vmatmul.mubr.bf16.gmra.mxu0 %v6215
  %v6386 = vpop.f32.mrf.mxu0
  %v6387 = vadd.f32 %v6254, %v6386
  %v6388 = vpop.f32.mrf.mxu0
  %v6389 = vpop.f32.mrf.mxu0
  %v6390 = vpop.f32.mrf.mxu0
  %6391 = vdwg.mxu0
  %6392 = vst [vmem:[%s20] sm:$0xff] %v6387
  // Predicated region
  $region82: #{_forward_fn.1} parent=0 // pred_check
    _
  $region83: #{_forward_fn.1} parent=0 // pred_check_branch
    %6394 = sbr.rel (0) target = $region85
  $region84: #{_forward_fn.1} parent=0 // pred_region
    _
  $region85: #{_forward_fn.1} parent=0 // pred_fallthru
    _
  // Predicated region
  $region86: #{_forward_fn.1} parent=0 // pred_check
    _
  $region87: #{_forward_fn.1} parent=0 // pred_check_branch
    %6396 = sbr.rel (0) target = $region89
  $region88: #{_forward_fn.1} parent=0 // pred_region
    _
  $region89: #{_forward_fn.1} parent=0 // pred_fallthru
    _
  // Predicated region
  $region90: #{_forward_fn.1} parent=0 // pred_check
    _
  $region91: #{_forward_fn.1} parent=0 // pred_check_branch
    %6398 = sbr.rel (0) target = $region93
  $region92: #{_forward_fn.1} parent=0 // pred_region
    _
  $region93: #{_forward_fn.1} parent=0 // pred_fallthru
    _
  // Predicated region
  $region94: #{_forward_fn.1} parent=0 // pred_check
    _
  $region95: #{_forward_fn.1} parent=0 // pred_check_branch
    %6400 = sbr.rel (0) target = $region97
  $region96: #{_forward_fn.1} parent=0 // pred_region
    _
  $region97: #{_forward_fn.1} parent=0 // pred_fallthru
    _
  // Predicated region
  $region98: #{_forward_fn.1} parent=0 // pred_check
    _
  $region99: #{_forward_fn.1} parent=0 // pred_check_branch
    %6402 = sbr.rel (0) target = $region101
  $region100: #{_forward_fn.1} parent=0 // pred_region
    _
  $region101: #{_forward_fn.1} parent=0 // pred_fallthru
    _
  // Predicated region
  $region102: #{_forward_fn.1} parent=0 // pred_check
    _
  $region103: #{_forward_fn.1} parent=0 // pred_check_branch
    %6404 = sbr.rel (0) target = $region105
  $region104: #{_forward_fn.1} parent=0 // pred_region
    _
  $region105: #{_forward_fn.1} parent=0 // pred_fallthru
    _

</llo_original>
